<compile_context>
chip_gen: v6e
topology: v6e:2x2x1
jax: 0.10.0
libtpu: 0.0.40
codegen_flags: <defaults>
</compile_context>

<pallas_src>
import numpy as np
import jax
import jax.numpy as jnp
from jax.experimental import pallas as pl
from jax.experimental.pallas import tpu as pltpu

EPS = 1e-5
N_BATCH = 2                 # BatchNorm batch (stats taken over this whole batch)
H0 = W0 = 16
C0 = 4
N_LAYERS = 6
C_PAD = 32                  # max channel count -> uniform channel padding
ROW_PAD = N_BATCH * H0      # 32: every layer's (N*H) row count fits here
LANE_W = W0 * C0            # 64: W*C is 64 for every layer of this net


def _layer_counts(n=N_BATCH, h=H0):
    hs, hh = [], h
    for _ in range(3):
        hh //= 2
        hs.append(hh)
    for _ in range(3):
        hh *= 2
        hs.append(hh)
    return tuple(n * s * s for s in hs)        # N * H_out * W_out per layer


COUNTS = _layer_counts()                       # (128, 32, 8, 32, 128, 512)


# ----------------------------- fused Pallas kernel ------------------------- #

def fused_cnn_kernel(x_ref, r_ref, kk_ref, q_ref, qt_ref, gb_ref,
                     k1_ref, b1_ref, o_ref):
    """Entire CNN forward for one BN batch; everything stays in VMEM/vregs.

    Activation layout: (ROW_PAD, W*C) = (32, 64), row = (n, h), col = (w, c);
    unused rows are zero and are ignored by construction (zero R columns).
    Conv / ConvTranspose:  y = [R0@a | R1@a | R2@a] @ KKcat   (one K=192 GEMM)
    BatchNorm (training-mode batch stats, single pass E[y^2]-mean^2) + ReLU.
    Conv biases are dropped: exactly cancelled by the BN mean subtraction.
    """
    a = x_ref[...]                                         # (32, 64) f32
    for li in range(N_LAYERS):
        a16 = a.astype(jnp.bfloat16)

        # --- 3x3 (transposed) conv: 3 row-selection GEMMs + ONE weight GEMM
        taps = []
        for di in range(3):
            t = jnp.dot(r_ref[3 * li + di], a16,
                        preferred_element_type=jnp.float32)
            taps.append(t.astype(jnp.bfloat16))            # exact: R is 0/1
        bcat = jnp.concatenate(taps, axis=1)               # (32, 192) bf16
        y = jnp.dot(bcat, kk_ref[li],
                    preferred_element_type=jnp.float32)    # (32, 64) f32

        # --- BatchNorm2d (training-mode, biased var) + ReLU, single pass ---
        ssum = jnp.sum(y, axis=0, keepdims=True)
        ssq = jnp.sum(y * y, axis=0, keepdims=True)
        stats = jnp.concatenate([ssum, ssq], axis=0)       # (2, 64)
        stats_c = jnp.dot(stats, q_ref[li].astype(jnp.float32),
                          preferred_element_type=jnp.float32)   # (2, 32)
        inv_cnt = 1.0 / float(COUNTS[li])
        mean_c = stats_c[0:1] * inv_cnt
        var_c = stats_c[1:2] * inv_cnt - mean_c * mean_c
        gbl = gb_ref[li]                                   # (2, 32) f32
        scale_c = gbl[0:1] * jax.lax.rsqrt(var_c + EPS)
        shift_c = gbl[1:2] - scale_c * mean_c
        aff_c = jnp.concatenate([scale_c, shift_c], axis=0)     # (2, 32)
        aff_w = jnp.dot(aff_c, qt_ref[li].astype(jnp.float32),
                        preferred_element_type=jnp.float32)     # (2, 64)
        a = jnp.maximum(y * aff_w[0:1] + aff_w[1:2], 0.0)

    # --- final 1x1 conv (4 -> 1 channel), bias kept -------------------------
    o_ref[...] = (jnp.dot(a.astype(jnp.bfloat16), k1_ref[...],
                          preferred_element_type=jnp.float32) + b1_ref[...])


# --------------------- host-side constant construction --------------------- #

def _enc_src(i, d, size):
    """Conv2d k=3, s=2, p=1: source index for output i, tap d (None = padding)."""
    h = 2 * i + d - 1
    return h if 0 <= h < size else None


def _dec_src(i, d, size):
    """ConvTranspose2d k=3, s=2, p=1, op=1 (dilate+pad+conv): source index."""
    t = i + d - 1
    if t < 0 or t % 2 != 0:
        return None
    h = t // 2
    return h if h < size else None


def _build_conv_consts(w_eff, src, n, h_in, w_in, h_out, w_out, c_in, c_out):
    """w_eff: effective forward-conv weight (C_out, C_in, 3, 3), numpy f32.

    Returns R (3, ROW_PAD, ROW_PAD) 0/1 row-selection matrices (zero-padded)
    and KKcat (3*w_in*c_in, w_out*c_out) = vstack of the 3 per-tap column
    selection x weight matrices, so that
        conv(a) == [R0@a | R1@a | R2@a] @ KKcat
    on a (ROW_PAD, w_in*c_in) activation matrix with layout (n*h, w*c).
    Padding / stride-2 / transposed-conv dilation are folded into the zeros.
    """
    R = np.zeros((3, ROW_PAD, ROW_PAD), np.float32)
    for di in range(3):
        for b in range(n):
            for i in range(h_out):
                h = src(i, di, h_in)
                if h is not None:
                    R[di, b * h_out + i, b * h_in + h] = 1.0

    KK = np.zeros((3, w_in * c_in, w_out * c_out), np.float32)
    for di in range(3):
        for j in range(w_out):
            for dj in range(3):
                w = src(j, dj, w_in)
                if w is not None:
                    KK[di, w * c_in:(w + 1) * c_in, j * c_out:(j + 1) * c_out] += \
                        w_eff[:, :, di, dj].T
    return R, KK.reshape(3 * w_in * c_in, w_out * c_out)


def _build_q(w_out, c_out):
    """Q (w_out*c_out, C_PAD): one-hot channel selector (sum over w positions).
    Qt = Q.T broadcasts per-channel scale/shift back over the (w, c) lanes."""
    Q = np.zeros((w_out * c_out, C_PAD), np.float32)
    for wj in range(w_out):
        for cj in range(c_out):
            Q[wj * c_out + cj, cj] = 1.0
    return Q, np.ascontiguousarray(Q.T)


def prepare_constants(params, n=N_BATCH, h=H0, w=W0, c=C0):
    """Build all packed kernel constants on host (bf16 GEMM operands)."""
    Rs, KKs, Qs, QTs, GBs, counts = [], [], [], [], [], []

    layer_defs = []
    for (wt, _b, g, bt) in params["enc"]:               # conv bias cancelled by BN
        layer_defs.append(("enc", np.asarray(wt, np.float32), g, bt))
    for (wt, _b, g, bt) in params["dec"]:
        w_np = np.asarray(wt, np.float32)               # (C_in, C_out, 3, 3)
        w_eff = np.ascontiguousarray(
            np.transpose(w_np[:, :, ::-1, ::-1], (1, 0, 2, 3)))  # flip + swap
        layer_defs.append(("dec", w_eff, g, bt))

    hh, ww, cc = h, w, c
    for kind, w_eff, g, bt in layer_defs:
        c_out = w_eff.shape[0]
        if kind == "enc":
            ho, wo, src = hh // 2, ww // 2, _enc_src
        else:
            ho, wo, src = 2 * hh, 2 * ww, _dec_src
        R, KKcat = _build_conv_consts(w_eff, src, n, hh, ww, ho, wo, cc, c_out)
        Q, Qt = _build_q(wo, c_out)
        gb = np.zeros((2, C_PAD), np.float32)           # padded channels: 0 -> safe
        gb[0, :c_out] = np.asarray(g, np.float32)
        gb[1, :c_out] = np.asarray(bt, np.float32)
        Rs.append(R); KKs.append(KKcat); Qs.append(Q); QTs.append(Qt); GBs.append(gb)
        counts.append(n * ho * wo)
        hh, ww, cc = ho, wo, c_out

    assert tuple(counts) == COUNTS

    # final 1x1 conv (4 -> 1), bias kept.
    wf, bf = params["final"]                            # wf: (1, C_in, 1, 1)
    wv = np.asarray(wf, np.float32)[0, :, 0, 0]
    K1 = np.zeros((ww * cc, ww), np.float32)
    for j in range(ww):
        K1[j * cc:(j + 1) * cc, j] = wv
    b1 = np.full((1, ww), float(np.asarray(bf)[0]), np.float32)

    return {
        "r": jnp.asarray(np.stack(Rs).reshape(N_LAYERS * 3, ROW_PAD, ROW_PAD),
                         jnp.bfloat16),                  # (18, 32, 32)
        "kk": jnp.asarray(np.stack(KKs), jnp.bfloat16),  # (6, 192, 64)
        "q": jnp.asarray(np.stack(Qs), jnp.bfloat16),    # (6, 64, 32)
        "qt": jnp.asarray(np.stack(QTs), jnp.bfloat16),  # (6, 32, 64)
        "gb": jnp.asarray(np.stack(GBs), jnp.float32),   # (6, 2, 32)
        "k1": jnp.asarray(K1, jnp.bfloat16),             # (64, 16)
        "b1": jnp.asarray(b1, jnp.float32),              # (1, 16)
    }


# ------------------------------ forward wrappers ---------------------------- #

CONST_ORDER = ("r", "kk", "q", "qt", "gb", "k1", "b1")


def _const_spec(arr):
    nd = arr.ndim
    # index_map -> block 0 for every grid step: constants are fetched once and
    # stay resident across the (parallel) group axis.
    return pl.BlockSpec(arr.shape, lambda gi, _nd=nd: (0,) * _nd)


def cnn_forward_grouped(x_gnchw, consts):
    """x: (G, N, 4, 16, 16); each group g is one independent BN batch of size N."""
    g, n, c, h, w = x_gnchw.shape
    assert (n * h, w * c) == (ROW_PAD, LANE_W), (n, c, h, w)
    # NCHW -> (G, N*H, W*C) activation matrix (row = (n, h), col = (w, c)).
    x_mat = jnp.transpose(x_gnchw, (0, 1, 3, 4, 2)).astype(jnp.float32)
    x_mat = x_mat.reshape(g, n * h, w * c)

    const_args = [consts[k] for k in CONST_ORDER]
    in_specs = ([pl.BlockSpec((None, n * h, w * c), lambda gi: (gi, 0, 0))]
                + [_const_spec(a) for a in const_args])

    out_mat = pl.pallas_call(
        fused_cnn_kernel,
        out_shape=jax.ShapeDtypeStruct((g, n * h, w), jnp.float32),
        grid=(g,),
        in_specs=in_specs,
        out_specs=pl.BlockSpec((None, n * h, w), lambda gi: (gi, 0, 0)),
        compiler_params=pltpu.CompilerParams(
            dimension_semantics=("parallel",)),   # both TCs on v7x when G > 1
    )(x_mat, *const_args)

    # (G, N*H, W) -> (G, N, 1, H, W)
    return out_mat.reshape(g, n, h, w)[:, :, None, :, :]


def cnn_forward(x_nchw, consts):
    """PyTorch-like interface: (N, 4, 16, 16) -> (N, 1, 16, 16)."""
    return cnn_forward_grouped(x_nchw[None], consts)[0]


# -------------------------- plain-JAX reference ----------------------------- #

def _reference_forward(x_nchw, params):
    """Straightforward NHWC f32 reference of the PyTorch forward (validation)."""
    x = jnp.transpose(x_nchw, (0, 2, 3, 1)).astype(jnp.float32)

    def bn_relu(y, g, bt):
        mean = jnp.mean(y, axis=(0, 1, 2), keepdims=True)
        var = jnp.mean(jnp.square(y - mean), axis=(0, 1, 2), keepdims=True)
        yn = (y - mean) * jax.lax.rsqrt(var + EPS)
        return jnp.maximum(yn * g + bt, 0.0)

    def conv3x3(xp, wt, stride):
        _, hp, wp, _ = xp.shape
        ho = (hp - 3) // stride + 1
        wo = (wp - 3) // stride + 1
        y = 0.0
        for di in range(3):
            for dj in range(3):
                win = xp[:, di:di + stride * ho:stride, dj:dj + stride * wo:stride, :]
                y = y + jnp.einsum('nhwc,oc->nhwo', win, wt[:, :, di, dj],
                                   precision=jax.lax.Precision.HIGHEST)
        return y

    for (wt, b, g, bt) in params["enc"]:
        xp = jnp.pad(x, ((0, 0), (1, 1), (1, 1), (0, 0)))
        x = bn_relu(conv3x3(xp, wt, stride=2) + b, g, bt)
    for (wt, b, g, bt) in params["dec"]:
        xd = jax.lax.pad(x, jnp.float32(0.0),
                         ((0, 0, 0), (1, 2, 1), (1, 2, 1), (0, 0, 0)))
        w_conv = jnp.transpose(jnp.flip(wt, axis=(2, 3)), (1, 0, 2, 3))
        x = bn_relu(conv3x3(xd, w_conv, stride=1) + b, g, bt)
    wf, bf = params["final"]
    y = jnp.einsum('nhwc,oc->nhwo', x, wf[:, :, 0, 0],
                   precision=jax.lax.Precision.HIGHEST) + bf
    return jnp.transpose(y, (0, 3, 1, 2))


# --------------------------- deterministic params --------------------------- #

def make_params(key):
    params = {"enc": [], "dec": []}
    in_c = 4
    for _ in range(3):  # encoder
        out_c = in_c * 2
        key, k1, k2 = jax.random.split(key, 3)
        fan_in = in_c * 9
        w = jax.random.normal(k1, (out_c, in_c, 3, 3), jnp.float32) / jnp.sqrt(fan_in)
        b = 0.1 * jax.random.normal(k2, (out_c,), jnp.float32)   # cancelled by BN
        g = jnp.ones((out_c,), jnp.float32)
        bt = jnp.zeros((out_c,), jnp.float32)
        params["enc"].append((w, b, g, bt))
        in_c = out_c
    for _ in range(3):  # decoder
        out_c = in_c // 2
        key, k1, k2 = jax.random.split(key, 3)
        fan_in = in_c * 9
        w = jax.random.normal(k1, (in_c, out_c, 3, 3), jnp.float32) / jnp.sqrt(fan_in)
        b = 0.1 * jax.random.normal(k2, (out_c,), jnp.float32)   # cancelled by BN
        g = jnp.ones((out_c,), jnp.float32)
        bt = jnp.zeros((out_c,), jnp.float32)
        params["dec"].append((w, b, g, bt))
        in_c = out_c
    key, k1, k2 = jax.random.split(key, 3)
    wf = jax.random.normal(k1, (1, in_c, 1, 1), jnp.float32) / jnp.sqrt(in_c)
    bf = 0.1 * jax.random.normal(k2, (1,), jnp.float32)
    params["final"] = (wf, bf)
    return params


if __name__ == "__main__":
    key = jax.random.PRNGKey(0)
    k_param, k_data, k_grp = jax.random.split(key, 3)
    params = make_params(k_param)
    consts = prepare_constants(params)

    # NCHW input, same convention as the PyTorch module.
    x = jax.random.normal(k_data, (N_BATCH, C0, H0, W0), jnp.float32)

    fwd = jax.jit(cnn_forward)
    out = jax.block_until_ready(fwd(x, consts))

    assert out.shape == (N_BATCH, 1, H0, W0), out.shape
    assert out.dtype == jnp.float32
    assert bool(jnp.all(jnp.isfinite(out)))

    # Validate against a plain-JAX f32 reference of the same forward pass.
    # GEMM operands run in bf16 on the MXU (per perf review), so use a tight
    # relative-norm check plus a loose elementwise tolerance.
    ref = jax.jit(_reference_forward)(x, params)
    rel = float(jnp.linalg.norm(out - ref) / jnp.linalg.norm(ref))
    assert rel < 5e-2, rel
    assert bool(jnp.allclose(out, ref, rtol=1e-1, atol=1e-1)), \
        float(jnp.max(jnp.abs(out - ref)))

    # Amortized path: G independent BN batches in ONE pallas_call (parallel
    # grid axis -> both v7x TensorCores; constants DMA'd once, not per group).
    G = 3
    xg = jax.random.normal(k_grp, (G, N_BATCH, C0, H0, W0), jnp.float32)
    outg = jax.block_until_ready(jax.jit(cnn_forward_grouped)(xg, consts))
    refg = jax.jit(jax.vmap(lambda xi: _reference_forward(xi, params)))(xg)
    assert outg.shape == (G, N_BATCH, 1, H0, W0), outg.shape
    relg = float(jnp.linalg.norm(outg - refg) / jnp.linalg.norm(refg))
    assert relg < 5e-2, relg

    print("KERNEL_OK")
</pallas_src>

<mosaic_0001>
module attributes {stable_mosaic.version = 11 : i64} {
  func.func @fused_cnn_kernel(%arg0: i32, %arg1: memref<1x32x64xf32, #tpu.memory_space<vmem>>, %arg2: memref<18x32x32xbf16, #tpu.memory_space<vmem>>, %arg3: memref<6x192x64xbf16, #tpu.memory_space<vmem>>, %arg4: memref<6x64x32xbf16, #tpu.memory_space<vmem>>, %arg5: memref<6x32x64xbf16, #tpu.memory_space<vmem>>, %arg6: memref<6x2x32xf32, #tpu.memory_space<vmem>>, %arg7: memref<64x16xbf16, #tpu.memory_space<vmem>>, %arg8: memref<1x16xf32, #tpu.memory_space<vmem>>, %arg9: memref<1x32x16xf32, #tpu.memory_space<vmem>>) attributes {dimension_semantics = [#tpu.dimension_semantics<parallel>], iteration_bounds = array<i64: 1>, scalar_prefetch = 0 : i64, scratch_operands = 0 : i64, tpu.core_type = #tpu.core_type<tc>, window_params = [{transform_indices = @transform_0, window_bounds = array<i64: 1, 32, 64>}, {pipeline_mode = #tpu.pipeline_mode<synchronous>, transform_indices = @transform_1, window_bounds = array<i64: 18, 32, 32>}, {pipeline_mode = #tpu.pipeline_mode<synchronous>, transform_indices = @transform_2, window_bounds = array<i64: 6, 192, 64>}, {pipeline_mode = #tpu.pipeline_mode<synchronous>, transform_indices = @transform_3, window_bounds = array<i64: 6, 64, 32>}, {pipeline_mode = #tpu.pipeline_mode<synchronous>, transform_indices = @transform_4, window_bounds = array<i64: 6, 32, 64>}, {pipeline_mode = #tpu.pipeline_mode<synchronous>, transform_indices = @transform_5, window_bounds = array<i64: 6, 2, 32>}, {pipeline_mode = #tpu.pipeline_mode<synchronous>, transform_indices = @transform_6, window_bounds = array<i64: 64, 16>}, {pipeline_mode = #tpu.pipeline_mode<synchronous>, transform_indices = @transform_7, window_bounds = array<i64: 1, 16>}, {transform_indices = @transform_8, window_bounds = array<i64: 1, 32, 16>}]} {
    %c0 = arith.constant 0 : index
    %c0_0 = arith.constant 0 : index
    %c0_1 = arith.constant 0 : index
    %0 = vector.load %arg1[%c0, %c0_0, %c0_1] : memref<1x32x64xf32, #tpu.memory_space<vmem>>, vector<1x32x64xf32>
    %1 = vector.shape_cast %0 : vector<1x32x64xf32> to vector<32x64xf32>
    %2 = arith.truncf %1 : vector<32x64xf32> to vector<32x64xbf16>
    %c0_2 = arith.constant 0 : index
    %c0_3 = arith.constant 0 : index
    %c0_4 = arith.constant 0 : index
    %3 = vector.load %arg2[%c0_2, %c0_3, %c0_4] : memref<18x32x32xbf16, #tpu.memory_space<vmem>>, vector<1x32x32xbf16>
    %4 = vector.shape_cast %3 : vector<1x32x32xbf16> to vector<32x32xbf16>
    %cst = arith.constant dense<0.000000e+00> : vector<32x64xf32>
    %5 = tpu.matmul %4, %2, %cst {dimension_numbers = #tpu.dot_dimension_numbers<[1], [0], [0], [1], [0, 0, 1, 1], [], []>} : vector<32x32xbf16>, vector<32x64xbf16>, vector<32x64xf32> -> vector<32x64xf32>
    %6 = arith.truncf %5 : vector<32x64xf32> to vector<32x64xbf16>
    %c1 = arith.constant 1 : index
    %c0_5 = arith.constant 0 : index
    %c0_6 = arith.constant 0 : index
    %7 = vector.load %arg2[%c1, %c0_5, %c0_6] : memref<18x32x32xbf16, #tpu.memory_space<vmem>>, vector<1x32x32xbf16>
    %8 = vector.shape_cast %7 : vector<1x32x32xbf16> to vector<32x32xbf16>
    %cst_7 = arith.constant dense<0.000000e+00> : vector<32x64xf32>
    %9 = tpu.matmul %8, %2, %cst_7 {dimension_numbers = #tpu.dot_dimension_numbers<[1], [0], [0], [1], [0, 0, 1, 1], [], []>} : vector<32x32xbf16>, vector<32x64xbf16>, vector<32x64xf32> -> vector<32x64xf32>
    %10 = arith.truncf %9 : vector<32x64xf32> to vector<32x64xbf16>
    %c2 = arith.constant 2 : index
    %c0_8 = arith.constant 0 : index
    %c0_9 = arith.constant 0 : index
    %11 = vector.load %arg2[%c2, %c0_8, %c0_9] : memref<18x32x32xbf16, #tpu.memory_space<vmem>>, vector<1x32x32xbf16>
    %12 = vector.shape_cast %11 : vector<1x32x32xbf16> to vector<32x32xbf16>
    %cst_10 = arith.constant dense<0.000000e+00> : vector<32x64xf32>
    %13 = tpu.matmul %12, %2, %cst_10 {dimension_numbers = #tpu.dot_dimension_numbers<[1], [0], [0], [1], [0, 0, 1, 1], [], []>} : vector<32x32xbf16>, vector<32x64xbf16>, vector<32x64xf32> -> vector<32x64xf32>
    %14 = arith.truncf %13 : vector<32x64xf32> to vector<32x64xbf16>
    %15 = tpu.concatenate %6, %10, %14 in 1 : vector<32x64xbf16>, vector<32x64xbf16>, vector<32x64xbf16> -> vector<32x192xbf16>
    %c0_11 = arith.constant 0 : index
    %c0_12 = arith.constant 0 : index
    %c0_13 = arith.constant 0 : index
    %16 = vector.load %arg3[%c0_11, %c0_12, %c0_13] : memref<6x192x64xbf16, #tpu.memory_space<vmem>>, vector<1x192x64xbf16>
    %17 = vector.shape_cast %16 : vector<1x192x64xbf16> to vector<192x64xbf16>
    %cst_14 = arith.constant dense<0.000000e+00> : vector<32x64xf32>
    %18 = tpu.matmul %15, %17, %cst_14 {dimension_numbers = #tpu.dot_dimension_numbers<[1], [0], [0], [1], [0, 0, 1, 1], [], []>} : vector<32x192xbf16>, vector<192x64xbf16>, vector<32x64xf32> -> vector<32x64xf32>
    %cst_15 = arith.constant dense<0.000000e+00> : vector<64xf32>
    %19 = vector.multi_reduction <add>, %18, %cst_15 [0] : vector<32x64xf32> to vector<64xf32>
    %20 = vector.shape_cast %19 : vector<64xf32> to vector<1x64xf32>
    %21 = arith.mulf %18, %18 : vector<32x64xf32>
    %cst_16 = arith.constant dense<0.000000e+00> : vector<64xf32>
    %22 = vector.multi_reduction <add>, %21, %cst_16 [0] : vector<32x64xf32> to vector<64xf32>
    %23 = vector.shape_cast %22 : vector<64xf32> to vector<1x64xf32>
    %24 = tpu.concatenate %20, %23 in 0 : vector<1x64xf32>, vector<1x64xf32> -> vector<2x64xf32>
    %c0_17 = arith.constant 0 : index
    %c0_18 = arith.constant 0 : index
    %c0_19 = arith.constant 0 : index
    %25 = vector.load %arg4[%c0_17, %c0_18, %c0_19] : memref<6x64x32xbf16, #tpu.memory_space<vmem>>, vector<1x64x32xbf16>
    %26 = vector.shape_cast %25 : vector<1x64x32xbf16> to vector<64x32xbf16>
    %27 = arith.extf %26 : vector<64x32xbf16> to vector<64x32xf32>
    %cst_20 = arith.constant dense<0.000000e+00> : vector<2x32xf32>
    %28 = tpu.matmul %24, %27, %cst_20 {dimension_numbers = #tpu.dot_dimension_numbers<[1], [0], [0], [1], [0, 0, 1, 1], [], []>} : vector<2x64xf32>, vector<64x32xf32>, vector<2x32xf32> -> vector<2x32xf32>
    %29 = vector.extract_strided_slice %28 {offsets = [0, 0], sizes = [1, 32], strides = [1, 1]} : vector<2x32xf32> to vector<1x32xf32>
    %cst_21 = arith.constant 7.812500e-03 : f32
    %30 = vector.broadcast %cst_21 : f32 to vector<1x32xf32>
    %31 = arith.mulf %29, %30 : vector<1x32xf32>
    %32 = vector.extract_strided_slice %28 {offsets = [1, 0], sizes = [1, 32], strides = [1, 1]} : vector<2x32xf32> to vector<1x32xf32>
    %cst_22 = arith.constant 7.812500e-03 : f32
    %33 = vector.broadcast %cst_22 : f32 to vector<1x32xf32>
    %34 = arith.mulf %32, %33 : vector<1x32xf32>
    %35 = arith.mulf %31, %31 : vector<1x32xf32>
    %36 = arith.subf %34, %35 : vector<1x32xf32>
    %c0_23 = arith.constant 0 : index
    %c0_24 = arith.constant 0 : index
    %c0_25 = arith.constant 0 : index
    %37 = vector.load %arg6[%c0_23, %c0_24, %c0_25] : memref<6x2x32xf32, #tpu.memory_space<vmem>>, vector<1x2x32xf32>
    %38 = vector.shape_cast %37 : vector<1x2x32xf32> to vector<2x32xf32>
    %39 = vector.extract_strided_slice %38 {offsets = [0, 0], sizes = [1, 32], strides = [1, 1]} : vector<2x32xf32> to vector<1x32xf32>
    %cst_26 = arith.constant 9.99999974E-6 : f32
    %40 = vector.broadcast %cst_26 : f32 to vector<1x32xf32>
    %41 = arith.addf %36, %40 : vector<1x32xf32>
    %42 = math.rsqrt %41 : vector<1x32xf32>
    %43 = arith.mulf %39, %42 : vector<1x32xf32>
    %44 = vector.extract_strided_slice %38 {offsets = [1, 0], sizes = [1, 32], strides = [1, 1]} : vector<2x32xf32> to vector<1x32xf32>
    %45 = arith.mulf %43, %31 : vector<1x32xf32>
    %46 = arith.subf %44, %45 : vector<1x32xf32>
    %47 = tpu.concatenate %43, %46 in 0 : vector<1x32xf32>, vector<1x32xf32> -> vector<2x32xf32>
    %c0_27 = arith.constant 0 : index
    %c0_28 = arith.constant 0 : index
    %c0_29 = arith.constant 0 : index
    %48 = vector.load %arg5[%c0_27, %c0_28, %c0_29] : memref<6x32x64xbf16, #tpu.memory_space<vmem>>, vector<1x32x64xbf16>
    %49 = vector.shape_cast %48 : vector<1x32x64xbf16> to vector<32x64xbf16>
    %50 = arith.extf %49 : vector<32x64xbf16> to vector<32x64xf32>
    %cst_30 = arith.constant dense<0.000000e+00> : vector<2x64xf32>
    %51 = tpu.matmul %47, %50, %cst_30 {dimension_numbers = #tpu.dot_dimension_numbers<[1], [0], [0], [1], [0, 0, 1, 1], [], []>} : vector<2x32xf32>, vector<32x64xf32>, vector<2x64xf32> -> vector<2x64xf32>
    %52 = vector.extract_strided_slice %51 {offsets = [0, 0], sizes = [1, 64], strides = [1, 1]} : vector<2x64xf32> to vector<1x64xf32>
    %53 = vector.broadcast %52 : vector<1x64xf32> to vector<32x64xf32>
    %54 = arith.mulf %18, %53 : vector<32x64xf32>
    %55 = vector.extract_strided_slice %51 {offsets = [1, 0], sizes = [1, 64], strides = [1, 1]} : vector<2x64xf32> to vector<1x64xf32>
    %56 = vector.broadcast %55 : vector<1x64xf32> to vector<32x64xf32>
    %57 = arith.addf %54, %56 : vector<32x64xf32>
    %cst_31 = arith.constant 0.000000e+00 : f32
    %58 = vector.broadcast %cst_31 : f32 to vector<32x64xf32>
    %59 = arith.maximumf %57, %58 : vector<32x64xf32>
    %60 = arith.truncf %59 : vector<32x64xf32> to vector<32x64xbf16>
    %c3 = arith.constant 3 : index
    %c0_32 = arith.constant 0 : index
    %c0_33 = arith.constant 0 : index
    %61 = vector.load %arg2[%c3, %c0_32, %c0_33] : memref<18x32x32xbf16, #tpu.memory_space<vmem>>, vector<1x32x32xbf16>
    %62 = vector.shape_cast %61 : vector<1x32x32xbf16> to vector<32x32xbf16>
    %cst_34 = arith.constant dense<0.000000e+00> : vector<32x64xf32>
    %63 = tpu.matmul %62, %60, %cst_34 {dimension_numbers = #tpu.dot_dimension_numbers<[1], [0], [0], [1], [0, 0, 1, 1], [], []>} : vector<32x32xbf16>, vector<32x64xbf16>, vector<32x64xf32> -> vector<32x64xf32>
    %64 = arith.truncf %63 : vector<32x64xf32> to vector<32x64xbf16>
    %c4 = arith.constant 4 : index
    %c0_35 = arith.constant 0 : index
    %c0_36 = arith.constant 0 : index
    %65 = vector.load %arg2[%c4, %c0_35, %c0_36] : memref<18x32x32xbf16, #tpu.memory_space<vmem>>, vector<1x32x32xbf16>
    %66 = vector.shape_cast %65 : vector<1x32x32xbf16> to vector<32x32xbf16>
    %cst_37 = arith.constant dense<0.000000e+00> : vector<32x64xf32>
    %67 = tpu.matmul %66, %60, %cst_37 {dimension_numbers = #tpu.dot_dimension_numbers<[1], [0], [0], [1], [0, 0, 1, 1], [], []>} : vector<32x32xbf16>, vector<32x64xbf16>, vector<32x64xf32> -> vector<32x64xf32>
    %68 = arith.truncf %67 : vector<32x64xf32> to vector<32x64xbf16>
    %c5 = arith.constant 5 : index
    %c0_38 = arith.constant 0 : index
    %c0_39 = arith.constant 0 : index
    %69 = vector.load %arg2[%c5, %c0_38, %c0_39] : memref<18x32x32xbf16, #tpu.memory_space<vmem>>, vector<1x32x32xbf16>
    %70 = vector.shape_cast %69 : vector<1x32x32xbf16> to vector<32x32xbf16>
    %cst_40 = arith.constant dense<0.000000e+00> : vector<32x64xf32>
    %71 = tpu.matmul %70, %60, %cst_40 {dimension_numbers = #tpu.dot_dimension_numbers<[1], [0], [0], [1], [0, 0, 1, 1], [], []>} : vector<32x32xbf16>, vector<32x64xbf16>, vector<32x64xf32> -> vector<32x64xf32>
    %72 = arith.truncf %71 : vector<32x64xf32> to vector<32x64xbf16>
    %73 = tpu.concatenate %64, %68, %72 in 1 : vector<32x64xbf16>, vector<32x64xbf16>, vector<32x64xbf16> -> vector<32x192xbf16>
    %c1_41 = arith.constant 1 : index
    %c0_42 = arith.constant 0 : index
    %c0_43 = arith.constant 0 : index
    %74 = vector.load %arg3[%c1_41, %c0_42, %c0_43] : memref<6x192x64xbf16, #tpu.memory_space<vmem>>, vector<1x192x64xbf16>
    %75 = vector.shape_cast %74 : vector<1x192x64xbf16> to vector<192x64xbf16>
    %cst_44 = arith.constant dense<0.000000e+00> : vector<32x64xf32>
    %76 = tpu.matmul %73, %75, %cst_44 {dimension_numbers = #tpu.dot_dimension_numbers<[1], [0], [0], [1], [0, 0, 1, 1], [], []>} : vector<32x192xbf16>, vector<192x64xbf16>, vector<32x64xf32> -> vector<32x64xf32>
    %cst_45 = arith.constant dense<0.000000e+00> : vector<64xf32>
    %77 = vector.multi_reduction <add>, %76, %cst_45 [0] : vector<32x64xf32> to vector<64xf32>
    %78 = vector.shape_cast %77 : vector<64xf32> to vector<1x64xf32>
    %79 = arith.mulf %76, %76 : vector<32x64xf32>
    %cst_46 = arith.constant dense<0.000000e+00> : vector<64xf32>
    %80 = vector.multi_reduction <add>, %79, %cst_46 [0] : vector<32x64xf32> to vector<64xf32>
    %81 = vector.shape_cast %80 : vector<64xf32> to vector<1x64xf32>
    %82 = tpu.concatenate %78, %81 in 0 : vector<1x64xf32>, vector<1x64xf32> -> vector<2x64xf32>
    %c1_47 = arith.constant 1 : index
    %c0_48 = arith.constant 0 : index
    %c0_49 = arith.constant 0 : index
    %83 = vector.load %arg4[%c1_47, %c0_48, %c0_49] : memref<6x64x32xbf16, #tpu.memory_space<vmem>>, vector<1x64x32xbf16>
    %84 = vector.shape_cast %83 : vector<1x64x32xbf16> to vector<64x32xbf16>
    %85 = arith.extf %84 : vector<64x32xbf16> to vector<64x32xf32>
    %cst_50 = arith.constant dense<0.000000e+00> : vector<2x32xf32>
    %86 = tpu.matmul %82, %85, %cst_50 {dimension_numbers = #tpu.dot_dimension_numbers<[1], [0], [0], [1], [0, 0, 1, 1], [], []>} : vector<2x64xf32>, vector<64x32xf32>, vector<2x32xf32> -> vector<2x32xf32>
    %87 = vector.extract_strided_slice %86 {offsets = [0, 0], sizes = [1, 32], strides = [1, 1]} : vector<2x32xf32> to vector<1x32xf32>
    %cst_51 = arith.constant 3.125000e-02 : f32
    %88 = vector.broadcast %cst_51 : f32 to vector<1x32xf32>
    %89 = arith.mulf %87, %88 : vector<1x32xf32>
    %90 = vector.extract_strided_slice %86 {offsets = [1, 0], sizes = [1, 32], strides = [1, 1]} : vector<2x32xf32> to vector<1x32xf32>
    %cst_52 = arith.constant 3.125000e-02 : f32
    %91 = vector.broadcast %cst_52 : f32 to vector<1x32xf32>
    %92 = arith.mulf %90, %91 : vector<1x32xf32>
    %93 = arith.mulf %89, %89 : vector<1x32xf32>
    %94 = arith.subf %92, %93 : vector<1x32xf32>
    %c1_53 = arith.constant 1 : index
    %c0_54 = arith.constant 0 : index
    %c0_55 = arith.constant 0 : index
    %95 = vector.load %arg6[%c1_53, %c0_54, %c0_55] : memref<6x2x32xf32, #tpu.memory_space<vmem>>, vector<1x2x32xf32>
    %96 = vector.shape_cast %95 : vector<1x2x32xf32> to vector<2x32xf32>
    %97 = vector.extract_strided_slice %96 {offsets = [0, 0], sizes = [1, 32], strides = [1, 1]} : vector<2x32xf32> to vector<1x32xf32>
    %cst_56 = arith.constant 9.99999974E-6 : f32
    %98 = vector.broadcast %cst_56 : f32 to vector<1x32xf32>
    %99 = arith.addf %94, %98 : vector<1x32xf32>
    %100 = math.rsqrt %99 : vector<1x32xf32>
    %101 = arith.mulf %97, %100 : vector<1x32xf32>
    %102 = vector.extract_strided_slice %96 {offsets = [1, 0], sizes = [1, 32], strides = [1, 1]} : vector<2x32xf32> to vector<1x32xf32>
    %103 = arith.mulf %101, %89 : vector<1x32xf32>
    %104 = arith.subf %102, %103 : vector<1x32xf32>
    %105 = tpu.concatenate %101, %104 in 0 : vector<1x32xf32>, vector<1x32xf32> -> vector<2x32xf32>
    %c1_57 = arith.constant 1 : index
    %c0_58 = arith.constant 0 : index
    %c0_59 = arith.constant 0 : index
    %106 = vector.load %arg5[%c1_57, %c0_58, %c0_59] : memref<6x32x64xbf16, #tpu.memory_space<vmem>>, vector<1x32x64xbf16>
    %107 = vector.shape_cast %106 : vector<1x32x64xbf16> to vector<32x64xbf16>
    %108 = arith.extf %107 : vector<32x64xbf16> to vector<32x64xf32>
    %cst_60 = arith.constant dense<0.000000e+00> : vector<2x64xf32>
    %109 = tpu.matmul %105, %108, %cst_60 {dimension_numbers = #tpu.dot_dimension_numbers<[1], [0], [0], [1], [0, 0, 1, 1], [], []>} : vector<2x32xf32>, vector<32x64xf32>, vector<2x64xf32> -> vector<2x64xf32>
    %110 = vector.extract_strided_slice %109 {offsets = [0, 0], sizes = [1, 64], strides = [1, 1]} : vector<2x64xf32> to vector<1x64xf32>
    %111 = vector.broadcast %110 : vector<1x64xf32> to vector<32x64xf32>
    %112 = arith.mulf %76, %111 : vector<32x64xf32>
    %113 = vector.extract_strided_slice %109 {offsets = [1, 0], sizes = [1, 64], strides = [1, 1]} : vector<2x64xf32> to vector<1x64xf32>
    %114 = vector.broadcast %113 : vector<1x64xf32> to vector<32x64xf32>
    %115 = arith.addf %112, %114 : vector<32x64xf32>
    %cst_61 = arith.constant 0.000000e+00 : f32
    %116 = vector.broadcast %cst_61 : f32 to vector<32x64xf32>
    %117 = arith.maximumf %115, %116 : vector<32x64xf32>
    %118 = arith.truncf %117 : vector<32x64xf32> to vector<32x64xbf16>
    %c6 = arith.constant 6 : index
    %c0_62 = arith.constant 0 : index
    %c0_63 = arith.constant 0 : index
    %119 = vector.load %arg2[%c6, %c0_62, %c0_63] : memref<18x32x32xbf16, #tpu.memory_space<vmem>>, vector<1x32x32xbf16>
    %120 = vector.shape_cast %119 : vector<1x32x32xbf16> to vector<32x32xbf16>
    %cst_64 = arith.constant dense<0.000000e+00> : vector<32x64xf32>
    %121 = tpu.matmul %120, %118, %cst_64 {dimension_numbers = #tpu.dot_dimension_numbers<[1], [0], [0], [1], [0, 0, 1, 1], [], []>} : vector<32x32xbf16>, vector<32x64xbf16>, vector<32x64xf32> -> vector<32x64xf32>
    %122 = arith.truncf %121 : vector<32x64xf32> to vector<32x64xbf16>
    %c7 = arith.constant 7 : index
    %c0_65 = arith.constant 0 : index
    %c0_66 = arith.constant 0 : index
    %123 = vector.load %arg2[%c7, %c0_65, %c0_66] : memref<18x32x32xbf16, #tpu.memory_space<vmem>>, vector<1x32x32xbf16>
    %124 = vector.shape_cast %123 : vector<1x32x32xbf16> to vector<32x32xbf16>
    %cst_67 = arith.constant dense<0.000000e+00> : vector<32x64xf32>
    %125 = tpu.matmul %124, %118, %cst_67 {dimension_numbers = #tpu.dot_dimension_numbers<[1], [0], [0], [1], [0, 0, 1, 1], [], []>} : vector<32x32xbf16>, vector<32x64xbf16>, vector<32x64xf32> -> vector<32x64xf32>
    %126 = arith.truncf %125 : vector<32x64xf32> to vector<32x64xbf16>
    %c8 = arith.constant 8 : index
    %c0_68 = arith.constant 0 : index
    %c0_69 = arith.constant 0 : index
    %127 = vector.load %arg2[%c8, %c0_68, %c0_69] : memref<18x32x32xbf16, #tpu.memory_space<vmem>>, vector<1x32x32xbf16>
    %128 = vector.shape_cast %127 : vector<1x32x32xbf16> to vector<32x32xbf16>
    %cst_70 = arith.constant dense<0.000000e+00> : vector<32x64xf32>
    %129 = tpu.matmul %128, %118, %cst_70 {dimension_numbers = #tpu.dot_dimension_numbers<[1], [0], [0], [1], [0, 0, 1, 1], [], []>} : vector<32x32xbf16>, vector<32x64xbf16>, vector<32x64xf32> -> vector<32x64xf32>
    %130 = arith.truncf %129 : vector<32x64xf32> to vector<32x64xbf16>
    %131 = tpu.concatenate %122, %126, %130 in 1 : vector<32x64xbf16>, vector<32x64xbf16>, vector<32x64xbf16> -> vector<32x192xbf16>
    %c2_71 = arith.constant 2 : index
    %c0_72 = arith.constant 0 : index
    %c0_73 = arith.constant 0 : index
    %132 = vector.load %arg3[%c2_71, %c0_72, %c0_73] : memref<6x192x64xbf16, #tpu.memory_space<vmem>>, vector<1x192x64xbf16>
    %133 = vector.shape_cast %132 : vector<1x192x64xbf16> to vector<192x64xbf16>
    %cst_74 = arith.constant dense<0.000000e+00> : vector<32x64xf32>
    %134 = tpu.matmul %131, %133, %cst_74 {dimension_numbers = #tpu.dot_dimension_numbers<[1], [0], [0], [1], [0, 0, 1, 1], [], []>} : vector<32x192xbf16>, vector<192x64xbf16>, vector<32x64xf32> -> vector<32x64xf32>
    %cst_75 = arith.constant dense<0.000000e+00> : vector<64xf32>
    %135 = vector.multi_reduction <add>, %134, %cst_75 [0] : vector<32x64xf32> to vector<64xf32>
    %136 = vector.shape_cast %135 : vector<64xf32> to vector<1x64xf32>
    %137 = arith.mulf %134, %134 : vector<32x64xf32>
    %cst_76 = arith.constant dense<0.000000e+00> : vector<64xf32>
    %138 = vector.multi_reduction <add>, %137, %cst_76 [0] : vector<32x64xf32> to vector<64xf32>
    %139 = vector.shape_cast %138 : vector<64xf32> to vector<1x64xf32>
    %140 = tpu.concatenate %136, %139 in 0 : vector<1x64xf32>, vector<1x64xf32> -> vector<2x64xf32>
    %c2_77 = arith.constant 2 : index
    %c0_78 = arith.constant 0 : index
    %c0_79 = arith.constant 0 : index
    %141 = vector.load %arg4[%c2_77, %c0_78, %c0_79] : memref<6x64x32xbf16, #tpu.memory_space<vmem>>, vector<1x64x32xbf16>
    %142 = vector.shape_cast %141 : vector<1x64x32xbf16> to vector<64x32xbf16>
    %143 = arith.extf %142 : vector<64x32xbf16> to vector<64x32xf32>
    %cst_80 = arith.constant dense<0.000000e+00> : vector<2x32xf32>
    %144 = tpu.matmul %140, %143, %cst_80 {dimension_numbers = #tpu.dot_dimension_numbers<[1], [0], [0], [1], [0, 0, 1, 1], [], []>} : vector<2x64xf32>, vector<64x32xf32>, vector<2x32xf32> -> vector<2x32xf32>
    %145 = vector.extract_strided_slice %144 {offsets = [0, 0], sizes = [1, 32], strides = [1, 1]} : vector<2x32xf32> to vector<1x32xf32>
    %cst_81 = arith.constant 1.250000e-01 : f32
    %146 = vector.broadcast %cst_81 : f32 to vector<1x32xf32>
    %147 = arith.mulf %145, %146 : vector<1x32xf32>
    %148 = vector.extract_strided_slice %144 {offsets = [1, 0], sizes = [1, 32], strides = [1, 1]} : vector<2x32xf32> to vector<1x32xf32>
    %cst_82 = arith.constant 1.250000e-01 : f32
    %149 = vector.broadcast %cst_82 : f32 to vector<1x32xf32>
    %150 = arith.mulf %148, %149 : vector<1x32xf32>
    %151 = arith.mulf %147, %147 : vector<1x32xf32>
    %152 = arith.subf %150, %151 : vector<1x32xf32>
    %c2_83 = arith.constant 2 : index
    %c0_84 = arith.constant 0 : index
    %c0_85 = arith.constant 0 : index
    %153 = vector.load %arg6[%c2_83, %c0_84, %c0_85] : memref<6x2x32xf32, #tpu.memory_space<vmem>>, vector<1x2x32xf32>
    %154 = vector.shape_cast %153 : vector<1x2x32xf32> to vector<2x32xf32>
    %155 = vector.extract_strided_slice %154 {offsets = [0, 0], sizes = [1, 32], strides = [1, 1]} : vector<2x32xf32> to vector<1x32xf32>
    %cst_86 = arith.constant 9.99999974E-6 : f32
    %156 = vector.broadcast %cst_86 : f32 to vector<1x32xf32>
    %157 = arith.addf %152, %156 : vector<1x32xf32>
    %158 = math.rsqrt %157 : vector<1x32xf32>
    %159 = arith.mulf %155, %158 : vector<1x32xf32>
    %160 = vector.extract_strided_slice %154 {offsets = [1, 0], sizes = [1, 32], strides = [1, 1]} : vector<2x32xf32> to vector<1x32xf32>
    %161 = arith.mulf %159, %147 : vector<1x32xf32>
    %162 = arith.subf %160, %161 : vector<1x32xf32>
    %163 = tpu.concatenate %159, %162 in 0 : vector<1x32xf32>, vector<1x32xf32> -> vector<2x32xf32>
    %c2_87 = arith.constant 2 : index
    %c0_88 = arith.constant 0 : index
    %c0_89 = arith.constant 0 : index
    %164 = vector.load %arg5[%c2_87, %c0_88, %c0_89] : memref<6x32x64xbf16, #tpu.memory_space<vmem>>, vector<1x32x64xbf16>
    %165 = vector.shape_cast %164 : vector<1x32x64xbf16> to vector<32x64xbf16>
    %166 = arith.extf %165 : vector<32x64xbf16> to vector<32x64xf32>
    %cst_90 = arith.constant dense<0.000000e+00> : vector<2x64xf32>
    %167 = tpu.matmul %163, %166, %cst_90 {dimension_numbers = #tpu.dot_dimension_numbers<[1], [0], [0], [1], [0, 0, 1, 1], [], []>} : vector<2x32xf32>, vector<32x64xf32>, vector<2x64xf32> -> vector<2x64xf32>
    %168 = vector.extract_strided_slice %167 {offsets = [0, 0], sizes = [1, 64], strides = [1, 1]} : vector<2x64xf32> to vector<1x64xf32>
    %169 = vector.broadcast %168 : vector<1x64xf32> to vector<32x64xf32>
    %170 = arith.mulf %134, %169 : vector<32x64xf32>
    %171 = vector.extract_strided_slice %167 {offsets = [1, 0], sizes = [1, 64], strides = [1, 1]} : vector<2x64xf32> to vector<1x64xf32>
    %172 = vector.broadcast %171 : vector<1x64xf32> to vector<32x64xf32>
    %173 = arith.addf %170, %172 : vector<32x64xf32>
    %cst_91 = arith.constant 0.000000e+00 : f32
    %174 = vector.broadcast %cst_91 : f32 to vector<32x64xf32>
    %175 = arith.maximumf %173, %174 : vector<32x64xf32>
    %176 = arith.truncf %175 : vector<32x64xf32> to vector<32x64xbf16>
    %c9 = arith.constant 9 : index
    %c0_92 = arith.constant 0 : index
    %c0_93 = arith.constant 0 : index
    %177 = vector.load %arg2[%c9, %c0_92, %c0_93] : memref<18x32x32xbf16, #tpu.memory_space<vmem>>, vector<1x32x32xbf16>
    %178 = vector.shape_cast %177 : vector<1x32x32xbf16> to vector<32x32xbf16>
    %cst_94 = arith.constant dense<0.000000e+00> : vector<32x64xf32>
    %179 = tpu.matmul %178, %176, %cst_94 {dimension_numbers = #tpu.dot_dimension_numbers<[1], [0], [0], [1], [0, 0, 1, 1], [], []>} : vector<32x32xbf16>, vector<32x64xbf16>, vector<32x64xf32> -> vector<32x64xf32>
    %180 = arith.truncf %179 : vector<32x64xf32> to vector<32x64xbf16>
    %c10 = arith.constant 10 : index
    %c0_95 = arith.constant 0 : index
    %c0_96 = arith.constant 0 : index
    %181 = vector.load %arg2[%c10, %c0_95, %c0_96] : memref<18x32x32xbf16, #tpu.memory_space<vmem>>, vector<1x32x32xbf16>
    %182 = vector.shape_cast %181 : vector<1x32x32xbf16> to vector<32x32xbf16>
    %cst_97 = arith.constant dense<0.000000e+00> : vector<32x64xf32>
    %183 = tpu.matmul %182, %176, %cst_97 {dimension_numbers = #tpu.dot_dimension_numbers<[1], [0], [0], [1], [0, 0, 1, 1], [], []>} : vector<32x32xbf16>, vector<32x64xbf16>, vector<32x64xf32> -> vector<32x64xf32>
    %184 = arith.truncf %183 : vector<32x64xf32> to vector<32x64xbf16>
    %c11 = arith.constant 11 : index
    %c0_98 = arith.constant 0 : index
    %c0_99 = arith.constant 0 : index
    %185 = vector.load %arg2[%c11, %c0_98, %c0_99] : memref<18x32x32xbf16, #tpu.memory_space<vmem>>, vector<1x32x32xbf16>
    %186 = vector.shape_cast %185 : vector<1x32x32xbf16> to vector<32x32xbf16>
    %cst_100 = arith.constant dense<0.000000e+00> : vector<32x64xf32>
    %187 = tpu.matmul %186, %176, %cst_100 {dimension_numbers = #tpu.dot_dimension_numbers<[1], [0], [0], [1], [0, 0, 1, 1], [], []>} : vector<32x32xbf16>, vector<32x64xbf16>, vector<32x64xf32> -> vector<32x64xf32>
    %188 = arith.truncf %187 : vector<32x64xf32> to vector<32x64xbf16>
    %189 = tpu.concatenate %180, %184, %188 in 1 : vector<32x64xbf16>, vector<32x64xbf16>, vector<32x64xbf16> -> vector<32x192xbf16>
    %c3_101 = arith.constant 3 : index
    %c0_102 = arith.constant 0 : index
    %c0_103 = arith.constant 0 : index
    %190 = vector.load %arg3[%c3_101, %c0_102, %c0_103] : memref<6x192x64xbf16, #tpu.memory_space<vmem>>, vector<1x192x64xbf16>
    %191 = vector.shape_cast %190 : vector<1x192x64xbf16> to vector<192x64xbf16>
    %cst_104 = arith.constant dense<0.000000e+00> : vector<32x64xf32>
    %192 = tpu.matmul %189, %191, %cst_104 {dimension_numbers = #tpu.dot_dimension_numbers<[1], [0], [0], [1], [0, 0, 1, 1], [], []>} : vector<32x192xbf16>, vector<192x64xbf16>, vector<32x64xf32> -> vector<32x64xf32>
    %cst_105 = arith.constant dense<0.000000e+00> : vector<64xf32>
    %193 = vector.multi_reduction <add>, %192, %cst_105 [0] : vector<32x64xf32> to vector<64xf32>
    %194 = vector.shape_cast %193 : vector<64xf32> to vector<1x64xf32>
    %195 = arith.mulf %192, %192 : vector<32x64xf32>
    %cst_106 = arith.constant dense<0.000000e+00> : vector<64xf32>
    %196 = vector.multi_reduction <add>, %195, %cst_106 [0] : vector<32x64xf32> to vector<64xf32>
    %197 = vector.shape_cast %196 : vector<64xf32> to vector<1x64xf32>
    %198 = tpu.concatenate %194, %197 in 0 : vector<1x64xf32>, vector<1x64xf32> -> vector<2x64xf32>
    %c3_107 = arith.constant 3 : index
    %c0_108 = arith.constant 0 : index
    %c0_109 = arith.constant 0 : index
    %199 = vector.load %arg4[%c3_107, %c0_108, %c0_109] : memref<6x64x32xbf16, #tpu.memory_space<vmem>>, vector<1x64x32xbf16>
    %200 = vector.shape_cast %199 : vector<1x64x32xbf16> to vector<64x32xbf16>
    %201 = arith.extf %200 : vector<64x32xbf16> to vector<64x32xf32>
    %cst_110 = arith.constant dense<0.000000e+00> : vector<2x32xf32>
    %202 = tpu.matmul %198, %201, %cst_110 {dimension_numbers = #tpu.dot_dimension_numbers<[1], [0], [0], [1], [0, 0, 1, 1], [], []>} : vector<2x64xf32>, vector<64x32xf32>, vector<2x32xf32> -> vector<2x32xf32>
    %203 = vector.extract_strided_slice %202 {offsets = [0, 0], sizes = [1, 32], strides = [1, 1]} : vector<2x32xf32> to vector<1x32xf32>
    %cst_111 = arith.constant 3.125000e-02 : f32
    %204 = vector.broadcast %cst_111 : f32 to vector<1x32xf32>
    %205 = arith.mulf %203, %204 : vector<1x32xf32>
    %206 = vector.extract_strided_slice %202 {offsets = [1, 0], sizes = [1, 32], strides = [1, 1]} : vector<2x32xf32> to vector<1x32xf32>
    %cst_112 = arith.constant 3.125000e-02 : f32
    %207 = vector.broadcast %cst_112 : f32 to vector<1x32xf32>
    %208 = arith.mulf %206, %207 : vector<1x32xf32>
    %209 = arith.mulf %205, %205 : vector<1x32xf32>
    %210 = arith.subf %208, %209 : vector<1x32xf32>
    %c3_113 = arith.constant 3 : index
    %c0_114 = arith.constant 0 : index
    %c0_115 = arith.constant 0 : index
    %211 = vector.load %arg6[%c3_113, %c0_114, %c0_115] : memref<6x2x32xf32, #tpu.memory_space<vmem>>, vector<1x2x32xf32>
    %212 = vector.shape_cast %211 : vector<1x2x32xf32> to vector<2x32xf32>
    %213 = vector.extract_strided_slice %212 {offsets = [0, 0], sizes = [1, 32], strides = [1, 1]} : vector<2x32xf32> to vector<1x32xf32>
    %cst_116 = arith.constant 9.99999974E-6 : f32
    %214 = vector.broadcast %cst_116 : f32 to vector<1x32xf32>
    %215 = arith.addf %210, %214 : vector<1x32xf32>
    %216 = math.rsqrt %215 : vector<1x32xf32>
    %217 = arith.mulf %213, %216 : vector<1x32xf32>
    %218 = vector.extract_strided_slice %212 {offsets = [1, 0], sizes = [1, 32], strides = [1, 1]} : vector<2x32xf32> to vector<1x32xf32>
    %219 = arith.mulf %217, %205 : vector<1x32xf32>
    %220 = arith.subf %218, %219 : vector<1x32xf32>
    %221 = tpu.concatenate %217, %220 in 0 : vector<1x32xf32>, vector<1x32xf32> -> vector<2x32xf32>
    %c3_117 = arith.constant 3 : index
    %c0_118 = arith.constant 0 : index
    %c0_119 = arith.constant 0 : index
    %222 = vector.load %arg5[%c3_117, %c0_118, %c0_119] : memref<6x32x64xbf16, #tpu.memory_space<vmem>>, vector<1x32x64xbf16>
    %223 = vector.shape_cast %222 : vector<1x32x64xbf16> to vector<32x64xbf16>
    %224 = arith.extf %223 : vector<32x64xbf16> to vector<32x64xf32>
    %cst_120 = arith.constant dense<0.000000e+00> : vector<2x64xf32>
    %225 = tpu.matmul %221, %224, %cst_120 {dimension_numbers = #tpu.dot_dimension_numbers<[1], [0], [0], [1], [0, 0, 1, 1], [], []>} : vector<2x32xf32>, vector<32x64xf32>, vector<2x64xf32> -> vector<2x64xf32>
    %226 = vector.extract_strided_slice %225 {offsets = [0, 0], sizes = [1, 64], strides = [1, 1]} : vector<2x64xf32> to vector<1x64xf32>
    %227 = vector.broadcast %226 : vector<1x64xf32> to vector<32x64xf32>
    %228 = arith.mulf %192, %227 : vector<32x64xf32>
    %229 = vector.extract_strided_slice %225 {offsets = [1, 0], sizes = [1, 64], strides = [1, 1]} : vector<2x64xf32> to vector<1x64xf32>
    %230 = vector.broadcast %229 : vector<1x64xf32> to vector<32x64xf32>
    %231 = arith.addf %228, %230 : vector<32x64xf32>
    %cst_121 = arith.constant 0.000000e+00 : f32
    %232 = vector.broadcast %cst_121 : f32 to vector<32x64xf32>
    %233 = arith.maximumf %231, %232 : vector<32x64xf32>
    %234 = arith.truncf %233 : vector<32x64xf32> to vector<32x64xbf16>
    %c12 = arith.constant 12 : index
    %c0_122 = arith.constant 0 : index
    %c0_123 = arith.constant 0 : index
    %235 = vector.load %arg2[%c12, %c0_122, %c0_123] : memref<18x32x32xbf16, #tpu.memory_space<vmem>>, vector<1x32x32xbf16>
    %236 = vector.shape_cast %235 : vector<1x32x32xbf16> to vector<32x32xbf16>
    %cst_124 = arith.constant dense<0.000000e+00> : vector<32x64xf32>
    %237 = tpu.matmul %236, %234, %cst_124 {dimension_numbers = #tpu.dot_dimension_numbers<[1], [0], [0], [1], [0, 0, 1, 1], [], []>} : vector<32x32xbf16>, vector<32x64xbf16>, vector<32x64xf32> -> vector<32x64xf32>
    %238 = arith.truncf %237 : vector<32x64xf32> to vector<32x64xbf16>
    %c13 = arith.constant 13 : index
    %c0_125 = arith.constant 0 : index
    %c0_126 = arith.constant 0 : index
    %239 = vector.load %arg2[%c13, %c0_125, %c0_126] : memref<18x32x32xbf16, #tpu.memory_space<vmem>>, vector<1x32x32xbf16>
    %240 = vector.shape_cast %239 : vector<1x32x32xbf16> to vector<32x32xbf16>
    %cst_127 = arith.constant dense<0.000000e+00> : vector<32x64xf32>
    %241 = tpu.matmul %240, %234, %cst_127 {dimension_numbers = #tpu.dot_dimension_numbers<[1], [0], [0], [1], [0, 0, 1, 1], [], []>} : vector<32x32xbf16>, vector<32x64xbf16>, vector<32x64xf32> -> vector<32x64xf32>
    %242 = arith.truncf %241 : vector<32x64xf32> to vector<32x64xbf16>
    %c14 = arith.constant 14 : index
    %c0_128 = arith.constant 0 : index
    %c0_129 = arith.constant 0 : index
    %243 = vector.load %arg2[%c14, %c0_128, %c0_129] : memref<18x32x32xbf16, #tpu.memory_space<vmem>>, vector<1x32x32xbf16>
    %244 = vector.shape_cast %243 : vector<1x32x32xbf16> to vector<32x32xbf16>
    %cst_130 = arith.constant dense<0.000000e+00> : vector<32x64xf32>
    %245 = tpu.matmul %244, %234, %cst_130 {dimension_numbers = #tpu.dot_dimension_numbers<[1], [0], [0], [1], [0, 0, 1, 1], [], []>} : vector<32x32xbf16>, vector<32x64xbf16>, vector<32x64xf32> -> vector<32x64xf32>
    %246 = arith.truncf %245 : vector<32x64xf32> to vector<32x64xbf16>
    %247 = tpu.concatenate %238, %242, %246 in 1 : vector<32x64xbf16>, vector<32x64xbf16>, vector<32x64xbf16> -> vector<32x192xbf16>
    %c4_131 = arith.constant 4 : index
    %c0_132 = arith.constant 0 : index
    %c0_133 = arith.constant 0 : index
    %248 = vector.load %arg3[%c4_131, %c0_132, %c0_133] : memref<6x192x64xbf16, #tpu.memory_space<vmem>>, vector<1x192x64xbf16>
    %249 = vector.shape_cast %248 : vector<1x192x64xbf16> to vector<192x64xbf16>
    %cst_134 = arith.constant dense<0.000000e+00> : vector<32x64xf32>
    %250 = tpu.matmul %247, %249, %cst_134 {dimension_numbers = #tpu.dot_dimension_numbers<[1], [0], [0], [1], [0, 0, 1, 1], [], []>} : vector<32x192xbf16>, vector<192x64xbf16>, vector<32x64xf32> -> vector<32x64xf32>
    %cst_135 = arith.constant dense<0.000000e+00> : vector<64xf32>
    %251 = vector.multi_reduction <add>, %250, %cst_135 [0] : vector<32x64xf32> to vector<64xf32>
    %252 = vector.shape_cast %251 : vector<64xf32> to vector<1x64xf32>
    %253 = arith.mulf %250, %250 : vector<32x64xf32>
    %cst_136 = arith.constant dense<0.000000e+00> : vector<64xf32>
    %254 = vector.multi_reduction <add>, %253, %cst_136 [0] : vector<32x64xf32> to vector<64xf32>
    %255 = vector.shape_cast %254 : vector<64xf32> to vector<1x64xf32>
    %256 = tpu.concatenate %252, %255 in 0 : vector<1x64xf32>, vector<1x64xf32> -> vector<2x64xf32>
    %c4_137 = arith.constant 4 : index
    %c0_138 = arith.constant 0 : index
    %c0_139 = arith.constant 0 : index
    %257 = vector.load %arg4[%c4_137, %c0_138, %c0_139] : memref<6x64x32xbf16, #tpu.memory_space<vmem>>, vector<1x64x32xbf16>
    %258 = vector.shape_cast %257 : vector<1x64x32xbf16> to vector<64x32xbf16>
    %259 = arith.extf %258 : vector<64x32xbf16> to vector<64x32xf32>
    %cst_140 = arith.constant dense<0.000000e+00> : vector<2x32xf32>
    %260 = tpu.matmul %256, %259, %cst_140 {dimension_numbers = #tpu.dot_dimension_numbers<[1], [0], [0], [1], [0, 0, 1, 1], [], []>} : vector<2x64xf32>, vector<64x32xf32>, vector<2x32xf32> -> vector<2x32xf32>
    %261 = vector.extract_strided_slice %260 {offsets = [0, 0], sizes = [1, 32], strides = [1, 1]} : vector<2x32xf32> to vector<1x32xf32>
    %cst_141 = arith.constant 7.812500e-03 : f32
    %262 = vector.broadcast %cst_141 : f32 to vector<1x32xf32>
    %263 = arith.mulf %261, %262 : vector<1x32xf32>
    %264 = vector.extract_strided_slice %260 {offsets = [1, 0], sizes = [1, 32], strides = [1, 1]} : vector<2x32xf32> to vector<1x32xf32>
    %cst_142 = arith.constant 7.812500e-03 : f32
    %265 = vector.broadcast %cst_142 : f32 to vector<1x32xf32>
    %266 = arith.mulf %264, %265 : vector<1x32xf32>
    %267 = arith.mulf %263, %263 : vector<1x32xf32>
    %268 = arith.subf %266, %267 : vector<1x32xf32>
    %c4_143 = arith.constant 4 : index
    %c0_144 = arith.constant 0 : index
    %c0_145 = arith.constant 0 : index
    %269 = vector.load %arg6[%c4_143, %c0_144, %c0_145] : memref<6x2x32xf32, #tpu.memory_space<vmem>>, vector<1x2x32xf32>
    %270 = vector.shape_cast %269 : vector<1x2x32xf32> to vector<2x32xf32>
    %271 = vector.extract_strided_slice %270 {offsets = [0, 0], sizes = [1, 32], strides = [1, 1]} : vector<2x32xf32> to vector<1x32xf32>
    %cst_146 = arith.constant 9.99999974E-6 : f32
    %272 = vector.broadcast %cst_146 : f32 to vector<1x32xf32>
    %273 = arith.addf %268, %272 : vector<1x32xf32>
    %274 = math.rsqrt %273 : vector<1x32xf32>
    %275 = arith.mulf %271, %274 : vector<1x32xf32>
    %276 = vector.extract_strided_slice %270 {offsets = [1, 0], sizes = [1, 32], strides = [1, 1]} : vector<2x32xf32> to vector<1x32xf32>
    %277 = arith.mulf %275, %263 : vector<1x32xf32>
    %278 = arith.subf %276, %277 : vector<1x32xf32>
    %279 = tpu.concatenate %275, %278 in 0 : vector<1x32xf32>, vector<1x32xf32> -> vector<2x32xf32>
    %c4_147 = arith.constant 4 : index
    %c0_148 = arith.constant 0 : index
    %c0_149 = arith.constant 0 : index
    %280 = vector.load %arg5[%c4_147, %c0_148, %c0_149] : memref<6x32x64xbf16, #tpu.memory_space<vmem>>, vector<1x32x64xbf16>
    %281 = vector.shape_cast %280 : vector<1x32x64xbf16> to vector<32x64xbf16>
    %282 = arith.extf %281 : vector<32x64xbf16> to vector<32x64xf32>
    %cst_150 = arith.constant dense<0.000000e+00> : vector<2x64xf32>
    %283 = tpu.matmul %279, %282, %cst_150 {dimension_numbers = #tpu.dot_dimension_numbers<[1], [0], [0], [1], [0, 0, 1, 1], [], []>} : vector<2x32xf32>, vector<32x64xf32>, vector<2x64xf32> -> vector<2x64xf32>
    %284 = vector.extract_strided_slice %283 {offsets = [0, 0], sizes = [1, 64], strides = [1, 1]} : vector<2x64xf32> to vector<1x64xf32>
    %285 = vector.broadcast %284 : vector<1x64xf32> to vector<32x64xf32>
    %286 = arith.mulf %250, %285 : vector<32x64xf32>
    %287 = vector.extract_strided_slice %283 {offsets = [1, 0], sizes = [1, 64], strides = [1, 1]} : vector<2x64xf32> to vector<1x64xf32>
    %288 = vector.broadcast %287 : vector<1x64xf32> to vector<32x64xf32>
    %289 = arith.addf %286, %288 : vector<32x64xf32>
    %cst_151 = arith.constant 0.000000e+00 : f32
    %290 = vector.broadcast %cst_151 : f32 to vector<32x64xf32>
    %291 = arith.maximumf %289, %290 : vector<32x64xf32>
    %292 = arith.truncf %291 : vector<32x64xf32> to vector<32x64xbf16>
    %c15 = arith.constant 15 : index
    %c0_152 = arith.constant 0 : index
    %c0_153 = arith.constant 0 : index
    %293 = vector.load %arg2[%c15, %c0_152, %c0_153] : memref<18x32x32xbf16, #tpu.memory_space<vmem>>, vector<1x32x32xbf16>
    %294 = vector.shape_cast %293 : vector<1x32x32xbf16> to vector<32x32xbf16>
    %cst_154 = arith.constant dense<0.000000e+00> : vector<32x64xf32>
    %295 = tpu.matmul %294, %292, %cst_154 {dimension_numbers = #tpu.dot_dimension_numbers<[1], [0], [0], [1], [0, 0, 1, 1], [], []>} : vector<32x32xbf16>, vector<32x64xbf16>, vector<32x64xf32> -> vector<32x64xf32>
    %296 = arith.truncf %295 : vector<32x64xf32> to vector<32x64xbf16>
    %c16 = arith.constant 16 : index
    %c0_155 = arith.constant 0 : index
    %c0_156 = arith.constant 0 : index
    %297 = vector.load %arg2[%c16, %c0_155, %c0_156] : memref<18x32x32xbf16, #tpu.memory_space<vmem>>, vector<1x32x32xbf16>
    %298 = vector.shape_cast %297 : vector<1x32x32xbf16> to vector<32x32xbf16>
    %cst_157 = arith.constant dense<0.000000e+00> : vector<32x64xf32>
    %299 = tpu.matmul %298, %292, %cst_157 {dimension_numbers = #tpu.dot_dimension_numbers<[1], [0], [0], [1], [0, 0, 1, 1], [], []>} : vector<32x32xbf16>, vector<32x64xbf16>, vector<32x64xf32> -> vector<32x64xf32>
    %300 = arith.truncf %299 : vector<32x64xf32> to vector<32x64xbf16>
    %c17 = arith.constant 17 : index
    %c0_158 = arith.constant 0 : index
    %c0_159 = arith.constant 0 : index
    %301 = vector.load %arg2[%c17, %c0_158, %c0_159] : memref<18x32x32xbf16, #tpu.memory_space<vmem>>, vector<1x32x32xbf16>
    %302 = vector.shape_cast %301 : vector<1x32x32xbf16> to vector<32x32xbf16>
    %cst_160 = arith.constant dense<0.000000e+00> : vector<32x64xf32>
    %303 = tpu.matmul %302, %292, %cst_160 {dimension_numbers = #tpu.dot_dimension_numbers<[1], [0], [0], [1], [0, 0, 1, 1], [], []>} : vector<32x32xbf16>, vector<32x64xbf16>, vector<32x64xf32> -> vector<32x64xf32>
    %304 = arith.truncf %303 : vector<32x64xf32> to vector<32x64xbf16>
    %305 = tpu.concatenate %296, %300, %304 in 1 : vector<32x64xbf16>, vector<32x64xbf16>, vector<32x64xbf16> -> vector<32x192xbf16>
    %c5_161 = arith.constant 5 : index
    %c0_162 = arith.constant 0 : index
    %c0_163 = arith.constant 0 : index
    %306 = vector.load %arg3[%c5_161, %c0_162, %c0_163] : memref<6x192x64xbf16, #tpu.memory_space<vmem>>, vector<1x192x64xbf16>
    %307 = vector.shape_cast %306 : vector<1x192x64xbf16> to vector<192x64xbf16>
    %cst_164 = arith.constant dense<0.000000e+00> : vector<32x64xf32>
    %308 = tpu.matmul %305, %307, %cst_164 {dimension_numbers = #tpu.dot_dimension_numbers<[1], [0], [0], [1], [0, 0, 1, 1], [], []>} : vector<32x192xbf16>, vector<192x64xbf16>, vector<32x64xf32> -> vector<32x64xf32>
    %cst_165 = arith.constant dense<0.000000e+00> : vector<64xf32>
    %309 = vector.multi_reduction <add>, %308, %cst_165 [0] : vector<32x64xf32> to vector<64xf32>
    %310 = vector.shape_cast %309 : vector<64xf32> to vector<1x64xf32>
    %311 = arith.mulf %308, %308 : vector<32x64xf32>
    %cst_166 = arith.constant dense<0.000000e+00> : vector<64xf32>
    %312 = vector.multi_reduction <add>, %311, %cst_166 [0] : vector<32x64xf32> to vector<64xf32>
    %313 = vector.shape_cast %312 : vector<64xf32> to vector<1x64xf32>
    %314 = tpu.concatenate %310, %313 in 0 : vector<1x64xf32>, vector<1x64xf32> -> vector<2x64xf32>
    %c5_167 = arith.constant 5 : index
    %c0_168 = arith.constant 0 : index
    %c0_169 = arith.constant 0 : index
    %315 = vector.load %arg4[%c5_167, %c0_168, %c0_169] : memref<6x64x32xbf16, #tpu.memory_space<vmem>>, vector<1x64x32xbf16>
    %316 = vector.shape_cast %315 : vector<1x64x32xbf16> to vector<64x32xbf16>
    %317 = arith.extf %316 : vector<64x32xbf16> to vector<64x32xf32>
    %cst_170 = arith.constant dense<0.000000e+00> : vector<2x32xf32>
    %318 = tpu.matmul %314, %317, %cst_170 {dimension_numbers = #tpu.dot_dimension_numbers<[1], [0], [0], [1], [0, 0, 1, 1], [], []>} : vector<2x64xf32>, vector<64x32xf32>, vector<2x32xf32> -> vector<2x32xf32>
    %319 = vector.extract_strided_slice %318 {offsets = [0, 0], sizes = [1, 32], strides = [1, 1]} : vector<2x32xf32> to vector<1x32xf32>
    %cst_171 = arith.constant 0.001953125 : f32
    %320 = vector.broadcast %cst_171 : f32 to vector<1x32xf32>
    %321 = arith.mulf %319, %320 : vector<1x32xf32>
    %322 = vector.extract_strided_slice %318 {offsets = [1, 0], sizes = [1, 32], strides = [1, 1]} : vector<2x32xf32> to vector<1x32xf32>
    %cst_172 = arith.constant 0.001953125 : f32
    %323 = vector.broadcast %cst_172 : f32 to vector<1x32xf32>
    %324 = arith.mulf %322, %323 : vector<1x32xf32>
    %325 = arith.mulf %321, %321 : vector<1x32xf32>
    %326 = arith.subf %324, %325 : vector<1x32xf32>
    %c5_173 = arith.constant 5 : index
    %c0_174 = arith.constant 0 : index
    %c0_175 = arith.constant 0 : index
    %327 = vector.load %arg6[%c5_173, %c0_174, %c0_175] : memref<6x2x32xf32, #tpu.memory_space<vmem>>, vector<1x2x32xf32>
    %328 = vector.shape_cast %327 : vector<1x2x32xf32> to vector<2x32xf32>
    %329 = vector.extract_strided_slice %328 {offsets = [0, 0], sizes = [1, 32], strides = [1, 1]} : vector<2x32xf32> to vector<1x32xf32>
    %cst_176 = arith.constant 9.99999974E-6 : f32
    %330 = vector.broadcast %cst_176 : f32 to vector<1x32xf32>
    %331 = arith.addf %326, %330 : vector<1x32xf32>
    %332 = math.rsqrt %331 : vector<1x32xf32>
    %333 = arith.mulf %329, %332 : vector<1x32xf32>
    %334 = vector.extract_strided_slice %328 {offsets = [1, 0], sizes = [1, 32], strides = [1, 1]} : vector<2x32xf32> to vector<1x32xf32>
    %335 = arith.mulf %333, %321 : vector<1x32xf32>
    %336 = arith.subf %334, %335 : vector<1x32xf32>
    %337 = tpu.concatenate %333, %336 in 0 : vector<1x32xf32>, vector<1x32xf32> -> vector<2x32xf32>
    %c5_177 = arith.constant 5 : index
    %c0_178 = arith.constant 0 : index
    %c0_179 = arith.constant 0 : index
    %338 = vector.load %arg5[%c5_177, %c0_178, %c0_179] : memref<6x32x64xbf16, #tpu.memory_space<vmem>>, vector<1x32x64xbf16>
    %339 = vector.shape_cast %338 : vector<1x32x64xbf16> to vector<32x64xbf16>
    %340 = arith.extf %339 : vector<32x64xbf16> to vector<32x64xf32>
    %cst_180 = arith.constant dense<0.000000e+00> : vector<2x64xf32>
    %341 = tpu.matmul %337, %340, %cst_180 {dimension_numbers = #tpu.dot_dimension_numbers<[1], [0], [0], [1], [0, 0, 1, 1], [], []>} : vector<2x32xf32>, vector<32x64xf32>, vector<2x64xf32> -> vector<2x64xf32>
    %342 = vector.extract_strided_slice %341 {offsets = [0, 0], sizes = [1, 64], strides = [1, 1]} : vector<2x64xf32> to vector<1x64xf32>
    %343 = vector.broadcast %342 : vector<1x64xf32> to vector<32x64xf32>
    %344 = arith.mulf %308, %343 : vector<32x64xf32>
    %345 = vector.extract_strided_slice %341 {offsets = [1, 0], sizes = [1, 64], strides = [1, 1]} : vector<2x64xf32> to vector<1x64xf32>
    %346 = vector.broadcast %345 : vector<1x64xf32> to vector<32x64xf32>
    %347 = arith.addf %344, %346 : vector<32x64xf32>
    %cst_181 = arith.constant 0.000000e+00 : f32
    %348 = vector.broadcast %cst_181 : f32 to vector<32x64xf32>
    %349 = arith.maximumf %347, %348 : vector<32x64xf32>
    %350 = arith.truncf %349 : vector<32x64xf32> to vector<32x64xbf16>
    %c0_182 = arith.constant 0 : index
    %c0_183 = arith.constant 0 : index
    %351 = vector.load %arg7[%c0_182, %c0_183] : memref<64x16xbf16, #tpu.memory_space<vmem>>, vector<64x16xbf16>
    %cst_184 = arith.constant dense<0.000000e+00> : vector<32x16xf32>
    %352 = tpu.matmul %350, %351, %cst_184 {dimension_numbers = #tpu.dot_dimension_numbers<[1], [0], [0], [1], [0, 0, 1, 1], [], []>} : vector<32x64xbf16>, vector<64x16xbf16>, vector<32x16xf32> -> vector<32x16xf32>
    %c0_185 = arith.constant 0 : index
    %c0_186 = arith.constant 0 : index
    %353 = vector.load %arg8[%c0_185, %c0_186] : memref<1x16xf32, #tpu.memory_space<vmem>>, vector<1x16xf32>
    %354 = vector.broadcast %353 : vector<1x16xf32> to vector<32x16xf32>
    %355 = arith.addf %352, %354 : vector<32x16xf32>
    %c0_187 = arith.constant 0 : index
    %c0_188 = arith.constant 0 : index
    %c0_189 = arith.constant 0 : index
    %356 = vector.load %arg9[%c0_187, %c0_188, %c0_189] : memref<1x32x16xf32, #tpu.memory_space<vmem>>, vector<1x32x16xf32>
    %357 = vector.shape_cast %356 : vector<1x32x16xf32> to vector<32x16xf32>
    %358 = vector.shape_cast %355 : vector<32x16xf32> to vector<1x32x16xf32>
    tpu.vector_store %arg9[%c0_187, %c0_188, %c0_189], %358 {strides = array<i32>} : memref<1x32x16xf32, #tpu.memory_space<vmem>>, vector<1x32x16xf32>,
    return
  }
  func.func @transform_0(%arg0: i32) -> (i32, i32, i32) {
    %c0_i32 = arith.constant 0 : i32
    %c0_i32_0 = arith.constant 0 : i32
    %c0_i32_1 = arith.constant 0 : i32
    return %arg0, %c0_i32, %c0_i32_0 : i32, i32, i32
  }
  func.func @transform_1(%arg0: i32) -> (i32, i32, i32) {
    %c0_i32 = arith.constant 0 : i32
    %c0_i32_0 = arith.constant 0 : i32
    %c0_i32_1 = arith.constant 0 : i32
    %c0_i32_2 = arith.constant 0 : i32
    return %c0_i32, %c0_i32_0, %c0_i32_1 : i32, i32, i32
  }
  func.func @transform_2(%arg0: i32) -> (i32, i32, i32) {
    %c0_i32 = arith.constant 0 : i32
    %c0_i32_0 = arith.constant 0 : i32
    %c0_i32_1 = arith.constant 0 : i32
    %c0_i32_2 = arith.constant 0 : i32
    return %c0_i32, %c0_i32_0, %c0_i32_1 : i32, i32, i32
  }
  func.func @transform_3(%arg0: i32) -> (i32, i32, i32) {
    %c0_i32 = arith.constant 0 : i32
    %c0_i32_0 = arith.constant 0 : i32
    %c0_i32_1 = arith.constant 0 : i32
    %c0_i32_2 = arith.constant 0 : i32
    return %c0_i32, %c0_i32_0, %c0_i32_1 : i32, i32, i32
  }
  func.func @transform_4(%arg0: i32) -> (i32, i32, i32) {
    %c0_i32 = arith.constant 0 : i32
    %c0_i32_0 = arith.constant 0 : i32
    %c0_i32_1 = arith.constant 0 : i32
    %c0_i32_2 = arith.constant 0 : i32
    return %c0_i32, %c0_i32_0, %c0_i32_1 : i32, i32, i32
  }
  func.func @transform_5(%arg0: i32) -> (i32, i32, i32) {
    %c0_i32 = arith.constant 0 : i32
    %c0_i32_0 = arith.constant 0 : i32
    %c0_i32_1 = arith.constant 0 : i32
    %c0_i32_2 = arith.constant 0 : i32
    return %c0_i32, %c0_i32_0, %c0_i32_1 : i32, i32, i32
  }
  func.func @transform_6(%arg0: i32) -> (i32, i32) {
    %c0_i32 = arith.constant 0 : i32
    %c0_i32_0 = arith.constant 0 : i32
    %c0_i32_1 = arith.constant 0 : i32
    return %c0_i32, %c0_i32_0 : i32, i32
  }
  func.func @transform_7(%arg0: i32) -> (i32, i32) {
    %c0_i32 = arith.constant 0 : i32
    %c0_i32_0 = arith.constant 0 : i32
    %c0_i32_1 = arith.constant 0 : i32
    return %c0_i32, %c0_i32_0 : i32, i32
  }
  func.func @transform_8(%arg0: i32) -> (i32, i32, i32) {
    %c0_i32 = arith.constant 0 : i32
    %c0_i32_0 = arith.constant 0 : i32
    %c0_i32_1 = arith.constant 0 : i32
    return %arg0, %c0_i32, %c0_i32_0 : i32, i32, i32
  }
}

</mosaic_0001>

<llo_original>
// kernel: cnn_forward.1
$region0: #{cnn_forward.1}
  #allocation0 [shape = 'u32[]', space=smem, size = 0x4, offset = 0x4, fixed_abs, tag = 'smem constant byte address 0x4 - core index']
  #allocation1 [shape = 'u32[144,128]{1,0:T(1,128)}', space=vmem, size = 0x12000, scoped, tag = 'internal scratch']
  %s0 = inlined_call_operand.vmem [shape: f32[1,32,64], index: 0, kind: input, shape index: {}]
  %s1 = inlined_call_operand.vmem [shape: bf16[18,32,32], index: 1, kind: input, shape index: {}]
  %s2 = inlined_call_operand.vmem [shape: bf16[6,192,64], index: 2, kind: input, shape index: {}]
  %s3 = inlined_call_operand.vmem [shape: bf16[6,64,32], index: 3, kind: input, shape index: {}]
  %s4 = inlined_call_operand.vmem [shape: bf16[6,32,64], index: 4, kind: input, shape index: {}]
  %s5 = inlined_call_operand.vmem [shape: f32[6,2,32], index: 5, kind: input, shape index: {}]
  %s6 = inlined_call_operand.vmem [shape: bf16[64,16], index: 6, kind: input, shape index: {}]
  %s7 = inlined_call_operand.vmem [shape: f32[1,16], index: 7, kind: input, shape index: {}]
  %s8 = inlined_call_operand.hbm [shape: f32[1,32,16], index: 8, kind: output, shape index: {}]
  %s9 = sld [smem:[#allocation0]]
  $region42: #{cnn_forward.1} parent=0
    _
  %s11 = ssub.s32 1, %s9
  %s12 = scalar_select 0, %s11, %s9
  $region1: #{cnn_forward.1} parent=0
    #allocation2 [shape = 'u8[16384]{0}', space=vmem, size = 0x4000, scoped, tag = 'output window, operand 0, single buffered']
    #allocation3 [shape = 's32[1]{0}', space=sflag, size = 0x4, scoped, tag = 'scoped memory for cnn_forward.1']
    %13 = vsyncpa [#allocation3], 0
    // Predicated region
    $region2: #{cnn_forward.1} parent=1 // pred_check
      _
    $region3: #{cnn_forward.1} parent=1 // pred_check_branch
      %15 = sbr.rel (0) target = $region5
    $region4: #{cnn_forward.1} parent=1 // pred_region
      _
    $region5: #{cnn_forward.1} parent=1 // pred_fallthru
      _
    // Predicated region
    $region6: #{cnn_forward.1} parent=1 // pred_check
      _
    $region7: #{cnn_forward.1} parent=1 // pred_check_branch
      %17 = sbr.rel (0) target = $region9
    $region8: #{cnn_forward.1} parent=1 // pred_region
      _
    $region9: #{cnn_forward.1} parent=1 // pred_fallthru
      _
    // Predicated region
    $region10: #{cnn_forward.1} parent=1 // pred_check
      _
    $region11: #{cnn_forward.1} parent=1 // pred_check_branch
      %19 = sbr.rel (0) target = $region13
    $region12: #{cnn_forward.1} parent=1 // pred_region
      _
    $region13: #{cnn_forward.1} parent=1 // pred_fallthru
      _
    // Predicated region
    $region14: #{cnn_forward.1} parent=1 // pred_check
      _
    $region15: #{cnn_forward.1} parent=1 // pred_check_branch
      %21 = sbr.rel (0) target = $region17
    $region16: #{cnn_forward.1} parent=1 // pred_region
      _
    $region17: #{cnn_forward.1} parent=1 // pred_fallthru
      _
    // Predicated region
    $region18: #{cnn_forward.1} parent=1 // pred_check
      _
    $region19: #{cnn_forward.1} parent=1 // pred_check_branch
      %23 = sbr.rel (0) target = $region21
    $region20: #{cnn_forward.1} parent=1 // pred_region
      _
    $region21: #{cnn_forward.1} parent=1 // pred_fallthru
      _
    // Predicated region
    $region22: #{cnn_forward.1} parent=1 // pred_check
      _
    $region23: #{cnn_forward.1} parent=1 // pred_check_branch
      %25 = sbr.rel (0) target = $region25
    $region24: #{cnn_forward.1} parent=1 // pred_region
      _
    $region25: #{cnn_forward.1} parent=1 // pred_fallthru
      _
    // Predicated region
    $region26: #{cnn_forward.1} parent=1 // pred_check
      _
    $region27: #{cnn_forward.1} parent=1 // pred_check_branch
      %27 = sbr.rel (0) target = $region29
    $region28: #{cnn_forward.1} parent=1 // pred_region
      _
    $region29: #{cnn_forward.1} parent=1 // pred_fallthru
      _
    // Predicated region
    $region30: #{cnn_forward.1} parent=1 // pred_check
      _
    $region31: #{cnn_forward.1} parent=1 // pred_check_branch
      %29 = sbr.rel (0) target = $region33
    $region32: #{cnn_forward.1} parent=1 // pred_region
      _
    $region33: #{cnn_forward.1} parent=1 // pred_fallthru
      _
    %v31 = vld [vmem:[%s0] sm:$0xff]
    %v32 = vld [vmem:[%s0 + $0x8] sm:$0xff]
    %v33 = vld [vmem:[%s0 + $0x10] sm:$0xff]
    %v34 = vld [vmem:[%s0 + $0x18] sm:$0xff]
    %v35 = vpack.c.bf16 %v32, %v31
    %v36 = vpack.c.bf16 %v34, %v33
    %v37 = vld [vmem:[%s1] sm:$0xf]
    %v38 = vld [vmem:[%s1 + $0x4] sm:$0xf]
    %v39 = vld [vmem:[%s1 + $0x8] sm:$0xf]
    %v40 = vld [vmem:[%s1 + $0xc] sm:$0xf]
    %v45 = vunpack.c.l.b16 %v37
    %v46 = vunpack.c.l.b16 %v38
    %v47 = vunpack.c.l.b16 %v39
    %v48 = vunpack.c.l.b16 %v40
    %v49 = vpack.c.b16 %v46, %v45
    %v50 = vpack.c.b16 %v48, %v47
    %vm51 = vcmask 261120
    %v53 = vsel %vm51, %v49, 0
    %v56 = vsel %vm51, %v50, 0
    %58 = vmatprep.subr.bf16.mxu0 0
    %59 = vmatpush1.bf16.msra.mxu0 0
    %60 = vmatprep.subr.bf16.mxu0 0
    %61 = vmatpush1.bf16.msra.mxu0 0
    %62 = vmatprep.subr.bf16.mxu0 0
    %63 = vmatpush1.bf16.msra.mxu0 0
    %64 = vmatprep.subr.bf16.mxu0 0
    %65 = vmatpush1.bf16.msra.mxu0 0
    %66 = vmatprep.subr.bf16.mxu0 0
    %67 = vmatpush1.bf16.msra.mxu0 0
    %68 = vmatprep.subr.bf16.mxu0 0
    %69 = vmatpush1.bf16.msra.mxu0 0
    %70 = vmatprep.subr.bf16.mxu0 0
    %71 = vmatpush1.bf16.msra.mxu0 %v36
    %72 = vmatprep.subr.bf16.mxu0 0
    %73 = vmatpush1.bf16.msra.mxu0 %v35
    %74 = vmatprep.subr.bf16.mxu0 0
    %75 = vmatpush2.bf16.msra.mxu0 0
    %76 = vmatprep.subr.bf16.mxu0 0
    %77 = vmatpush2.bf16.msra.mxu0 0
    %78 = vmatprep.subr.bf16.mxu0 0
    %79 = vmatpush2.bf16.msra.mxu0 0
    %80 = vmatprep.subr.bf16.mxu0 0
    %81 = vmatpush2.bf16.msra.mxu0 0
    %82 = vmatprep.subr.bf16.mxu0 0
    %83 = vmatpush2.bf16.msra.mxu0 0
    %84 = vmatprep.subr.bf16.mxu0 0
    %85 = vmatpush2.bf16.msra.mxu0 0
    %86 = vmatprep.subr.bf16.mxu0 0
    %87 = vmatpush2.bf16.msra.mxu0 0
    %88 = vmatprep.subr.bf16.mxu0 0
    %89 = vmatpush2.bf16.msra.mxu0 0
    %90 = vmatprep.mubr.bf16.mxu0 0
    %91 = vmatmul.mubr.bf16.gmra.mxu0 %v53
    %v92 = vpop.f32.mrf.mxu0
    %v93 = vadd.f32 0.0, %v92
    %v94 = vpop.f32.mrf.mxu0
    %v95 = vpop.f32.mrf.mxu0
    %v96 = vadd.f32 0.0, %v95
    %v97 = vpop.f32.mrf.mxu0
    %98 = vmatprep.mubr.bf16.mxu0 0
    %99 = vmatmul.mubr.bf16.gmra.mxu0 %v56
    %v100 = vpop.f32.mrf.mxu0
    %v101 = vadd.f32 0.0, %v100
    %v102 = vpop.f32.mrf.mxu0
    %v103 = vpop.f32.mrf.mxu0
    %v104 = vadd.f32 0.0, %v103
    %v105 = vpop.f32.mrf.mxu0
    %106 = vdwg.mxu0
    %v107 = vpack.c.bf16 %v96, %v93
    %v108 = vpack.c.bf16 %v104, %v101
    %s109 = scalar_lea.vmem %s1, 16
    %v110 = vld [vmem:[%s109] sm:$0xf]
    %v111 = vld [vmem:[%s109 + $0x4] sm:$0xf]
    %v112 = vld [vmem:[%s109 + $0x8] sm:$0xf]
    %v113 = vld [vmem:[%s109 + $0xc] sm:$0xf]
    %v118 = vunpack.c.l.b16 %v110
    %v119 = vunpack.c.l.b16 %v111
    %v120 = vunpack.c.l.b16 %v112
    %v121 = vunpack.c.l.b16 %v113
    %v122 = vpack.c.b16 %v119, %v118
    %v123 = vpack.c.b16 %v121, %v120
    %v125 = vsel %vm51, %v122, 0
    %v128 = vsel %vm51, %v123, 0
    %130 = vmatprep.subr.bf16.mxu0 0
    %131 = vmatpush1.bf16.msra.mxu0 0
    %132 = vmatprep.subr.bf16.mxu0 0
    %133 = vmatpush1.bf16.msra.mxu0 0
    %134 = vmatprep.subr.bf16.mxu0 0
    %135 = vmatpush1.bf16.msra.mxu0 0
    %136 = vmatprep.subr.bf16.mxu0 0
    %137 = vmatpush1.bf16.msra.mxu0 0
    %138 = vmatprep.subr.bf16.mxu0 0
    %139 = vmatpush1.bf16.msra.mxu0 0
    %140 = vmatprep.subr.bf16.mxu0 0
    %141 = vmatpush1.bf16.msra.mxu0 0
    %142 = vmatprep.subr.bf16.mxu0 0
    %143 = vmatpush1.bf16.msra.mxu0 %v36
    %144 = vmatprep.subr.bf16.mxu0 0
    %145 = vmatpush1.bf16.msra.mxu0 %v35
    %146 = vmatprep.subr.bf16.mxu0 0
    %147 = vmatpush2.bf16.msra.mxu0 0
    %148 = vmatprep.subr.bf16.mxu0 0
    %149 = vmatpush2.bf16.msra.mxu0 0
    %150 = vmatprep.subr.bf16.mxu0 0
    %151 = vmatpush2.bf16.msra.mxu0 0
    %152 = vmatprep.subr.bf16.mxu0 0
    %153 = vmatpush2.bf16.msra.mxu0 0
    %154 = vmatprep.subr.bf16.mxu0 0
    %155 = vmatpush2.bf16.msra.mxu0 0
    %156 = vmatprep.subr.bf16.mxu0 0
    %157 = vmatpush2.bf16.msra.mxu0 0
    %158 = vmatprep.subr.bf16.mxu0 0
    %159 = vmatpush2.bf16.msra.mxu0 0
    %160 = vmatprep.subr.bf16.mxu0 0
    %161 = vmatpush2.bf16.msra.mxu0 0
    %162 = vmatprep.mubr.bf16.mxu0 0
    %163 = vmatmul.mubr.bf16.gmra.mxu0 %v125
    %v164 = vpop.f32.mrf.mxu0
    %v165 = vadd.f32 0.0, %v164
    %v166 = vpop.f32.mrf.mxu0
    %v167 = vpop.f32.mrf.mxu0
    %v168 = vadd.f32 0.0, %v167
    %v169 = vpop.f32.mrf.mxu0
    %170 = vmatprep.mubr.bf16.mxu0 0
    %171 = vmatmul.mubr.bf16.gmra.mxu0 %v128
    %v172 = vpop.f32.mrf.mxu0
    %v173 = vadd.f32 0.0, %v172
    %v174 = vpop.f32.mrf.mxu0
    %v175 = vpop.f32.mrf.mxu0
    %v176 = vadd.f32 0.0, %v175
    %v177 = vpop.f32.mrf.mxu0
    %178 = vdwg.mxu0
    %v179 = vpack.c.bf16 %v168, %v165
    %v180 = vpack.c.bf16 %v176, %v173
    %s181 = scalar_lea.vmem %s1, 32
    %v182 = vld [vmem:[%s181] sm:$0xf]
    %v183 = vld [vmem:[%s181 + $0x4] sm:$0xf]
    %v184 = vld [vmem:[%s181 + $0x8] sm:$0xf]
    %v185 = vld [vmem:[%s181 + $0xc] sm:$0xf]
    %v190 = vunpack.c.l.b16 %v182
    %v191 = vunpack.c.l.b16 %v183
    %v192 = vunpack.c.l.b16 %v184
    %v193 = vunpack.c.l.b16 %v185
    %v194 = vpack.c.b16 %v191, %v190
    %v195 = vpack.c.b16 %v193, %v192
    %v197 = vsel %vm51, %v194, 0
    %v200 = vsel %vm51, %v195, 0
    %202 = vmatprep.subr.bf16.mxu0 0
    %203 = vmatpush1.bf16.msra.mxu0 0
    %204 = vmatprep.subr.bf16.mxu0 0
    %205 = vmatpush1.bf16.msra.mxu0 0
    %206 = vmatprep.subr.bf16.mxu0 0
    %207 = vmatpush1.bf16.msra.mxu0 0
    %208 = vmatprep.subr.bf16.mxu0 0
    %209 = vmatpush1.bf16.msra.mxu0 0
    %210 = vmatprep.subr.bf16.mxu0 0
    %211 = vmatpush1.bf16.msra.mxu0 0
    %212 = vmatprep.subr.bf16.mxu0 0
    %213 = vmatpush1.bf16.msra.mxu0 0
    %214 = vmatprep.subr.bf16.mxu0 0
    %215 = vmatpush1.bf16.msra.mxu0 %v36
    %216 = vmatprep.subr.bf16.mxu0 0
    %217 = vmatpush1.bf16.msra.mxu0 %v35
    %218 = vmatprep.subr.bf16.mxu0 0
    %219 = vmatpush2.bf16.msra.mxu0 0
    %220 = vmatprep.subr.bf16.mxu0 0
    %221 = vmatpush2.bf16.msra.mxu0 0
    %222 = vmatprep.subr.bf16.mxu0 0
    %223 = vmatpush2.bf16.msra.mxu0 0
    %224 = vmatprep.subr.bf16.mxu0 0
    %225 = vmatpush2.bf16.msra.mxu0 0
    %226 = vmatprep.subr.bf16.mxu0 0
    %227 = vmatpush2.bf16.msra.mxu0 0
    %228 = vmatprep.subr.bf16.mxu0 0
    %229 = vmatpush2.bf16.msra.mxu0 0
    %230 = vmatprep.subr.bf16.mxu0 0
    %231 = vmatpush2.bf16.msra.mxu0 0
    %232 = vmatprep.subr.bf16.mxu0 0
    %233 = vmatpush2.bf16.msra.mxu0 0
    %234 = vmatprep.mubr.bf16.mxu0 0
    %235 = vmatmul.mubr.bf16.gmra.mxu0 %v197
    %v236 = vpop.f32.mrf.mxu0
    %v237 = vadd.f32 0.0, %v236
    %v238 = vpop.f32.mrf.mxu0
    %v239 = vpop.f32.mrf.mxu0
    %v240 = vadd.f32 0.0, %v239
    %v241 = vpop.f32.mrf.mxu0
    %242 = vmatprep.mubr.bf16.mxu0 0
    %243 = vmatmul.mubr.bf16.gmra.mxu0 %v200
    %v244 = vpop.f32.mrf.mxu0
    %v245 = vadd.f32 0.0, %v244
    %v246 = vpop.f32.mrf.mxu0
    %v247 = vpop.f32.mrf.mxu0
    %v248 = vadd.f32 0.0, %v247
    %v249 = vpop.f32.mrf.mxu0
    %250 = vdwg.mxu0
    %v251 = vpack.c.bf16 %v240, %v237
    %v252 = vpack.c.bf16 %v248, %v245
    %255 = vrot.lane.b32.xlu0 %v179, 64
    %v256 = vpop.permute.xlu0 %255
    %257 = vrot.lane.b32.xlu0 %v180, 64
    %v258 = vpop.permute.xlu0 %257
    %vm259 = vcmask 523264
    %v262 = vsel %vm259, %v107, %v256
    %v266 = vsel %vm259, %v108, %v258
    %v268 = vld [vmem:[%s2] sm:$0xf]
    %v269 = vld [vmem:[%s2 + $0x4] sm:$0xf]
    %v270 = vld [vmem:[%s2 + $0x8] sm:$0xf]
    %v271 = vld [vmem:[%s2 + $0xc] sm:$0xf]
    %v272 = vld [vmem:[%s2 + $0x10] sm:$0xf]
    %v273 = vld [vmem:[%s2 + $0x14] sm:$0xf]
    %v274 = vld [vmem:[%s2 + $0x18] sm:$0xf]
    %v275 = vld [vmem:[%s2 + $0x1c] sm:$0xf]
    %v276 = vld [vmem:[%s2 + $0x20] sm:$0xf]
    %v277 = vld [vmem:[%s2 + $0x24] sm:$0xf]
    %v278 = vld [vmem:[%s2 + $0x28] sm:$0xf]
    %v279 = vld [vmem:[%s2 + $0x2c] sm:$0xf]
    %v280 = vld [vmem:[%s2 + $0x30] sm:$0xf]
    %v281 = vld [vmem:[%s2 + $0x34] sm:$0xf]
    %v282 = vld [vmem:[%s2 + $0x38] sm:$0xf]
    %v283 = vld [vmem:[%s2 + $0x3c] sm:$0xf]
    %v284 = vld [vmem:[%s2 + $0x40] sm:$0xf]
    %v285 = vld [vmem:[%s2 + $0x44] sm:$0xf]
    %v286 = vld [vmem:[%s2 + $0x48] sm:$0xf]
    %v287 = vld [vmem:[%s2 + $0x4c] sm:$0xf]
    %v288 = vld [vmem:[%s2 + $0x50] sm:$0xf]
    %v289 = vld [vmem:[%s2 + $0x54] sm:$0xf]
    %v290 = vld [vmem:[%s2 + $0x58] sm:$0xf]
    %v291 = vld [vmem:[%s2 + $0x5c] sm:$0xf]
    %v316 = vunpack.c.l.b16 %v268
    %v317 = vunpack.c.l.b16 %v269
    %v318 = vunpack.c.l.b16 %v270
    %v319 = vunpack.c.l.b16 %v271
    %v320 = vunpack.c.l.b16 %v272
    %v321 = vunpack.c.l.b16 %v273
    %v322 = vunpack.c.l.b16 %v274
    %v323 = vunpack.c.l.b16 %v275
    %v324 = vunpack.c.l.b16 %v276
    %v325 = vunpack.c.l.b16 %v277
    %v326 = vunpack.c.l.b16 %v278
    %v327 = vunpack.c.l.b16 %v279
    %v328 = vunpack.c.l.b16 %v280
    %v329 = vunpack.c.l.b16 %v281
    %v330 = vunpack.c.l.b16 %v282
    %v331 = vunpack.c.l.b16 %v283
    %v332 = vunpack.c.l.b16 %v284
    %v333 = vunpack.c.l.b16 %v285
    %v334 = vunpack.c.l.b16 %v286
    %v335 = vunpack.c.l.b16 %v287
    %v336 = vunpack.c.l.b16 %v288
    %v337 = vunpack.c.l.b16 %v289
    %v338 = vunpack.c.l.b16 %v290
    %v339 = vunpack.c.l.b16 %v291
    %v340 = vpack.c.b16 %v317, %v316
    %v341 = vpack.c.b16 %v319, %v318
    %v342 = vpack.c.b16 %v321, %v320
    %v343 = vpack.c.b16 %v323, %v322
    %v344 = vpack.c.b16 %v325, %v324
    %v345 = vpack.c.b16 %v327, %v326
    %v346 = vpack.c.b16 %v329, %v328
    %v347 = vpack.c.b16 %v331, %v330
    %v348 = vpack.c.b16 %v333, %v332
    %v349 = vpack.c.b16 %v335, %v334
    %v350 = vpack.c.b16 %v337, %v336
    %v351 = vpack.c.b16 %v339, %v338
    %v365 = vsel %vm259, %v251, 0
    %v368 = vsel %vm259, %v252, 0
    %370 = vmatprep.subr.bf16.mxu0 0
    %371 = vmatpush1.bf16.msra.mxu0 %v347
    %372 = vmatprep.subr.bf16.mxu0 0
    %373 = vmatpush1.bf16.msra.mxu0 %v346
    %374 = vmatprep.subr.bf16.mxu0 0
    %375 = vmatpush1.bf16.msra.mxu0 %v345
    %376 = vmatprep.subr.bf16.mxu0 0
    %377 = vmatpush1.bf16.msra.mxu0 %v344
    %378 = vmatprep.subr.bf16.mxu0 0
    %379 = vmatpush1.bf16.msra.mxu0 %v343
    %380 = vmatprep.subr.bf16.mxu0 0
    %381 = vmatpush1.bf16.msra.mxu0 %v342
    %382 = vmatprep.subr.bf16.mxu0 0
    %383 = vmatpush1.bf16.msra.mxu0 %v341
    %384 = vmatprep.subr.bf16.mxu0 0
    %385 = vmatpush1.bf16.msra.mxu0 %v340
    %386 = vmatprep.subr.bf16.mxu0 0
    %387 = vmatpush2.bf16.msra.mxu0 0
    %388 = vmatprep.subr.bf16.mxu0 0
    %389 = vmatpush2.bf16.msra.mxu0 0
    %390 = vmatprep.subr.bf16.mxu0 0
    %391 = vmatpush2.bf16.msra.mxu0 0
    %392 = vmatprep.subr.bf16.mxu0 0
    %393 = vmatpush2.bf16.msra.mxu0 0
    %394 = vmatprep.subr.bf16.mxu0 0
    %395 = vmatpush2.bf16.msra.mxu0 %v351
    %396 = vmatprep.subr.bf16.mxu0 0
    %397 = vmatpush2.bf16.msra.mxu0 %v350
    %398 = vmatprep.subr.bf16.mxu0 0
    %399 = vmatpush2.bf16.msra.mxu0 %v349
    %400 = vmatprep.subr.bf16.mxu0 0
    %401 = vmatpush2.bf16.msra.mxu0 %v348
    %402 = vmatprep.mubr.bf16.mxu0 %v365
    %403 = vmatmul.mubr.bf16.gmra.mxu0 %v262
    %v404 = vpop.f32.mrf.mxu0
    %v405 = vadd.f32 0.0, %v404
    %v406 = vpop.f32.mrf.mxu0
    %v407 = vpop.f32.mrf.mxu0
    %v408 = vadd.f32 0.0, %v407
    %v409 = vpop.f32.mrf.mxu0
    %410 = vmatprep.mubr.bf16.mxu0 %v368
    %411 = vmatmul.mubr.bf16.gmra.mxu0 %v266
    %v412 = vpop.f32.mrf.mxu0
    %v413 = vadd.f32 0.0, %v412
    %v414 = vpop.f32.mrf.mxu0
    %v415 = vpop.f32.mrf.mxu0
    %v416 = vadd.f32 0.0, %v415
    %v417 = vpop.f32.mrf.mxu0
    %418 = vdwg.mxu0
    %v419 = vsel %vm259, %v405, 0.0
    %v420 = vsel %vm259, %v408, 0.0
    %v421 = vadd.f32 %v419, %v420
    %v422 = vsel %vm259, %v413, 0.0
    %v423 = vadd.f32 %v421, %v422
    %v424 = vsel %vm259, %v416, 0.0
    %v425 = vadd.f32 %v423, %v424
    %v426 = vrot.slane %v425, 4
    %v427 = vadd.f32 %v425, %v426
    %v428 = vrot.slane %v427, 2
    %v429 = vadd.f32 %v427, %v428
    %v430 = vrot.slane %v429, 1
    %v431 = vadd.f32 %v429, %v430
    %v432 = vmul.f32 %v405, %v405
    %v433 = vmul.f32 %v408, %v408
    %v434 = vmul.f32 %v413, %v413
    %v435 = vmul.f32 %v416, %v416
    %v436 = vsel %vm259, %v432, 0.0
    %v437 = vsel %vm259, %v433, 0.0
    %v438 = vadd.f32 %v436, %v437
    %v439 = vsel %vm259, %v434, 0.0
    %v440 = vadd.f32 %v438, %v439
    %v441 = vsel %vm259, %v435, 0.0
    %v442 = vadd.f32 %v440, %v441
    %v443 = vrot.slane %v442, 4
    %v444 = vadd.f32 %v442, %v443
    %v445 = vrot.slane %v444, 2
    %v446 = vadd.f32 %v444, %v445
    %v447 = vrot.slane %v446, 1
    %v448 = vadd.f32 %v446, %v447
    %vm449 = vcmask 1040384
    %v450 = vsel %vm449, %v431, %v448
    %v451 = vld [vmem:[%s3] sm:$0xf]
    %v452 = vld [vmem:[%s3 + $0x4] sm:$0xf]
    %v453 = vld [vmem:[%s3 + $0x8] sm:$0xf]
    %v454 = vld [vmem:[%s3 + $0xc] sm:$0xf]
    %v455 = vld [vmem:[%s3 + $0x10] sm:$0xf]
    %v456 = vld [vmem:[%s3 + $0x14] sm:$0xf]
    %v457 = vld [vmem:[%s3 + $0x18] sm:$0xf]
    %v458 = vld [vmem:[%s3 + $0x1c] sm:$0xf]
    %v459 = vunpack.c.l.bf16 %v451
    %v460 = vunpack.c.l.bf16 %v452
    %v461 = vunpack.c.l.bf16 %v453
    %v462 = vunpack.c.l.bf16 %v454
    %v463 = vunpack.c.l.bf16 %v455
    %v464 = vunpack.c.l.bf16 %v456
    %v465 = vunpack.c.l.bf16 %v457
    %v466 = vunpack.c.l.bf16 %v458
    %v468 = vsel %vm259, %v450, 0
    %470 = vmatprep.subr.mxu0 0.0
    %471 = vmatpush1.msra.mxu0 0.0
    %472 = vmatprep.subr.mxu0 0.0
    %473 = vmatpush1.msra.mxu0 0.0
    %474 = vmatprep.subr.mxu0 0.0
    %475 = vmatpush1.msra.mxu0 0.0
    %476 = vmatprep.subr.mxu0 0.0
    %477 = vmatpush1.msra.mxu0 0.0
    %478 = vmatprep.subr.mxu0 0.0
    %479 = vmatpush1.msra.mxu0 0.0
    %480 = vmatprep.subr.mxu0 0.0
    %481 = vmatpush1.msra.mxu0 0.0
    %482 = vmatprep.subr.mxu0 0.0
    %483 = vmatpush1.msra.mxu0 0.0
    %484 = vmatprep.subr.mxu0 0.0
    %485 = vmatpush1.msra.mxu0 0.0
    %486 = vmatprep.subr.mxu0 0.0
    %487 = vmatpush1.msra.mxu0 %v466
    %488 = vmatprep.subr.mxu0 0.0
    %489 = vmatpush1.msra.mxu0 %v465
    %490 = vmatprep.subr.mxu0 0.0
    %491 = vmatpush1.msra.mxu0 %v464
    %492 = vmatprep.subr.mxu0 0.0
    %493 = vmatpush1.msra.mxu0 %v463
    %494 = vmatprep.subr.mxu0 0.0
    %495 = vmatpush1.msra.mxu0 %v462
    %496 = vmatprep.subr.mxu0 0.0
    %497 = vmatpush1.msra.mxu0 %v461
    %498 = vmatprep.subr.mxu0 0.0
    %499 = vmatpush1.msra.mxu0 %v460
    %500 = vmatprep.subr.mxu0 0.0
    %501 = vmatpush1.msra.mxu0 %v459
    %502 = vmatprep.subr.mxu0 0.0
    %503 = vmatpush2.msra.mxu0 0.0
    %504 = vmatprep.subr.mxu0 0.0
    %505 = vmatpush2.msra.mxu0 0.0
    %506 = vmatprep.subr.mxu0 0.0
    %507 = vmatpush2.msra.mxu0 0.0
    %508 = vmatprep.subr.mxu0 0.0
    %509 = vmatpush2.msra.mxu0 0.0
    %510 = vmatprep.subr.mxu0 0.0
    %511 = vmatpush2.msra.mxu0 0.0
    %512 = vmatprep.subr.mxu0 0.0
    %513 = vmatpush2.msra.mxu0 0.0
    %514 = vmatprep.subr.mxu0 0.0
    %515 = vmatpush2.msra.mxu0 0.0
    %516 = vmatprep.subr.mxu0 0.0
    %517 = vmatpush2.msra.mxu0 0.0
    %518 = vmatprep.subr.mxu0 0.0
    %519 = vmatpush2.msra.mxu0 0.0
    %520 = vmatprep.subr.mxu0 0.0
    %521 = vmatpush2.msra.mxu0 0.0
    %522 = vmatprep.subr.mxu0 0.0
    %523 = vmatpush2.msra.mxu0 0.0
    %524 = vmatprep.subr.mxu0 0.0
    %525 = vmatpush2.msra.mxu0 0.0
    %526 = vmatprep.subr.mxu0 0.0
    %527 = vmatpush2.msra.mxu0 0.0
    %528 = vmatprep.subr.mxu0 0.0
    %529 = vmatpush2.msra.mxu0 0.0
    %530 = vmatprep.subr.mxu0 0.0
    %531 = vmatpush2.msra.mxu0 0.0
    %532 = vmatprep.subr.mxu0 0.0
    %533 = vmatpush2.msra.mxu0 0.0
    %534 = vmatprep.mubr.f32.mxu0 0.0
    %535 = vmatmul.mubr.f32.gmra.mxu0 %v468
    %v536 = vpop.f32.mrf.mxu0
    %v537 = vadd.f32 0.0, %v536
    %v538 = vpop.f32.mrf.mxu0
    %539 = vdwg.mxu0
    %v540 = vmul.f32 %v537, 0.0078125
    %v541 = vmul.f32 %v540, %v540
    %v543 = vrot.slane %v541, 7
    %v545 = vsub.f32 %v540, %v543
    %v546 = vld [vmem:[%s5] sm:$0x3]
    %v547 = vadd.f32 %v545, 1e-05
    %v548 = vrsqrt.pop %v547
    %v550 = vrot.slane %v548, 1
    %v552 = vmul.f32 %v546, %v550
    %v553 = vmul.f32 %v552, %v540
    %v555 = vrot.slane %v553, 7
    %v557 = vsub.f32 %v546, %v555
    %v558 = vsel %vm449, %v552, %v557
    %v559 = vld [vmem:[%s4] sm:$0xf]
    %v560 = vld [vmem:[%s4 + $0x4] sm:$0xf]
    %v561 = vld [vmem:[%s4 + $0x8] sm:$0xf]
    %v562 = vld [vmem:[%s4 + $0xc] sm:$0xf]
    %v563 = vunpack.c.l.bf16 %v559
    %v564 = vunpack.c.l.bf16 %v560
    %v565 = vunpack.c.l.bf16 %v561
    %v566 = vunpack.c.l.bf16 %v562
    %v568 = vsel %vm51, %v558, 0
    %570 = vmatprep.subr.mxu0 0.0
    %571 = vmatpush1.msra.mxu0 0.0
    %572 = vmatprep.subr.mxu0 0.0
    %573 = vmatpush1.msra.mxu0 0.0
    %574 = vmatprep.subr.mxu0 0.0
    %575 = vmatpush1.msra.mxu0 0.0
    %576 = vmatprep.subr.mxu0 0.0
    %577 = vmatpush1.msra.mxu0 0.0
    %578 = vmatprep.subr.mxu0 0.0
    %579 = vmatpush1.msra.mxu0 0.0
    %580 = vmatprep.subr.mxu0 0.0
    %581 = vmatpush1.msra.mxu0 0.0
    %582 = vmatprep.subr.mxu0 0.0
    %583 = vmatpush1.msra.mxu0 0.0
    %584 = vmatprep.subr.mxu0 0.0
    %585 = vmatpush1.msra.mxu0 0.0
    %586 = vmatprep.subr.mxu0 0.0
    %587 = vmatpush1.msra.mxu0 0.0
    %588 = vmatprep.subr.mxu0 0.0
    %589 = vmatpush1.msra.mxu0 0.0
    %590 = vmatprep.subr.mxu0 0.0
    %591 = vmatpush1.msra.mxu0 0.0
    %592 = vmatprep.subr.mxu0 0.0
    %593 = vmatpush1.msra.mxu0 0.0
    %594 = vmatprep.subr.mxu0 0.0
    %595 = vmatpush1.msra.mxu0 %v566
    %596 = vmatprep.subr.mxu0 0.0
    %597 = vmatpush1.msra.mxu0 %v565
    %598 = vmatprep.subr.mxu0 0.0
    %599 = vmatpush1.msra.mxu0 %v564
    %600 = vmatprep.subr.mxu0 0.0
    %601 = vmatpush1.msra.mxu0 %v563
    %602 = vmatprep.subr.mxu0 0.0
    %603 = vmatpush2.msra.mxu0 0.0
    %604 = vmatprep.subr.mxu0 0.0
    %605 = vmatpush2.msra.mxu0 0.0
    %606 = vmatprep.subr.mxu0 0.0
    %607 = vmatpush2.msra.mxu0 0.0
    %608 = vmatprep.subr.mxu0 0.0
    %609 = vmatpush2.msra.mxu0 0.0
    %610 = vmatprep.subr.mxu0 0.0
    %611 = vmatpush2.msra.mxu0 0.0
    %612 = vmatprep.subr.mxu0 0.0
    %613 = vmatpush2.msra.mxu0 0.0
    %614 = vmatprep.subr.mxu0 0.0
    %615 = vmatpush2.msra.mxu0 0.0
    %616 = vmatprep.subr.mxu0 0.0
    %617 = vmatpush2.msra.mxu0 0.0
    %618 = vmatprep.subr.mxu0 0.0
    %619 = vmatpush2.msra.mxu0 0.0
    %620 = vmatprep.subr.mxu0 0.0
    %621 = vmatpush2.msra.mxu0 0.0
    %622 = vmatprep.subr.mxu0 0.0
    %623 = vmatpush2.msra.mxu0 0.0
    %624 = vmatprep.subr.mxu0 0.0
    %625 = vmatpush2.msra.mxu0 0.0
    %626 = vmatprep.subr.mxu0 0.0
    %627 = vmatpush2.msra.mxu0 0.0
    %628 = vmatprep.subr.mxu0 0.0
    %629 = vmatpush2.msra.mxu0 0.0
    %630 = vmatprep.subr.mxu0 0.0
    %631 = vmatpush2.msra.mxu0 0.0
    %632 = vmatprep.subr.mxu0 0.0
    %633 = vmatpush2.msra.mxu0 0.0
    %634 = vmatprep.mubr.f32.mxu0 0.0
    %635 = vmatmul.mubr.f32.gmra.mxu0 %v568
    %v636 = vpop.f32.mrf.mxu0
    %v637 = vadd.f32 0.0, %v636
    %v638 = vpop.f32.mrf.mxu0
    %639 = vdwg.mxu0
    %v640 = vlaneseq
    %v641 = vshrl.u32 %v640, 7
    %v642 = vsub.s32 0, %v641
    %v643 = vrot.slane %v637, %v642
    %v644 = vmul.f32 %v405, %v643
    %v645 = vmul.f32 %v408, %v643
    %v646 = vmul.f32 %v413, %v643
    %v647 = vmul.f32 %v416, %v643
    %v648 = vlaneseq
    %v649 = vshrl.u32 %v648, 7
    %v650 = vsub.s32 1, %v649
    %v651 = vrot.slane %v637, %v650
    %v652 = vadd.f32 %v644, %v651
    %v653 = vadd.f32 %v645, %v651
    %v654 = vadd.f32 %v646, %v651
    %v655 = vadd.f32 %v647, %v651
    %v656 = vmax.f32 %v652, 0.0
    %v657 = vmax.f32 %v653, 0.0
    %v658 = vmax.f32 %v654, 0.0
    %v659 = vmax.f32 %v655, 0.0
    %v660 = vpack.c.bf16 %v657, %v656
    %v661 = vpack.c.bf16 %v659, %v658
    %s662 = scalar_lea.vmem %s1, 48
    %v663 = vld [vmem:[%s662] sm:$0xf]
    %v664 = vld [vmem:[%s662 + $0x4] sm:$0xf]
    %v665 = vld [vmem:[%s662 + $0x8] sm:$0xf]
    %v666 = vld [vmem:[%s662 + $0xc] sm:$0xf]
    %v671 = vunpack.c.l.b16 %v663
    %v672 = vunpack.c.l.b16 %v664
    %v673 = vunpack.c.l.b16 %v665
    %v674 = vunpack.c.l.b16 %v666
    %v675 = vpack.c.b16 %v672, %v671
    %v676 = vpack.c.b16 %v674, %v673
    %v678 = vsel %vm51, %v675, 0
    %v681 = vsel %vm51, %v676, 0
    %683 = vmatprep.subr.bf16.mxu0 0
    %684 = vmatpush1.bf16.msra.mxu0 0
    %685 = vmatprep.subr.bf16.mxu0 0
    %686 = vmatpush1.bf16.msra.mxu0 0
    %687 = vmatprep.subr.bf16.mxu0 0
    %688 = vmatpush1.bf16.msra.mxu0 0
    %689 = vmatprep.subr.bf16.mxu0 0
    %690 = vmatpush1.bf16.msra.mxu0 0
    %691 = vmatprep.subr.bf16.mxu0 0
    %692 = vmatpush1.bf16.msra.mxu0 0
    %693 = vmatprep.subr.bf16.mxu0 0
    %694 = vmatpush1.bf16.msra.mxu0 0
    %695 = vmatprep.subr.bf16.mxu0 0
    %696 = vmatpush1.bf16.msra.mxu0 %v661
    %697 = vmatprep.subr.bf16.mxu0 0
    %698 = vmatpush1.bf16.msra.mxu0 %v660
    %699 = vmatprep.subr.bf16.mxu0 0
    %700 = vmatpush2.bf16.msra.mxu0 0
    %701 = vmatprep.subr.bf16.mxu0 0
    %702 = vmatpush2.bf16.msra.mxu0 0
    %703 = vmatprep.subr.bf16.mxu0 0
    %704 = vmatpush2.bf16.msra.mxu0 0
    %705 = vmatprep.subr.bf16.mxu0 0
    %706 = vmatpush2.bf16.msra.mxu0 0
    %707 = vmatprep.subr.bf16.mxu0 0
    %708 = vmatpush2.bf16.msra.mxu0 0
    %709 = vmatprep.subr.bf16.mxu0 0
    %710 = vmatpush2.bf16.msra.mxu0 0
    %711 = vmatprep.subr.bf16.mxu0 0
    %712 = vmatpush2.bf16.msra.mxu0 0
    %713 = vmatprep.subr.bf16.mxu0 0
    %714 = vmatpush2.bf16.msra.mxu0 0
    %715 = vmatprep.mubr.bf16.mxu0 0
    %716 = vmatmul.mubr.bf16.gmra.mxu0 %v678
    %v717 = vpop.f32.mrf.mxu0
    %v718 = vadd.f32 0.0, %v717
    %v719 = vpop.f32.mrf.mxu0
    %v720 = vpop.f32.mrf.mxu0
    %v721 = vadd.f32 0.0, %v720
    %v722 = vpop.f32.mrf.mxu0
    %723 = vmatprep.mubr.bf16.mxu0 0
    %724 = vmatmul.mubr.bf16.gmra.mxu0 %v681
    %v725 = vpop.f32.mrf.mxu0
    %v726 = vadd.f32 0.0, %v725
    %v727 = vpop.f32.mrf.mxu0
    %v728 = vpop.f32.mrf.mxu0
    %v729 = vadd.f32 0.0, %v728
    %v730 = vpop.f32.mrf.mxu0
    %731 = vdwg.mxu0
    %v732 = vpack.c.bf16 %v721, %v718
    %v733 = vpack.c.bf16 %v729, %v726
    %s734 = scalar_lea.vmem %s1, 64
    %v735 = vld [vmem:[%s734] sm:$0xf]
    %v736 = vld [vmem:[%s734 + $0x4] sm:$0xf]
    %v737 = vld [vmem:[%s734 + $0x8] sm:$0xf]
    %v738 = vld [vmem:[%s734 + $0xc] sm:$0xf]
    %v743 = vunpack.c.l.b16 %v735
    %v744 = vunpack.c.l.b16 %v736
    %v745 = vunpack.c.l.b16 %v737
    %v746 = vunpack.c.l.b16 %v738
    %v747 = vpack.c.b16 %v744, %v743
    %v748 = vpack.c.b16 %v746, %v745
    %v750 = vsel %vm51, %v747, 0
    %v753 = vsel %vm51, %v748, 0
    %755 = vmatprep.subr.bf16.mxu0 0
    %756 = vmatpush1.bf16.msra.mxu0 0
    %757 = vmatprep.subr.bf16.mxu0 0
    %758 = vmatpush1.bf16.msra.mxu0 0
    %759 = vmatprep.subr.bf16.mxu0 0
    %760 = vmatpush1.bf16.msra.mxu0 0
    %761 = vmatprep.subr.bf16.mxu0 0
    %762 = vmatpush1.bf16.msra.mxu0 0
    %763 = vmatprep.subr.bf16.mxu0 0
    %764 = vmatpush1.bf16.msra.mxu0 0
    %765 = vmatprep.subr.bf16.mxu0 0
    %766 = vmatpush1.bf16.msra.mxu0 0
    %767 = vmatprep.subr.bf16.mxu0 0
    %768 = vmatpush1.bf16.msra.mxu0 %v661
    %769 = vmatprep.subr.bf16.mxu0 0
    %770 = vmatpush1.bf16.msra.mxu0 %v660
    %771 = vmatprep.subr.bf16.mxu0 0
    %772 = vmatpush2.bf16.msra.mxu0 0
    %773 = vmatprep.subr.bf16.mxu0 0
    %774 = vmatpush2.bf16.msra.mxu0 0
    %775 = vmatprep.subr.bf16.mxu0 0
    %776 = vmatpush2.bf16.msra.mxu0 0
    %777 = vmatprep.subr.bf16.mxu0 0
    %778 = vmatpush2.bf16.msra.mxu0 0
    %779 = vmatprep.subr.bf16.mxu0 0
    %780 = vmatpush2.bf16.msra.mxu0 0
    %781 = vmatprep.subr.bf16.mxu0 0
    %782 = vmatpush2.bf16.msra.mxu0 0
    %783 = vmatprep.subr.bf16.mxu0 0
    %784 = vmatpush2.bf16.msra.mxu0 0
    %785 = vmatprep.subr.bf16.mxu0 0
    %786 = vmatpush2.bf16.msra.mxu0 0
    %787 = vmatprep.mubr.bf16.mxu0 0
    %788 = vmatmul.mubr.bf16.gmra.mxu0 %v750
    %v789 = vpop.f32.mrf.mxu0
    %v790 = vadd.f32 0.0, %v789
    %v791 = vpop.f32.mrf.mxu0
    %v792 = vpop.f32.mrf.mxu0
    %v793 = vadd.f32 0.0, %v792
    %v794 = vpop.f32.mrf.mxu0
    %795 = vmatprep.mubr.bf16.mxu0 0
    %796 = vmatmul.mubr.bf16.gmra.mxu0 %v753
    %v797 = vpop.f32.mrf.mxu0
    %v798 = vadd.f32 0.0, %v797
    %v799 = vpop.f32.mrf.mxu0
    %v800 = vpop.f32.mrf.mxu0
    %v801 = vadd.f32 0.0, %v800
    %v802 = vpop.f32.mrf.mxu0
    %803 = vdwg.mxu0
    %v804 = vpack.c.bf16 %v793, %v790
    %v805 = vpack.c.bf16 %v801, %v798
    %s806 = scalar_lea.vmem %s1, 80
    %v807 = vld [vmem:[%s806] sm:$0xf]
    %v808 = vld [vmem:[%s806 + $0x4] sm:$0xf]
    %v809 = vld [vmem:[%s806 + $0x8] sm:$0xf]
    %v810 = vld [vmem:[%s806 + $0xc] sm:$0xf]
    %v815 = vunpack.c.l.b16 %v807
    %v816 = vunpack.c.l.b16 %v808
    %v817 = vunpack.c.l.b16 %v809
    %v818 = vunpack.c.l.b16 %v810
    %v819 = vpack.c.b16 %v816, %v815
    %v820 = vpack.c.b16 %v818, %v817
    %v822 = vsel %vm51, %v819, 0
    %v825 = vsel %vm51, %v820, 0
    %827 = vmatprep.subr.bf16.mxu0 0
    %828 = vmatpush1.bf16.msra.mxu0 0
    %829 = vmatprep.subr.bf16.mxu0 0
    %830 = vmatpush1.bf16.msra.mxu0 0
    %831 = vmatprep.subr.bf16.mxu0 0
    %832 = vmatpush1.bf16.msra.mxu0 0
    %833 = vmatprep.subr.bf16.mxu0 0
    %834 = vmatpush1.bf16.msra.mxu0 0
    %835 = vmatprep.subr.bf16.mxu0 0
    %836 = vmatpush1.bf16.msra.mxu0 0
    %837 = vmatprep.subr.bf16.mxu0 0
    %838 = vmatpush1.bf16.msra.mxu0 0
    %839 = vmatprep.subr.bf16.mxu0 0
    %840 = vmatpush1.bf16.msra.mxu0 %v661
    %841 = vmatprep.subr.bf16.mxu0 0
    %842 = vmatpush1.bf16.msra.mxu0 %v660
    %843 = vmatprep.subr.bf16.mxu0 0
    %844 = vmatpush2.bf16.msra.mxu0 0
    %845 = vmatprep.subr.bf16.mxu0 0
    %846 = vmatpush2.bf16.msra.mxu0 0
    %847 = vmatprep.subr.bf16.mxu0 0
    %848 = vmatpush2.bf16.msra.mxu0 0
    %849 = vmatprep.subr.bf16.mxu0 0
    %850 = vmatpush2.bf16.msra.mxu0 0
    %851 = vmatprep.subr.bf16.mxu0 0
    %852 = vmatpush2.bf16.msra.mxu0 0
    %853 = vmatprep.subr.bf16.mxu0 0
    %854 = vmatpush2.bf16.msra.mxu0 0
    %855 = vmatprep.subr.bf16.mxu0 0
    %856 = vmatpush2.bf16.msra.mxu0 0
    %857 = vmatprep.subr.bf16.mxu0 0
    %858 = vmatpush2.bf16.msra.mxu0 0
    %859 = vmatprep.mubr.bf16.mxu0 0
    %860 = vmatmul.mubr.bf16.gmra.mxu0 %v822
    %v861 = vpop.f32.mrf.mxu0
    %v862 = vadd.f32 0.0, %v861
    %v863 = vpop.f32.mrf.mxu0
    %v864 = vpop.f32.mrf.mxu0
    %v865 = vadd.f32 0.0, %v864
    %v866 = vpop.f32.mrf.mxu0
    %867 = vmatprep.mubr.bf16.mxu0 0
    %868 = vmatmul.mubr.bf16.gmra.mxu0 %v825
    %v869 = vpop.f32.mrf.mxu0
    %v870 = vadd.f32 0.0, %v869
    %v871 = vpop.f32.mrf.mxu0
    %v872 = vpop.f32.mrf.mxu0
    %v873 = vadd.f32 0.0, %v872
    %v874 = vpop.f32.mrf.mxu0
    %875 = vdwg.mxu0
    %v876 = vpack.c.bf16 %v865, %v862
    %v877 = vpack.c.bf16 %v873, %v870
    %880 = vrot.lane.b32.xlu0 %v804, 64
    %v881 = vpop.permute.xlu0 %880
    %882 = vrot.lane.b32.xlu0 %v805, 64
    %v883 = vpop.permute.xlu0 %882
    %v886 = vsel %vm259, %v732, %v881
    %v890 = vsel %vm259, %v733, %v883
    %s892 = scalar_lea.vmem %s2, 96
    %v893 = vld [vmem:[%s892] sm:$0xf]
    %v894 = vld [vmem:[%s892 + $0x4] sm:$0xf]
    %v895 = vld [vmem:[%s892 + $0x8] sm:$0xf]
    %v896 = vld [vmem:[%s892 + $0xc] sm:$0xf]
    %v897 = vld [vmem:[%s892 + $0x10] sm:$0xf]
    %v898 = vld [vmem:[%s892 + $0x14] sm:$0xf]
    %v899 = vld [vmem:[%s892 + $0x18] sm:$0xf]
    %v900 = vld [vmem:[%s892 + $0x1c] sm:$0xf]
    %v901 = vld [vmem:[%s892 + $0x20] sm:$0xf]
    %v902 = vld [vmem:[%s892 + $0x24] sm:$0xf]
    %v903 = vld [vmem:[%s892 + $0x28] sm:$0xf]
    %v904 = vld [vmem:[%s892 + $0x2c] sm:$0xf]
    %v905 = vld [vmem:[%s892 + $0x30] sm:$0xf]
    %v906 = vld [vmem:[%s892 + $0x34] sm:$0xf]
    %v907 = vld [vmem:[%s892 + $0x38] sm:$0xf]
    %v908 = vld [vmem:[%s892 + $0x3c] sm:$0xf]
    %v909 = vld [vmem:[%s892 + $0x40] sm:$0xf]
    %v910 = vld [vmem:[%s892 + $0x44] sm:$0xf]
    %v911 = vld [vmem:[%s892 + $0x48] sm:$0xf]
    %v912 = vld [vmem:[%s892 + $0x4c] sm:$0xf]
    %v913 = vld [vmem:[%s892 + $0x50] sm:$0xf]
    %v914 = vld [vmem:[%s892 + $0x54] sm:$0xf]
    %v915 = vld [vmem:[%s892 + $0x58] sm:$0xf]
    %v916 = vld [vmem:[%s892 + $0x5c] sm:$0xf]
    %v941 = vunpack.c.l.b16 %v893
    %v942 = vunpack.c.l.b16 %v894
    %v943 = vunpack.c.l.b16 %v895
    %v944 = vunpack.c.l.b16 %v896
    %v945 = vunpack.c.l.b16 %v897
    %v946 = vunpack.c.l.b16 %v898
    %v947 = vunpack.c.l.b16 %v899
    %v948 = vunpack.c.l.b16 %v900
    %v949 = vunpack.c.l.b16 %v901
    %v950 = vunpack.c.l.b16 %v902
    %v951 = vunpack.c.l.b16 %v903
    %v952 = vunpack.c.l.b16 %v904
    %v953 = vunpack.c.l.b16 %v905
    %v954 = vunpack.c.l.b16 %v906
    %v955 = vunpack.c.l.b16 %v907
    %v956 = vunpack.c.l.b16 %v908
    %v957 = vunpack.c.l.b16 %v909
    %v958 = vunpack.c.l.b16 %v910
    %v959 = vunpack.c.l.b16 %v911
    %v960 = vunpack.c.l.b16 %v912
    %v961 = vunpack.c.l.b16 %v913
    %v962 = vunpack.c.l.b16 %v914
    %v963 = vunpack.c.l.b16 %v915
    %v964 = vunpack.c.l.b16 %v916
    %v965 = vpack.c.b16 %v942, %v941
    %v966 = vpack.c.b16 %v944, %v943
    %v967 = vpack.c.b16 %v946, %v945
    %v968 = vpack.c.b16 %v948, %v947
    %v969 = vpack.c.b16 %v950, %v949
    %v970 = vpack.c.b16 %v952, %v951
    %v971 = vpack.c.b16 %v954, %v953
    %v972 = vpack.c.b16 %v956, %v955
    %v973 = vpack.c.b16 %v958, %v957
    %v974 = vpack.c.b16 %v960, %v959
    %v975 = vpack.c.b16 %v962, %v961
    %v976 = vpack.c.b16 %v964, %v963
    %v990 = vsel %vm259, %v876, 0
    %v993 = vsel %vm259, %v877, 0
    %995 = vmatprep.subr.bf16.mxu0 0
    %996 = vmatpush1.bf16.msra.mxu0 %v972
    %997 = vmatprep.subr.bf16.mxu0 0
    %998 = vmatpush1.bf16.msra.mxu0 %v971
    %999 = vmatprep.subr.bf16.mxu0 0
    %1000 = vmatpush1.bf16.msra.mxu0 %v970
    %1001 = vmatprep.subr.bf16.mxu0 0
    %1002 = vmatpush1.bf16.msra.mxu0 %v969
    %1003 = vmatprep.subr.bf16.mxu0 0
    %1004 = vmatpush1.bf16.msra.mxu0 %v968
    %1005 = vmatprep.subr.bf16.mxu0 0
    %1006 = vmatpush1.bf16.msra.mxu0 %v967
    %1007 = vmatprep.subr.bf16.mxu0 0
    %1008 = vmatpush1.bf16.msra.mxu0 %v966
    %1009 = vmatprep.subr.bf16.mxu0 0
    %1010 = vmatpush1.bf16.msra.mxu0 %v965
    %1011 = vmatprep.subr.bf16.mxu0 0
    %1012 = vmatpush2.bf16.msra.mxu0 0
    %1013 = vmatprep.subr.bf16.mxu0 0
    %1014 = vmatpush2.bf16.msra.mxu0 0
    %1015 = vmatprep.subr.bf16.mxu0 0
    %1016 = vmatpush2.bf16.msra.mxu0 0
    %1017 = vmatprep.subr.bf16.mxu0 0
    %1018 = vmatpush2.bf16.msra.mxu0 0
    %1019 = vmatprep.subr.bf16.mxu0 0
    %1020 = vmatpush2.bf16.msra.mxu0 %v976
    %1021 = vmatprep.subr.bf16.mxu0 0
    %1022 = vmatpush2.bf16.msra.mxu0 %v975
    %1023 = vmatprep.subr.bf16.mxu0 0
    %1024 = vmatpush2.bf16.msra.mxu0 %v974
    %1025 = vmatprep.subr.bf16.mxu0 0
    %1026 = vmatpush2.bf16.msra.mxu0 %v973
    %1027 = vmatprep.mubr.bf16.mxu0 %v990
    %1028 = vmatmul.mubr.bf16.gmra.mxu0 %v886
    %v1029 = vpop.f32.mrf.mxu0
    %v1030 = vadd.f32 0.0, %v1029
    %v1031 = vpop.f32.mrf.mxu0
    %v1032 = vpop.f32.mrf.mxu0
    %v1033 = vadd.f32 0.0, %v1032
    %v1034 = vpop.f32.mrf.mxu0
    %1035 = vmatprep.mubr.bf16.mxu0 %v993
    %1036 = vmatmul.mubr.bf16.gmra.mxu0 %v890
    %v1037 = vpop.f32.mrf.mxu0
    %v1038 = vadd.f32 0.0, %v1037
    %v1039 = vpop.f32.mrf.mxu0
    %v1040 = vpop.f32.mrf.mxu0
    %v1041 = vadd.f32 0.0, %v1040
    %v1042 = vpop.f32.mrf.mxu0
    %1043 = vdwg.mxu0
    %v1044 = vsel %vm259, %v1030, 0.0
    %v1045 = vsel %vm259, %v1033, 0.0
    %v1046 = vadd.f32 %v1044, %v1045
    %v1047 = vsel %vm259, %v1038, 0.0
    %v1048 = vadd.f32 %v1046, %v1047
    %v1049 = vsel %vm259, %v1041, 0.0
    %v1050 = vadd.f32 %v1048, %v1049
    %v1051 = vrot.slane %v1050, 4
    %v1052 = vadd.f32 %v1050, %v1051
    %v1053 = vrot.slane %v1052, 2
    %v1054 = vadd.f32 %v1052, %v1053
    %v1055 = vrot.slane %v1054, 1
    %v1056 = vadd.f32 %v1054, %v1055
    %v1057 = vmul.f32 %v1030, %v1030
    %v1058 = vmul.f32 %v1033, %v1033
    %v1059 = vmul.f32 %v1038, %v1038
    %v1060 = vmul.f32 %v1041, %v1041
    %v1061 = vsel %vm259, %v1057, 0.0
    %v1062 = vsel %vm259, %v1058, 0.0
    %v1063 = vadd.f32 %v1061, %v1062
    %v1064 = vsel %vm259, %v1059, 0.0
    %v1065 = vadd.f32 %v1063, %v1064
    %v1066 = vsel %vm259, %v1060, 0.0
    %v1067 = vadd.f32 %v1065, %v1066
    %v1068 = vrot.slane %v1067, 4
    %v1069 = vadd.f32 %v1067, %v1068
    %v1070 = vrot.slane %v1069, 2
    %v1071 = vadd.f32 %v1069, %v1070
    %v1072 = vrot.slane %v1071, 1
    %v1073 = vadd.f32 %v1071, %v1072
    %v1074 = vsel %vm449, %v1056, %v1073
    %s1075 = scalar_lea.vmem %s3, 32
    %v1076 = vld [vmem:[%s1075] sm:$0xf]
    %v1077 = vld [vmem:[%s1075 + $0x4] sm:$0xf]
    %v1078 = vld [vmem:[%s1075 + $0x8] sm:$0xf]
    %v1079 = vld [vmem:[%s1075 + $0xc] sm:$0xf]
    %v1080 = vld [vmem:[%s1075 + $0x10] sm:$0xf]
    %v1081 = vld [vmem:[%s1075 + $0x14] sm:$0xf]
    %v1082 = vld [vmem:[%s1075 + $0x18] sm:$0xf]
    %v1083 = vld [vmem:[%s1075 + $0x1c] sm:$0xf]
    %v1084 = vunpack.c.l.bf16 %v1076
    %v1085 = vunpack.c.l.bf16 %v1077
    %v1086 = vunpack.c.l.bf16 %v1078
    %v1087 = vunpack.c.l.bf16 %v1079
    %v1088 = vunpack.c.l.bf16 %v1080
    %v1089 = vunpack.c.l.bf16 %v1081
    %v1090 = vunpack.c.l.bf16 %v1082
    %v1091 = vunpack.c.l.bf16 %v1083
    %v1093 = vsel %vm259, %v1074, 0
    %1095 = vmatprep.subr.mxu0 0.0
    %1096 = vmatpush1.msra.mxu0 0.0
    %1097 = vmatprep.subr.mxu0 0.0
    %1098 = vmatpush1.msra.mxu0 0.0
    %1099 = vmatprep.subr.mxu0 0.0
    %1100 = vmatpush1.msra.mxu0 0.0
    %1101 = vmatprep.subr.mxu0 0.0
    %1102 = vmatpush1.msra.mxu0 0.0
    %1103 = vmatprep.subr.mxu0 0.0
    %1104 = vmatpush1.msra.mxu0 0.0
    %1105 = vmatprep.subr.mxu0 0.0
    %1106 = vmatpush1.msra.mxu0 0.0
    %1107 = vmatprep.subr.mxu0 0.0
    %1108 = vmatpush1.msra.mxu0 0.0
    %1109 = vmatprep.subr.mxu0 0.0
    %1110 = vmatpush1.msra.mxu0 0.0
    %1111 = vmatprep.subr.mxu0 0.0
    %1112 = vmatpush1.msra.mxu0 %v1091
    %1113 = vmatprep.subr.mxu0 0.0
    %1114 = vmatpush1.msra.mxu0 %v1090
    %1115 = vmatprep.subr.mxu0 0.0
    %1116 = vmatpush1.msra.mxu0 %v1089
    %1117 = vmatprep.subr.mxu0 0.0
    %1118 = vmatpush1.msra.mxu0 %v1088
    %1119 = vmatprep.subr.mxu0 0.0
    %1120 = vmatpush1.msra.mxu0 %v1087
    %1121 = vmatprep.subr.mxu0 0.0
    %1122 = vmatpush1.msra.mxu0 %v1086
    %1123 = vmatprep.subr.mxu0 0.0
    %1124 = vmatpush1.msra.mxu0 %v1085
    %1125 = vmatprep.subr.mxu0 0.0
    %1126 = vmatpush1.msra.mxu0 %v1084
    %1127 = vmatprep.subr.mxu0 0.0
    %1128 = vmatpush2.msra.mxu0 0.0
    %1129 = vmatprep.subr.mxu0 0.0
    %1130 = vmatpush2.msra.mxu0 0.0
    %1131 = vmatprep.subr.mxu0 0.0
    %1132 = vmatpush2.msra.mxu0 0.0
    %1133 = vmatprep.subr.mxu0 0.0
    %1134 = vmatpush2.msra.mxu0 0.0
    %1135 = vmatprep.subr.mxu0 0.0
    %1136 = vmatpush2.msra.mxu0 0.0
    %1137 = vmatprep.subr.mxu0 0.0
    %1138 = vmatpush2.msra.mxu0 0.0
    %1139 = vmatprep.subr.mxu0 0.0
    %1140 = vmatpush2.msra.mxu0 0.0
    %1141 = vmatprep.subr.mxu0 0.0
    %1142 = vmatpush2.msra.mxu0 0.0
    %1143 = vmatprep.subr.mxu0 0.0
    %1144 = vmatpush2.msra.mxu0 0.0
    %1145 = vmatprep.subr.mxu0 0.0
    %1146 = vmatpush2.msra.mxu0 0.0
    %1147 = vmatprep.subr.mxu0 0.0
    %1148 = vmatpush2.msra.mxu0 0.0
    %1149 = vmatprep.subr.mxu0 0.0
    %1150 = vmatpush2.msra.mxu0 0.0
    %1151 = vmatprep.subr.mxu0 0.0
    %1152 = vmatpush2.msra.mxu0 0.0
    %1153 = vmatprep.subr.mxu0 0.0
    %1154 = vmatpush2.msra.mxu0 0.0
    %1155 = vmatprep.subr.mxu0 0.0
    %1156 = vmatpush2.msra.mxu0 0.0
    %1157 = vmatprep.subr.mxu0 0.0
    %1158 = vmatpush2.msra.mxu0 0.0
    %1159 = vmatprep.mubr.f32.mxu0 0.0
    %1160 = vmatmul.mubr.f32.gmra.mxu0 %v1093
    %v1161 = vpop.f32.mrf.mxu0
    %v1162 = vadd.f32 0.0, %v1161
    %v1163 = vpop.f32.mrf.mxu0
    %1164 = vdwg.mxu0
    %v1165 = vmul.f32 %v1162, 0.03125
    %v1166 = vmul.f32 %v1165, %v1165
    %v1168 = vrot.slane %v1166, 7
    %v1170 = vsub.f32 %v1165, %v1168
    %s1171 = scalar_lea.vmem %s5, 2
    %v1172 = vld [vmem:[%s1171] sm:$0x3]
    %v1173 = vadd.f32 %v1170, 1e-05
    %v1174 = vrsqrt.pop %v1173
    %v1176 = vrot.slane %v1174, 1
    %v1178 = vmul.f32 %v1172, %v1176
    %v1179 = vmul.f32 %v1178, %v1165
    %v1181 = vrot.slane %v1179, 7
    %v1183 = vsub.f32 %v1172, %v1181
    %v1184 = vsel %vm449, %v1178, %v1183
    %s1185 = scalar_lea.vmem %s4, 16
    %v1186 = vld [vmem:[%s1185] sm:$0xf]
    %v1187 = vld [vmem:[%s1185 + $0x4] sm:$0xf]
    %v1188 = vld [vmem:[%s1185 + $0x8] sm:$0xf]
    %v1189 = vld [vmem:[%s1185 + $0xc] sm:$0xf]
    %v1190 = vunpack.c.l.bf16 %v1186
    %v1191 = vunpack.c.l.bf16 %v1187
    %v1192 = vunpack.c.l.bf16 %v1188
    %v1193 = vunpack.c.l.bf16 %v1189
    %v1195 = vsel %vm51, %v1184, 0
    %1197 = vmatprep.subr.mxu0 0.0
    %1198 = vmatpush1.msra.mxu0 0.0
    %1199 = vmatprep.subr.mxu0 0.0
    %1200 = vmatpush1.msra.mxu0 0.0
    %1201 = vmatprep.subr.mxu0 0.0
    %1202 = vmatpush1.msra.mxu0 0.0
    %1203 = vmatprep.subr.mxu0 0.0
    %1204 = vmatpush1.msra.mxu0 0.0
    %1205 = vmatprep.subr.mxu0 0.0
    %1206 = vmatpush1.msra.mxu0 0.0
    %1207 = vmatprep.subr.mxu0 0.0
    %1208 = vmatpush1.msra.mxu0 0.0
    %1209 = vmatprep.subr.mxu0 0.0
    %1210 = vmatpush1.msra.mxu0 0.0
    %1211 = vmatprep.subr.mxu0 0.0
    %1212 = vmatpush1.msra.mxu0 0.0
    %1213 = vmatprep.subr.mxu0 0.0
    %1214 = vmatpush1.msra.mxu0 0.0
    %1215 = vmatprep.subr.mxu0 0.0
    %1216 = vmatpush1.msra.mxu0 0.0
    %1217 = vmatprep.subr.mxu0 0.0
    %1218 = vmatpush1.msra.mxu0 0.0
    %1219 = vmatprep.subr.mxu0 0.0
    %1220 = vmatpush1.msra.mxu0 0.0
    %1221 = vmatprep.subr.mxu0 0.0
    %1222 = vmatpush1.msra.mxu0 %v1193
    %1223 = vmatprep.subr.mxu0 0.0
    %1224 = vmatpush1.msra.mxu0 %v1192
    %1225 = vmatprep.subr.mxu0 0.0
    %1226 = vmatpush1.msra.mxu0 %v1191
    %1227 = vmatprep.subr.mxu0 0.0
    %1228 = vmatpush1.msra.mxu0 %v1190
    %1229 = vmatprep.subr.mxu0 0.0
    %1230 = vmatpush2.msra.mxu0 0.0
    %1231 = vmatprep.subr.mxu0 0.0
    %1232 = vmatpush2.msra.mxu0 0.0
    %1233 = vmatprep.subr.mxu0 0.0
    %1234 = vmatpush2.msra.mxu0 0.0
    %1235 = vmatprep.subr.mxu0 0.0
    %1236 = vmatpush2.msra.mxu0 0.0
    %1237 = vmatprep.subr.mxu0 0.0
    %1238 = vmatpush2.msra.mxu0 0.0
    %1239 = vmatprep.subr.mxu0 0.0
    %1240 = vmatpush2.msra.mxu0 0.0
    %1241 = vmatprep.subr.mxu0 0.0
    %1242 = vmatpush2.msra.mxu0 0.0
    %1243 = vmatprep.subr.mxu0 0.0
    %1244 = vmatpush2.msra.mxu0 0.0
    %1245 = vmatprep.subr.mxu0 0.0
    %1246 = vmatpush2.msra.mxu0 0.0
    %1247 = vmatprep.subr.mxu0 0.0
    %1248 = vmatpush2.msra.mxu0 0.0
    %1249 = vmatprep.subr.mxu0 0.0
    %1250 = vmatpush2.msra.mxu0 0.0
    %1251 = vmatprep.subr.mxu0 0.0
    %1252 = vmatpush2.msra.mxu0 0.0
    %1253 = vmatprep.subr.mxu0 0.0
    %1254 = vmatpush2.msra.mxu0 0.0
    %1255 = vmatprep.subr.mxu0 0.0
    %1256 = vmatpush2.msra.mxu0 0.0
    %1257 = vmatprep.subr.mxu0 0.0
    %1258 = vmatpush2.msra.mxu0 0.0
    %1259 = vmatprep.subr.mxu0 0.0
    %1260 = vmatpush2.msra.mxu0 0.0
    %1261 = vmatprep.mubr.f32.mxu0 0.0
    %1262 = vmatmul.mubr.f32.gmra.mxu0 %v1195
    %v1263 = vpop.f32.mrf.mxu0
    %v1264 = vadd.f32 0.0, %v1263
    %v1265 = vpop.f32.mrf.mxu0
    %1266 = vdwg.mxu0
    %v1267 = vlaneseq
    %v1268 = vshrl.u32 %v1267, 7
    %v1269 = vsub.s32 0, %v1268
    %v1270 = vrot.slane %v1264, %v1269
    %v1271 = vmul.f32 %v1030, %v1270
    %v1272 = vmul.f32 %v1033, %v1270
    %v1273 = vmul.f32 %v1038, %v1270
    %v1274 = vmul.f32 %v1041, %v1270
    %v1275 = vlaneseq
    %v1276 = vshrl.u32 %v1275, 7
    %v1277 = vsub.s32 1, %v1276
    %v1278 = vrot.slane %v1264, %v1277
    %v1279 = vadd.f32 %v1271, %v1278
    %v1280 = vadd.f32 %v1272, %v1278
    %v1281 = vadd.f32 %v1273, %v1278
    %v1282 = vadd.f32 %v1274, %v1278
    %v1283 = vmax.f32 %v1279, 0.0
    %v1284 = vmax.f32 %v1280, 0.0
    %v1285 = vmax.f32 %v1281, 0.0
    %v1286 = vmax.f32 %v1282, 0.0
    %v1287 = vpack.c.bf16 %v1284, %v1283
    %v1288 = vpack.c.bf16 %v1286, %v1285
    %s1289 = scalar_lea.vmem %s1, 96
    %v1290 = vld [vmem:[%s1289] sm:$0xf]
    %v1291 = vld [vmem:[%s1289 + $0x4] sm:$0xf]
    %v1292 = vld [vmem:[%s1289 + $0x8] sm:$0xf]
    %v1293 = vld [vmem:[%s1289 + $0xc] sm:$0xf]
    %v1298 = vunpack.c.l.b16 %v1290
    %v1299 = vunpack.c.l.b16 %v1291
    %v1300 = vunpack.c.l.b16 %v1292
    %v1301 = vunpack.c.l.b16 %v1293
    %v1302 = vpack.c.b16 %v1299, %v1298
    %v1303 = vpack.c.b16 %v1301, %v1300
    %v1305 = vsel %vm51, %v1302, 0
    %v1308 = vsel %vm51, %v1303, 0
    %1310 = vmatprep.subr.bf16.mxu0 0
    %1311 = vmatpush1.bf16.msra.mxu0 0
    %1312 = vmatprep.subr.bf16.mxu0 0
    %1313 = vmatpush1.bf16.msra.mxu0 0
    %1314 = vmatprep.subr.bf16.mxu0 0
    %1315 = vmatpush1.bf16.msra.mxu0 0
    %1316 = vmatprep.subr.bf16.mxu0 0
    %1317 = vmatpush1.bf16.msra.mxu0 0
    %1318 = vmatprep.subr.bf16.mxu0 0
    %1319 = vmatpush1.bf16.msra.mxu0 0
    %1320 = vmatprep.subr.bf16.mxu0 0
    %1321 = vmatpush1.bf16.msra.mxu0 0
    %1322 = vmatprep.subr.bf16.mxu0 0
    %1323 = vmatpush1.bf16.msra.mxu0 %v1288
    %1324 = vmatprep.subr.bf16.mxu0 0
    %1325 = vmatpush1.bf16.msra.mxu0 %v1287
    %1326 = vmatprep.subr.bf16.mxu0 0
    %1327 = vmatpush2.bf16.msra.mxu0 0
    %1328 = vmatprep.subr.bf16.mxu0 0
    %1329 = vmatpush2.bf16.msra.mxu0 0
    %1330 = vmatprep.subr.bf16.mxu0 0
    %1331 = vmatpush2.bf16.msra.mxu0 0
    %1332 = vmatprep.subr.bf16.mxu0 0
    %1333 = vmatpush2.bf16.msra.mxu0 0
    %1334 = vmatprep.subr.bf16.mxu0 0
    %1335 = vmatpush2.bf16.msra.mxu0 0
    %1336 = vmatprep.subr.bf16.mxu0 0
    %1337 = vmatpush2.bf16.msra.mxu0 0
    %1338 = vmatprep.subr.bf16.mxu0 0
    %1339 = vmatpush2.bf16.msra.mxu0 0
    %1340 = vmatprep.subr.bf16.mxu0 0
    %1341 = vmatpush2.bf16.msra.mxu0 0
    %1342 = vmatprep.mubr.bf16.mxu0 0
    %1343 = vmatmul.mubr.bf16.gmra.mxu0 %v1305
    %v1344 = vpop.f32.mrf.mxu0
    %v1345 = vadd.f32 0.0, %v1344
    %v1346 = vpop.f32.mrf.mxu0
    %v1347 = vpop.f32.mrf.mxu0
    %v1348 = vadd.f32 0.0, %v1347
    %v1349 = vpop.f32.mrf.mxu0
    %1350 = vmatprep.mubr.bf16.mxu0 0
    %1351 = vmatmul.mubr.bf16.gmra.mxu0 %v1308
    %v1352 = vpop.f32.mrf.mxu0
    %v1353 = vadd.f32 0.0, %v1352
    %v1354 = vpop.f32.mrf.mxu0
    %v1355 = vpop.f32.mrf.mxu0
    %v1356 = vadd.f32 0.0, %v1355
    %v1357 = vpop.f32.mrf.mxu0
    %1358 = vdwg.mxu0
    %v1359 = vpack.c.bf16 %v1348, %v1345
    %v1360 = vpack.c.bf16 %v1356, %v1353
    %s1361 = scalar_lea.vmem %s1, 112
    %v1362 = vld [vmem:[%s1361] sm:$0xf]
    %v1363 = vld [vmem:[%s1361 + $0x4] sm:$0xf]
    %v1364 = vld [vmem:[%s1361 + $0x8] sm:$0xf]
    %v1365 = vld [vmem:[%s1361 + $0xc] sm:$0xf]
    %v1370 = vunpack.c.l.b16 %v1362
    %v1371 = vunpack.c.l.b16 %v1363
    %v1372 = vunpack.c.l.b16 %v1364
    %v1373 = vunpack.c.l.b16 %v1365
    %v1374 = vpack.c.b16 %v1371, %v1370
    %v1375 = vpack.c.b16 %v1373, %v1372
    %v1377 = vsel %vm51, %v1374, 0
    %v1380 = vsel %vm51, %v1375, 0
    %1382 = vmatprep.subr.bf16.mxu0 0
    %1383 = vmatpush1.bf16.msra.mxu0 0
    %1384 = vmatprep.subr.bf16.mxu0 0
    %1385 = vmatpush1.bf16.msra.mxu0 0
    %1386 = vmatprep.subr.bf16.mxu0 0
    %1387 = vmatpush1.bf16.msra.mxu0 0
    %1388 = vmatprep.subr.bf16.mxu0 0
    %1389 = vmatpush1.bf16.msra.mxu0 0
    %1390 = vmatprep.subr.bf16.mxu0 0
    %1391 = vmatpush1.bf16.msra.mxu0 0
    %1392 = vmatprep.subr.bf16.mxu0 0
    %1393 = vmatpush1.bf16.msra.mxu0 0
    %1394 = vmatprep.subr.bf16.mxu0 0
    %1395 = vmatpush1.bf16.msra.mxu0 %v1288
    %1396 = vmatprep.subr.bf16.mxu0 0
    %1397 = vmatpush1.bf16.msra.mxu0 %v1287
    %1398 = vmatprep.subr.bf16.mxu0 0
    %1399 = vmatpush2.bf16.msra.mxu0 0
    %1400 = vmatprep.subr.bf16.mxu0 0
    %1401 = vmatpush2.bf16.msra.mxu0 0
    %1402 = vmatprep.subr.bf16.mxu0 0
    %1403 = vmatpush2.bf16.msra.mxu0 0
    %1404 = vmatprep.subr.bf16.mxu0 0
    %1405 = vmatpush2.bf16.msra.mxu0 0
    %1406 = vmatprep.subr.bf16.mxu0 0
    %1407 = vmatpush2.bf16.msra.mxu0 0
    %1408 = vmatprep.subr.bf16.mxu0 0
    %1409 = vmatpush2.bf16.msra.mxu0 0
    %1410 = vmatprep.subr.bf16.mxu0 0
    %1411 = vmatpush2.bf16.msra.mxu0 0
    %1412 = vmatprep.subr.bf16.mxu0 0
    %1413 = vmatpush2.bf16.msra.mxu0 0
    %1414 = vmatprep.mubr.bf16.mxu0 0
    %1415 = vmatmul.mubr.bf16.gmra.mxu0 %v1377
    %v1416 = vpop.f32.mrf.mxu0
    %v1417 = vadd.f32 0.0, %v1416
    %v1418 = vpop.f32.mrf.mxu0
    %v1419 = vpop.f32.mrf.mxu0
    %v1420 = vadd.f32 0.0, %v1419
    %v1421 = vpop.f32.mrf.mxu0
    %1422 = vmatprep.mubr.bf16.mxu0 0
    %1423 = vmatmul.mubr.bf16.gmra.mxu0 %v1380
    %v1424 = vpop.f32.mrf.mxu0
    %v1425 = vadd.f32 0.0, %v1424
    %v1426 = vpop.f32.mrf.mxu0
    %v1427 = vpop.f32.mrf.mxu0
    %v1428 = vadd.f32 0.0, %v1427
    %v1429 = vpop.f32.mrf.mxu0
    %1430 = vdwg.mxu0
    %v1431 = vpack.c.bf16 %v1420, %v1417
    %v1432 = vpack.c.bf16 %v1428, %v1425
    %s1433 = scalar_lea.vmem %s1, 128
    %v1434 = vld [vmem:[%s1433] sm:$0xf]
    %v1435 = vld [vmem:[%s1433 + $0x4] sm:$0xf]
    %v1436 = vld [vmem:[%s1433 + $0x8] sm:$0xf]
    %v1437 = vld [vmem:[%s1433 + $0xc] sm:$0xf]
    %v1442 = vunpack.c.l.b16 %v1434
    %v1443 = vunpack.c.l.b16 %v1435
    %v1444 = vunpack.c.l.b16 %v1436
    %v1445 = vunpack.c.l.b16 %v1437
    %v1446 = vpack.c.b16 %v1443, %v1442
    %v1447 = vpack.c.b16 %v1445, %v1444
    %v1449 = vsel %vm51, %v1446, 0
    %v1452 = vsel %vm51, %v1447, 0
    %1454 = vmatprep.subr.bf16.mxu0 0
    %1455 = vmatpush1.bf16.msra.mxu0 0
    %1456 = vmatprep.subr.bf16.mxu0 0
    %1457 = vmatpush1.bf16.msra.mxu0 0
    %1458 = vmatprep.subr.bf16.mxu0 0
    %1459 = vmatpush1.bf16.msra.mxu0 0
    %1460 = vmatprep.subr.bf16.mxu0 0
    %1461 = vmatpush1.bf16.msra.mxu0 0
    %1462 = vmatprep.subr.bf16.mxu0 0
    %1463 = vmatpush1.bf16.msra.mxu0 0
    %1464 = vmatprep.subr.bf16.mxu0 0
    %1465 = vmatpush1.bf16.msra.mxu0 0
    %1466 = vmatprep.subr.bf16.mxu0 0
    %1467 = vmatpush1.bf16.msra.mxu0 %v1288
    %1468 = vmatprep.subr.bf16.mxu0 0
    %1469 = vmatpush1.bf16.msra.mxu0 %v1287
    %1470 = vmatprep.subr.bf16.mxu0 0
    %1471 = vmatpush2.bf16.msra.mxu0 0
    %1472 = vmatprep.subr.bf16.mxu0 0
    %1473 = vmatpush2.bf16.msra.mxu0 0
    %1474 = vmatprep.subr.bf16.mxu0 0
    %1475 = vmatpush2.bf16.msra.mxu0 0
    %1476 = vmatprep.subr.bf16.mxu0 0
    %1477 = vmatpush2.bf16.msra.mxu0 0
    %1478 = vmatprep.subr.bf16.mxu0 0
    %1479 = vmatpush2.bf16.msra.mxu0 0
    %1480 = vmatprep.subr.bf16.mxu0 0
    %1481 = vmatpush2.bf16.msra.mxu0 0
    %1482 = vmatprep.subr.bf16.mxu0 0
    %1483 = vmatpush2.bf16.msra.mxu0 0
    %1484 = vmatprep.subr.bf16.mxu0 0
    %1485 = vmatpush2.bf16.msra.mxu0 0
    %1486 = vmatprep.mubr.bf16.mxu0 0
    %1487 = vmatmul.mubr.bf16.gmra.mxu0 %v1449
    %v1488 = vpop.f32.mrf.mxu0
    %v1489 = vadd.f32 0.0, %v1488
    %v1490 = vpop.f32.mrf.mxu0
    %v1491 = vpop.f32.mrf.mxu0
    %v1492 = vadd.f32 0.0, %v1491
    %v1493 = vpop.f32.mrf.mxu0
    %1494 = vmatprep.mubr.bf16.mxu0 0
    %1495 = vmatmul.mubr.bf16.gmra.mxu0 %v1452
    %v1496 = vpop.f32.mrf.mxu0
    %v1497 = vadd.f32 0.0, %v1496
    %v1498 = vpop.f32.mrf.mxu0
    %v1499 = vpop.f32.mrf.mxu0
    %v1500 = vadd.f32 0.0, %v1499
    %v1501 = vpop.f32.mrf.mxu0
    %1502 = vdwg.mxu0
    %v1503 = vpack.c.bf16 %v1492, %v1489
    %v1504 = vpack.c.bf16 %v1500, %v1497
    %1507 = vrot.lane.b32.xlu0 %v1431, 64
    %v1508 = vpop.permute.xlu0 %1507
    %1509 = vrot.lane.b32.xlu0 %v1432, 64
    %v1510 = vpop.permute.xlu0 %1509
    %v1513 = vsel %vm259, %v1359, %v1508
    %v1517 = vsel %vm259, %v1360, %v1510
    %s1519 = scalar_lea.vmem %s2, 192
    %v1520 = vld [vmem:[%s1519] sm:$0xf]
    %v1521 = vld [vmem:[%s1519 + $0x4] sm:$0xf]
    %v1522 = vld [vmem:[%s1519 + $0x8] sm:$0xf]
    %v1523 = vld [vmem:[%s1519 + $0xc] sm:$0xf]
    %v1524 = vld [vmem:[%s1519 + $0x10] sm:$0xf]
    %v1525 = vld [vmem:[%s1519 + $0x14] sm:$0xf]
    %v1526 = vld [vmem:[%s1519 + $0x18] sm:$0xf]
    %v1527 = vld [vmem:[%s1519 + $0x1c] sm:$0xf]
    %v1528 = vld [vmem:[%s1519 + $0x20] sm:$0xf]
    %v1529 = vld [vmem:[%s1519 + $0x24] sm:$0xf]
    %v1530 = vld [vmem:[%s1519 + $0x28] sm:$0xf]
    %v1531 = vld [vmem:[%s1519 + $0x2c] sm:$0xf]
    %v1532 = vld [vmem:[%s1519 + $0x30] sm:$0xf]
    %v1533 = vld [vmem:[%s1519 + $0x34] sm:$0xf]
    %v1534 = vld [vmem:[%s1519 + $0x38] sm:$0xf]
    %v1535 = vld [vmem:[%s1519 + $0x3c] sm:$0xf]
    %v1536 = vld [vmem:[%s1519 + $0x40] sm:$0xf]
    %v1537 = vld [vmem:[%s1519 + $0x44] sm:$0xf]
    %v1538 = vld [vmem:[%s1519 + $0x48] sm:$0xf]
    %v1539 = vld [vmem:[%s1519 + $0x4c] sm:$0xf]
    %v1540 = vld [vmem:[%s1519 + $0x50] sm:$0xf]
    %v1541 = vld [vmem:[%s1519 + $0x54] sm:$0xf]
    %v1542 = vld [vmem:[%s1519 + $0x58] sm:$0xf]
    %v1543 = vld [vmem:[%s1519 + $0x5c] sm:$0xf]
    %v1568 = vunpack.c.l.b16 %v1520
    %v1569 = vunpack.c.l.b16 %v1521
    %v1570 = vunpack.c.l.b16 %v1522
    %v1571 = vunpack.c.l.b16 %v1523
    %v1572 = vunpack.c.l.b16 %v1524
    %v1573 = vunpack.c.l.b16 %v1525
    %v1574 = vunpack.c.l.b16 %v1526
    %v1575 = vunpack.c.l.b16 %v1527
    %v1576 = vunpack.c.l.b16 %v1528
    %v1577 = vunpack.c.l.b16 %v1529
    %v1578 = vunpack.c.l.b16 %v1530
    %v1579 = vunpack.c.l.b16 %v1531
    %v1580 = vunpack.c.l.b16 %v1532
    %v1581 = vunpack.c.l.b16 %v1533
    %v1582 = vunpack.c.l.b16 %v1534
    %v1583 = vunpack.c.l.b16 %v1535
    %v1584 = vunpack.c.l.b16 %v1536
    %v1585 = vunpack.c.l.b16 %v1537
    %v1586 = vunpack.c.l.b16 %v1538
    %v1587 = vunpack.c.l.b16 %v1539
    %v1588 = vunpack.c.l.b16 %v1540
    %v1589 = vunpack.c.l.b16 %v1541
    %v1590 = vunpack.c.l.b16 %v1542
    %v1591 = vunpack.c.l.b16 %v1543
    %v1592 = vpack.c.b16 %v1569, %v1568
    %v1593 = vpack.c.b16 %v1571, %v1570
    %v1594 = vpack.c.b16 %v1573, %v1572
    %v1595 = vpack.c.b16 %v1575, %v1574
    %v1596 = vpack.c.b16 %v1577, %v1576
    %v1597 = vpack.c.b16 %v1579, %v1578
    %v1598 = vpack.c.b16 %v1581, %v1580
    %v1599 = vpack.c.b16 %v1583, %v1582
    %v1600 = vpack.c.b16 %v1585, %v1584
    %v1601 = vpack.c.b16 %v1587, %v1586
    %v1602 = vpack.c.b16 %v1589, %v1588
    %v1603 = vpack.c.b16 %v1591, %v1590
    %v1617 = vsel %vm259, %v1503, 0
    %v1620 = vsel %vm259, %v1504, 0
    %1622 = vmatprep.subr.bf16.mxu0 0
    %1623 = vmatpush1.bf16.msra.mxu0 %v1599
    %1624 = vmatprep.subr.bf16.mxu0 0
    %1625 = vmatpush1.bf16.msra.mxu0 %v1598
    %1626 = vmatprep.subr.bf16.mxu0 0
    %1627 = vmatpush1.bf16.msra.mxu0 %v1597
    %1628 = vmatprep.subr.bf16.mxu0 0
    %1629 = vmatpush1.bf16.msra.mxu0 %v1596
    %1630 = vmatprep.subr.bf16.mxu0 0
    %1631 = vmatpush1.bf16.msra.mxu0 %v1595
    %1632 = vmatprep.subr.bf16.mxu0 0
    %1633 = vmatpush1.bf16.msra.mxu0 %v1594
    %1634 = vmatprep.subr.bf16.mxu0 0
    %1635 = vmatpush1.bf16.msra.mxu0 %v1593
    %1636 = vmatprep.subr.bf16.mxu0 0
    %1637 = vmatpush1.bf16.msra.mxu0 %v1592
    %1638 = vmatprep.subr.bf16.mxu0 0
    %1639 = vmatpush2.bf16.msra.mxu0 0
    %1640 = vmatprep.subr.bf16.mxu0 0
    %1641 = vmatpush2.bf16.msra.mxu0 0
    %1642 = vmatprep.subr.bf16.mxu0 0
    %1643 = vmatpush2.bf16.msra.mxu0 0
    %1644 = vmatprep.subr.bf16.mxu0 0
    %1645 = vmatpush2.bf16.msra.mxu0 0
    %1646 = vmatprep.subr.bf16.mxu0 0
    %1647 = vmatpush2.bf16.msra.mxu0 %v1603
    %1648 = vmatprep.subr.bf16.mxu0 0
    %1649 = vmatpush2.bf16.msra.mxu0 %v1602
    %1650 = vmatprep.subr.bf16.mxu0 0
    %1651 = vmatpush2.bf16.msra.mxu0 %v1601
    %1652 = vmatprep.subr.bf16.mxu0 0
    %1653 = vmatpush2.bf16.msra.mxu0 %v1600
    %1654 = vmatprep.mubr.bf16.mxu0 %v1617
    %1655 = vmatmul.mubr.bf16.gmra.mxu0 %v1513
    %v1656 = vpop.f32.mrf.mxu0
    %v1657 = vadd.f32 0.0, %v1656
    %v1658 = vpop.f32.mrf.mxu0
    %v1659 = vpop.f32.mrf.mxu0
    %v1660 = vadd.f32 0.0, %v1659
    %v1661 = vpop.f32.mrf.mxu0
    %1662 = vmatprep.mubr.bf16.mxu0 %v1620
    %1663 = vmatmul.mubr.bf16.gmra.mxu0 %v1517
    %v1664 = vpop.f32.mrf.mxu0
    %v1665 = vadd.f32 0.0, %v1664
    %v1666 = vpop.f32.mrf.mxu0
    %v1667 = vpop.f32.mrf.mxu0
    %v1668 = vadd.f32 0.0, %v1667
    %v1669 = vpop.f32.mrf.mxu0
    %1670 = vdwg.mxu0
    %v1671 = vsel %vm259, %v1657, 0.0
    %v1672 = vsel %vm259, %v1660, 0.0
    %v1673 = vadd.f32 %v1671, %v1672
    %v1674 = vsel %vm259, %v1665, 0.0
    %v1675 = vadd.f32 %v1673, %v1674
    %v1676 = vsel %vm259, %v1668, 0.0
    %v1677 = vadd.f32 %v1675, %v1676
    %v1678 = vrot.slane %v1677, 4
    %v1679 = vadd.f32 %v1677, %v1678
    %v1680 = vrot.slane %v1679, 2
    %v1681 = vadd.f32 %v1679, %v1680
    %v1682 = vrot.slane %v1681, 1
    %v1683 = vadd.f32 %v1681, %v1682
    %v1684 = vmul.f32 %v1657, %v1657
    %v1685 = vmul.f32 %v1660, %v1660
    %v1686 = vmul.f32 %v1665, %v1665
    %v1687 = vmul.f32 %v1668, %v1668
    %v1688 = vsel %vm259, %v1684, 0.0
    %v1689 = vsel %vm259, %v1685, 0.0
    %v1690 = vadd.f32 %v1688, %v1689
    %v1691 = vsel %vm259, %v1686, 0.0
    %v1692 = vadd.f32 %v1690, %v1691
    %v1693 = vsel %vm259, %v1687, 0.0
    %v1694 = vadd.f32 %v1692, %v1693
    %v1695 = vrot.slane %v1694, 4
    %v1696 = vadd.f32 %v1694, %v1695
    %v1697 = vrot.slane %v1696, 2
    %v1698 = vadd.f32 %v1696, %v1697
    %v1699 = vrot.slane %v1698, 1
    %v1700 = vadd.f32 %v1698, %v1699
    %v1701 = vsel %vm449, %v1683, %v1700
    %s1702 = scalar_lea.vmem %s3, 64
    %v1703 = vld [vmem:[%s1702] sm:$0xf]
    %v1704 = vld [vmem:[%s1702 + $0x4] sm:$0xf]
    %v1705 = vld [vmem:[%s1702 + $0x8] sm:$0xf]
    %v1706 = vld [vmem:[%s1702 + $0xc] sm:$0xf]
    %v1707 = vld [vmem:[%s1702 + $0x10] sm:$0xf]
    %v1708 = vld [vmem:[%s1702 + $0x14] sm:$0xf]
    %v1709 = vld [vmem:[%s1702 + $0x18] sm:$0xf]
    %v1710 = vld [vmem:[%s1702 + $0x1c] sm:$0xf]
    %v1711 = vunpack.c.l.bf16 %v1703
    %v1712 = vunpack.c.l.bf16 %v1704
    %v1713 = vunpack.c.l.bf16 %v1705
    %v1714 = vunpack.c.l.bf16 %v1706
    %v1715 = vunpack.c.l.bf16 %v1707
    %v1716 = vunpack.c.l.bf16 %v1708
    %v1717 = vunpack.c.l.bf16 %v1709
    %v1718 = vunpack.c.l.bf16 %v1710
    %v1720 = vsel %vm259, %v1701, 0
    %1722 = vmatprep.subr.mxu0 0.0
    %1723 = vmatpush1.msra.mxu0 0.0
    %1724 = vmatprep.subr.mxu0 0.0
    %1725 = vmatpush1.msra.mxu0 0.0
    %1726 = vmatprep.subr.mxu0 0.0
    %1727 = vmatpush1.msra.mxu0 0.0
    %1728 = vmatprep.subr.mxu0 0.0
    %1729 = vmatpush1.msra.mxu0 0.0
    %1730 = vmatprep.subr.mxu0 0.0
    %1731 = vmatpush1.msra.mxu0 0.0
    %1732 = vmatprep.subr.mxu0 0.0
    %1733 = vmatpush1.msra.mxu0 0.0
    %1734 = vmatprep.subr.mxu0 0.0
    %1735 = vmatpush1.msra.mxu0 0.0
    %1736 = vmatprep.subr.mxu0 0.0
    %1737 = vmatpush1.msra.mxu0 0.0
    %1738 = vmatprep.subr.mxu0 0.0
    %1739 = vmatpush1.msra.mxu0 %v1718
    %1740 = vmatprep.subr.mxu0 0.0
    %1741 = vmatpush1.msra.mxu0 %v1717
    %1742 = vmatprep.subr.mxu0 0.0
    %1743 = vmatpush1.msra.mxu0 %v1716
    %1744 = vmatprep.subr.mxu0 0.0
    %1745 = vmatpush1.msra.mxu0 %v1715
    %1746 = vmatprep.subr.mxu0 0.0
    %1747 = vmatpush1.msra.mxu0 %v1714
    %1748 = vmatprep.subr.mxu0 0.0
    %1749 = vmatpush1.msra.mxu0 %v1713
    %1750 = vmatprep.subr.mxu0 0.0
    %1751 = vmatpush1.msra.mxu0 %v1712
    %1752 = vmatprep.subr.mxu0 0.0
    %1753 = vmatpush1.msra.mxu0 %v1711
    %1754 = vmatprep.subr.mxu0 0.0
    %1755 = vmatpush2.msra.mxu0 0.0
    %1756 = vmatprep.subr.mxu0 0.0
    %1757 = vmatpush2.msra.mxu0 0.0
    %1758 = vmatprep.subr.mxu0 0.0
    %1759 = vmatpush2.msra.mxu0 0.0
    %1760 = vmatprep.subr.mxu0 0.0
    %1761 = vmatpush2.msra.mxu0 0.0
    %1762 = vmatprep.subr.mxu0 0.0
    %1763 = vmatpush2.msra.mxu0 0.0
    %1764 = vmatprep.subr.mxu0 0.0
    %1765 = vmatpush2.msra.mxu0 0.0
    %1766 = vmatprep.subr.mxu0 0.0
    %1767 = vmatpush2.msra.mxu0 0.0
    %1768 = vmatprep.subr.mxu0 0.0
    %1769 = vmatpush2.msra.mxu0 0.0
    %1770 = vmatprep.subr.mxu0 0.0
    %1771 = vmatpush2.msra.mxu0 0.0
    %1772 = vmatprep.subr.mxu0 0.0
    %1773 = vmatpush2.msra.mxu0 0.0
    %1774 = vmatprep.subr.mxu0 0.0
    %1775 = vmatpush2.msra.mxu0 0.0
    %1776 = vmatprep.subr.mxu0 0.0
    %1777 = vmatpush2.msra.mxu0 0.0
    %1778 = vmatprep.subr.mxu0 0.0
    %1779 = vmatpush2.msra.mxu0 0.0
    %1780 = vmatprep.subr.mxu0 0.0
    %1781 = vmatpush2.msra.mxu0 0.0
    %1782 = vmatprep.subr.mxu0 0.0
    %1783 = vmatpush2.msra.mxu0 0.0
    %1784 = vmatprep.subr.mxu0 0.0
    %1785 = vmatpush2.msra.mxu0 0.0
    %1786 = vmatprep.mubr.f32.mxu0 0.0
    %1787 = vmatmul.mubr.f32.gmra.mxu0 %v1720
    %v1788 = vpop.f32.mrf.mxu0
    %v1789 = vadd.f32 0.0, %v1788
    %v1790 = vpop.f32.mrf.mxu0
    %1791 = vdwg.mxu0
    %v1792 = vmul.f32 %v1789, 0.125
    %v1793 = vmul.f32 %v1792, %v1792
    %v1795 = vrot.slane %v1793, 7
    %v1797 = vsub.f32 %v1792, %v1795
    %s1798 = scalar_lea.vmem %s5, 4
    %v1799 = vld [vmem:[%s1798] sm:$0x3]
    %v1800 = vadd.f32 %v1797, 1e-05
    %v1801 = vrsqrt.pop %v1800
    %v1803 = vrot.slane %v1801, 1
    %v1805 = vmul.f32 %v1799, %v1803
    %v1806 = vmul.f32 %v1805, %v1792
    %v1808 = vrot.slane %v1806, 7
    %v1810 = vsub.f32 %v1799, %v1808
    %v1811 = vsel %vm449, %v1805, %v1810
    %s1812 = scalar_lea.vmem %s4, 32
    %v1813 = vld [vmem:[%s1812] sm:$0xf]
    %v1814 = vld [vmem:[%s1812 + $0x4] sm:$0xf]
    %v1815 = vld [vmem:[%s1812 + $0x8] sm:$0xf]
    %v1816 = vld [vmem:[%s1812 + $0xc] sm:$0xf]
    %v1817 = vunpack.c.l.bf16 %v1813
    %v1818 = vunpack.c.l.bf16 %v1814
    %v1819 = vunpack.c.l.bf16 %v1815
    %v1820 = vunpack.c.l.bf16 %v1816
    %v1822 = vsel %vm51, %v1811, 0
    %1824 = vmatprep.subr.mxu0 0.0
    %1825 = vmatpush1.msra.mxu0 0.0
    %1826 = vmatprep.subr.mxu0 0.0
    %1827 = vmatpush1.msra.mxu0 0.0
    %1828 = vmatprep.subr.mxu0 0.0
    %1829 = vmatpush1.msra.mxu0 0.0
    %1830 = vmatprep.subr.mxu0 0.0
    %1831 = vmatpush1.msra.mxu0 0.0
    %1832 = vmatprep.subr.mxu0 0.0
    %1833 = vmatpush1.msra.mxu0 0.0
    %1834 = vmatprep.subr.mxu0 0.0
    %1835 = vmatpush1.msra.mxu0 0.0
    %1836 = vmatprep.subr.mxu0 0.0
    %1837 = vmatpush1.msra.mxu0 0.0
    %1838 = vmatprep.subr.mxu0 0.0
    %1839 = vmatpush1.msra.mxu0 0.0
    %1840 = vmatprep.subr.mxu0 0.0
    %1841 = vmatpush1.msra.mxu0 0.0
    %1842 = vmatprep.subr.mxu0 0.0
    %1843 = vmatpush1.msra.mxu0 0.0
    %1844 = vmatprep.subr.mxu0 0.0
    %1845 = vmatpush1.msra.mxu0 0.0
    %1846 = vmatprep.subr.mxu0 0.0
    %1847 = vmatpush1.msra.mxu0 0.0
    %1848 = vmatprep.subr.mxu0 0.0
    %1849 = vmatpush1.msra.mxu0 %v1820
    %1850 = vmatprep.subr.mxu0 0.0
    %1851 = vmatpush1.msra.mxu0 %v1819
    %1852 = vmatprep.subr.mxu0 0.0
    %1853 = vmatpush1.msra.mxu0 %v1818
    %1854 = vmatprep.subr.mxu0 0.0
    %1855 = vmatpush1.msra.mxu0 %v1817
    %1856 = vmatprep.subr.mxu0 0.0
    %1857 = vmatpush2.msra.mxu0 0.0
    %1858 = vmatprep.subr.mxu0 0.0
    %1859 = vmatpush2.msra.mxu0 0.0
    %1860 = vmatprep.subr.mxu0 0.0
    %1861 = vmatpush2.msra.mxu0 0.0
    %1862 = vmatprep.subr.mxu0 0.0
    %1863 = vmatpush2.msra.mxu0 0.0
    %1864 = vmatprep.subr.mxu0 0.0
    %1865 = vmatpush2.msra.mxu0 0.0
    %1866 = vmatprep.subr.mxu0 0.0
    %1867 = vmatpush2.msra.mxu0 0.0
    %1868 = vmatprep.subr.mxu0 0.0
    %1869 = vmatpush2.msra.mxu0 0.0
    %1870 = vmatprep.subr.mxu0 0.0
    %1871 = vmatpush2.msra.mxu0 0.0
    %1872 = vmatprep.subr.mxu0 0.0
    %1873 = vmatpush2.msra.mxu0 0.0
    %1874 = vmatprep.subr.mxu0 0.0
    %1875 = vmatpush2.msra.mxu0 0.0
    %1876 = vmatprep.subr.mxu0 0.0
    %1877 = vmatpush2.msra.mxu0 0.0
    %1878 = vmatprep.subr.mxu0 0.0
    %1879 = vmatpush2.msra.mxu0 0.0
    %1880 = vmatprep.subr.mxu0 0.0
    %1881 = vmatpush2.msra.mxu0 0.0
    %1882 = vmatprep.subr.mxu0 0.0
    %1883 = vmatpush2.msra.mxu0 0.0
    %1884 = vmatprep.subr.mxu0 0.0
    %1885 = vmatpush2.msra.mxu0 0.0
    %1886 = vmatprep.subr.mxu0 0.0
    %1887 = vmatpush2.msra.mxu0 0.0
    %1888 = vmatprep.mubr.f32.mxu0 0.0
    %1889 = vmatmul.mubr.f32.gmra.mxu0 %v1822
    %v1890 = vpop.f32.mrf.mxu0
    %v1891 = vadd.f32 0.0, %v1890
    %v1892 = vpop.f32.mrf.mxu0
    %1893 = vdwg.mxu0
    %v1894 = vlaneseq
    %v1895 = vshrl.u32 %v1894, 7
    %v1896 = vsub.s32 0, %v1895
    %v1897 = vrot.slane %v1891, %v1896
    %v1898 = vmul.f32 %v1657, %v1897
    %v1899 = vmul.f32 %v1660, %v1897
    %v1900 = vmul.f32 %v1665, %v1897
    %v1901 = vmul.f32 %v1668, %v1897
    %v1902 = vlaneseq
    %v1903 = vshrl.u32 %v1902, 7
    %v1904 = vsub.s32 1, %v1903
    %v1905 = vrot.slane %v1891, %v1904
    %v1906 = vadd.f32 %v1898, %v1905
    %v1907 = vadd.f32 %v1899, %v1905
    %v1908 = vadd.f32 %v1900, %v1905
    %v1909 = vadd.f32 %v1901, %v1905
    %v1910 = vmax.f32 %v1906, 0.0
    %v1911 = vmax.f32 %v1907, 0.0
    %v1912 = vmax.f32 %v1908, 0.0
    %v1913 = vmax.f32 %v1909, 0.0
    %v1914 = vpack.c.bf16 %v1911, %v1910
    %v1915 = vpack.c.bf16 %v1913, %v1912
    %s1916 = scalar_lea.vmem %s1, 144
    %v1917 = vld [vmem:[%s1916] sm:$0xf]
    %v1918 = vld [vmem:[%s1916 + $0x4] sm:$0xf]
    %v1919 = vld [vmem:[%s1916 + $0x8] sm:$0xf]
    %v1920 = vld [vmem:[%s1916 + $0xc] sm:$0xf]
    %v1925 = vunpack.c.l.b16 %v1917
    %v1926 = vunpack.c.l.b16 %v1918
    %v1927 = vunpack.c.l.b16 %v1919
    %v1928 = vunpack.c.l.b16 %v1920
    %v1929 = vpack.c.b16 %v1926, %v1925
    %v1930 = vpack.c.b16 %v1928, %v1927
    %v1932 = vsel %vm51, %v1929, 0
    %v1935 = vsel %vm51, %v1930, 0
    %1937 = vmatprep.subr.bf16.mxu0 0
    %1938 = vmatpush1.bf16.msra.mxu0 0
    %1939 = vmatprep.subr.bf16.mxu0 0
    %1940 = vmatpush1.bf16.msra.mxu0 0
    %1941 = vmatprep.subr.bf16.mxu0 0
    %1942 = vmatpush1.bf16.msra.mxu0 0
    %1943 = vmatprep.subr.bf16.mxu0 0
    %1944 = vmatpush1.bf16.msra.mxu0 0
    %1945 = vmatprep.subr.bf16.mxu0 0
    %1946 = vmatpush1.bf16.msra.mxu0 0
    %1947 = vmatprep.subr.bf16.mxu0 0
    %1948 = vmatpush1.bf16.msra.mxu0 0
    %1949 = vmatprep.subr.bf16.mxu0 0
    %1950 = vmatpush1.bf16.msra.mxu0 %v1915
    %1951 = vmatprep.subr.bf16.mxu0 0
    %1952 = vmatpush1.bf16.msra.mxu0 %v1914
    %1953 = vmatprep.subr.bf16.mxu0 0
    %1954 = vmatpush2.bf16.msra.mxu0 0
    %1955 = vmatprep.subr.bf16.mxu0 0
    %1956 = vmatpush2.bf16.msra.mxu0 0
    %1957 = vmatprep.subr.bf16.mxu0 0
    %1958 = vmatpush2.bf16.msra.mxu0 0
    %1959 = vmatprep.subr.bf16.mxu0 0
    %1960 = vmatpush2.bf16.msra.mxu0 0
    %1961 = vmatprep.subr.bf16.mxu0 0
    %1962 = vmatpush2.bf16.msra.mxu0 0
    %1963 = vmatprep.subr.bf16.mxu0 0
    %1964 = vmatpush2.bf16.msra.mxu0 0
    %1965 = vmatprep.subr.bf16.mxu0 0
    %1966 = vmatpush2.bf16.msra.mxu0 0
    %1967 = vmatprep.subr.bf16.mxu0 0
    %1968 = vmatpush2.bf16.msra.mxu0 0
    %1969 = vmatprep.mubr.bf16.mxu0 0
    %1970 = vmatmul.mubr.bf16.gmra.mxu0 %v1932
    %v1971 = vpop.f32.mrf.mxu0
    %v1972 = vadd.f32 0.0, %v1971
    %v1973 = vpop.f32.mrf.mxu0
    %v1974 = vpop.f32.mrf.mxu0
    %v1975 = vadd.f32 0.0, %v1974
    %v1976 = vpop.f32.mrf.mxu0
    %1977 = vmatprep.mubr.bf16.mxu0 0
    %1978 = vmatmul.mubr.bf16.gmra.mxu0 %v1935
    %v1979 = vpop.f32.mrf.mxu0
    %v1980 = vadd.f32 0.0, %v1979
    %v1981 = vpop.f32.mrf.mxu0
    %v1982 = vpop.f32.mrf.mxu0
    %v1983 = vadd.f32 0.0, %v1982
    %v1984 = vpop.f32.mrf.mxu0
    %1985 = vdwg.mxu0
    %v1986 = vpack.c.bf16 %v1975, %v1972
    %v1987 = vpack.c.bf16 %v1983, %v1980
    %s1988 = scalar_lea.vmem %s1, 160
    %v1989 = vld [vmem:[%s1988] sm:$0xf]
    %v1990 = vld [vmem:[%s1988 + $0x4] sm:$0xf]
    %v1991 = vld [vmem:[%s1988 + $0x8] sm:$0xf]
    %v1992 = vld [vmem:[%s1988 + $0xc] sm:$0xf]
    %v1997 = vunpack.c.l.b16 %v1989
    %v1998 = vunpack.c.l.b16 %v1990
    %v1999 = vunpack.c.l.b16 %v1991
    %v2000 = vunpack.c.l.b16 %v1992
    %v2001 = vpack.c.b16 %v1998, %v1997
    %v2002 = vpack.c.b16 %v2000, %v1999
    %v2004 = vsel %vm51, %v2001, 0
    %v2007 = vsel %vm51, %v2002, 0
    %2009 = vmatprep.subr.bf16.mxu0 0
    %2010 = vmatpush1.bf16.msra.mxu0 0
    %2011 = vmatprep.subr.bf16.mxu0 0
    %2012 = vmatpush1.bf16.msra.mxu0 0
    %2013 = vmatprep.subr.bf16.mxu0 0
    %2014 = vmatpush1.bf16.msra.mxu0 0
    %2015 = vmatprep.subr.bf16.mxu0 0
    %2016 = vmatpush1.bf16.msra.mxu0 0
    %2017 = vmatprep.subr.bf16.mxu0 0
    %2018 = vmatpush1.bf16.msra.mxu0 0
    %2019 = vmatprep.subr.bf16.mxu0 0
    %2020 = vmatpush1.bf16.msra.mxu0 0
    %2021 = vmatprep.subr.bf16.mxu0 0
    %2022 = vmatpush1.bf16.msra.mxu0 %v1915
    %2023 = vmatprep.subr.bf16.mxu0 0
    %2024 = vmatpush1.bf16.msra.mxu0 %v1914
    %2025 = vmatprep.subr.bf16.mxu0 0
    %2026 = vmatpush2.bf16.msra.mxu0 0
    %2027 = vmatprep.subr.bf16.mxu0 0
    %2028 = vmatpush2.bf16.msra.mxu0 0
    %2029 = vmatprep.subr.bf16.mxu0 0
    %2030 = vmatpush2.bf16.msra.mxu0 0
    %2031 = vmatprep.subr.bf16.mxu0 0
    %2032 = vmatpush2.bf16.msra.mxu0 0
    %2033 = vmatprep.subr.bf16.mxu0 0
    %2034 = vmatpush2.bf16.msra.mxu0 0
    %2035 = vmatprep.subr.bf16.mxu0 0
    %2036 = vmatpush2.bf16.msra.mxu0 0
    %2037 = vmatprep.subr.bf16.mxu0 0
    %2038 = vmatpush2.bf16.msra.mxu0 0
    %2039 = vmatprep.subr.bf16.mxu0 0
    %2040 = vmatpush2.bf16.msra.mxu0 0
    %2041 = vmatprep.mubr.bf16.mxu0 0
    %2042 = vmatmul.mubr.bf16.gmra.mxu0 %v2004
    %v2043 = vpop.f32.mrf.mxu0
    %v2044 = vadd.f32 0.0, %v2043
    %v2045 = vpop.f32.mrf.mxu0
    %v2046 = vpop.f32.mrf.mxu0
    %v2047 = vadd.f32 0.0, %v2046
    %v2048 = vpop.f32.mrf.mxu0
    %2049 = vmatprep.mubr.bf16.mxu0 0
    %2050 = vmatmul.mubr.bf16.gmra.mxu0 %v2007
    %v2051 = vpop.f32.mrf.mxu0
    %v2052 = vadd.f32 0.0, %v2051
    %v2053 = vpop.f32.mrf.mxu0
    %v2054 = vpop.f32.mrf.mxu0
    %v2055 = vadd.f32 0.0, %v2054
    %v2056 = vpop.f32.mrf.mxu0
    %2057 = vdwg.mxu0
    %v2058 = vpack.c.bf16 %v2047, %v2044
    %v2059 = vpack.c.bf16 %v2055, %v2052
    %s2060 = scalar_lea.vmem %s1, 176
    %v2061 = vld [vmem:[%s2060] sm:$0xf]
    %v2062 = vld [vmem:[%s2060 + $0x4] sm:$0xf]
    %v2063 = vld [vmem:[%s2060 + $0x8] sm:$0xf]
    %v2064 = vld [vmem:[%s2060 + $0xc] sm:$0xf]
    %v2069 = vunpack.c.l.b16 %v2061
    %v2070 = vunpack.c.l.b16 %v2062
    %v2071 = vunpack.c.l.b16 %v2063
    %v2072 = vunpack.c.l.b16 %v2064
    %v2073 = vpack.c.b16 %v2070, %v2069
    %v2074 = vpack.c.b16 %v2072, %v2071
    %v2076 = vsel %vm51, %v2073, 0
    %v2079 = vsel %vm51, %v2074, 0
    %2081 = vmatprep.subr.bf16.mxu0 0
    %2082 = vmatpush1.bf16.msra.mxu0 0
    %2083 = vmatprep.subr.bf16.mxu0 0
    %2084 = vmatpush1.bf16.msra.mxu0 0
    %2085 = vmatprep.subr.bf16.mxu0 0
    %2086 = vmatpush1.bf16.msra.mxu0 0
    %2087 = vmatprep.subr.bf16.mxu0 0
    %2088 = vmatpush1.bf16.msra.mxu0 0
    %2089 = vmatprep.subr.bf16.mxu0 0
    %2090 = vmatpush1.bf16.msra.mxu0 0
    %2091 = vmatprep.subr.bf16.mxu0 0
    %2092 = vmatpush1.bf16.msra.mxu0 0
    %2093 = vmatprep.subr.bf16.mxu0 0
    %2094 = vmatpush1.bf16.msra.mxu0 %v1915
    %2095 = vmatprep.subr.bf16.mxu0 0
    %2096 = vmatpush1.bf16.msra.mxu0 %v1914
    %2097 = vmatprep.subr.bf16.mxu0 0
    %2098 = vmatpush2.bf16.msra.mxu0 0
    %2099 = vmatprep.subr.bf16.mxu0 0
    %2100 = vmatpush2.bf16.msra.mxu0 0
    %2101 = vmatprep.subr.bf16.mxu0 0
    %2102 = vmatpush2.bf16.msra.mxu0 0
    %2103 = vmatprep.subr.bf16.mxu0 0
    %2104 = vmatpush2.bf16.msra.mxu0 0
    %2105 = vmatprep.subr.bf16.mxu0 0
    %2106 = vmatpush2.bf16.msra.mxu0 0
    %2107 = vmatprep.subr.bf16.mxu0 0
    %2108 = vmatpush2.bf16.msra.mxu0 0
    %2109 = vmatprep.subr.bf16.mxu0 0
    %2110 = vmatpush2.bf16.msra.mxu0 0
    %2111 = vmatprep.subr.bf16.mxu0 0
    %2112 = vmatpush2.bf16.msra.mxu0 0
    %2113 = vmatprep.mubr.bf16.mxu0 0
    %2114 = vmatmul.mubr.bf16.gmra.mxu0 %v2076
    %v2115 = vpop.f32.mrf.mxu0
    %v2116 = vadd.f32 0.0, %v2115
    %v2117 = vpop.f32.mrf.mxu0
    %v2118 = vpop.f32.mrf.mxu0
    %v2119 = vadd.f32 0.0, %v2118
    %v2120 = vpop.f32.mrf.mxu0
    %2121 = vmatprep.mubr.bf16.mxu0 0
    %2122 = vmatmul.mubr.bf16.gmra.mxu0 %v2079
    %v2123 = vpop.f32.mrf.mxu0
    %v2124 = vadd.f32 0.0, %v2123
    %v2125 = vpop.f32.mrf.mxu0
    %v2126 = vpop.f32.mrf.mxu0
    %v2127 = vadd.f32 0.0, %v2126
    %v2128 = vpop.f32.mrf.mxu0
    %2129 = vdwg.mxu0
    %v2130 = vpack.c.bf16 %v2119, %v2116
    %v2131 = vpack.c.bf16 %v2127, %v2124
    %2134 = vrot.lane.b32.xlu0 %v2058, 64
    %v2135 = vpop.permute.xlu0 %2134
    %2136 = vrot.lane.b32.xlu0 %v2059, 64
    %v2137 = vpop.permute.xlu0 %2136
    %v2140 = vsel %vm259, %v1986, %v2135
    %v2144 = vsel %vm259, %v1987, %v2137
    %s2146 = scalar_lea.vmem %s2, 288
    %v2147 = vld [vmem:[%s2146] sm:$0xf]
    %v2148 = vld [vmem:[%s2146 + $0x4] sm:$0xf]
    %v2149 = vld [vmem:[%s2146 + $0x8] sm:$0xf]
    %v2150 = vld [vmem:[%s2146 + $0xc] sm:$0xf]
    %v2151 = vld [vmem:[%s2146 + $0x10] sm:$0xf]
    %v2152 = vld [vmem:[%s2146 + $0x14] sm:$0xf]
    %v2153 = vld [vmem:[%s2146 + $0x18] sm:$0xf]
    %v2154 = vld [vmem:[%s2146 + $0x1c] sm:$0xf]
    %v2155 = vld [vmem:[%s2146 + $0x20] sm:$0xf]
    %v2156 = vld [vmem:[%s2146 + $0x24] sm:$0xf]
    %v2157 = vld [vmem:[%s2146 + $0x28] sm:$0xf]
    %v2158 = vld [vmem:[%s2146 + $0x2c] sm:$0xf]
    %v2159 = vld [vmem:[%s2146 + $0x30] sm:$0xf]
    %v2160 = vld [vmem:[%s2146 + $0x34] sm:$0xf]
    %v2161 = vld [vmem:[%s2146 + $0x38] sm:$0xf]
    %v2162 = vld [vmem:[%s2146 + $0x3c] sm:$0xf]
    %v2163 = vld [vmem:[%s2146 + $0x40] sm:$0xf]
    %v2164 = vld [vmem:[%s2146 + $0x44] sm:$0xf]
    %v2165 = vld [vmem:[%s2146 + $0x48] sm:$0xf]
    %v2166 = vld [vmem:[%s2146 + $0x4c] sm:$0xf]
    %v2167 = vld [vmem:[%s2146 + $0x50] sm:$0xf]
    %v2168 = vld [vmem:[%s2146 + $0x54] sm:$0xf]
    %v2169 = vld [vmem:[%s2146 + $0x58] sm:$0xf]
    %v2170 = vld [vmem:[%s2146 + $0x5c] sm:$0xf]
    %v2195 = vunpack.c.l.b16 %v2147
    %v2196 = vunpack.c.l.b16 %v2148
    %v2197 = vunpack.c.l.b16 %v2149
    %v2198 = vunpack.c.l.b16 %v2150
    %v2199 = vunpack.c.l.b16 %v2151
    %v2200 = vunpack.c.l.b16 %v2152
    %v2201 = vunpack.c.l.b16 %v2153
    %v2202 = vunpack.c.l.b16 %v2154
    %v2203 = vunpack.c.l.b16 %v2155
    %v2204 = vunpack.c.l.b16 %v2156
    %v2205 = vunpack.c.l.b16 %v2157
    %v2206 = vunpack.c.l.b16 %v2158
    %v2207 = vunpack.c.l.b16 %v2159
    %v2208 = vunpack.c.l.b16 %v2160
    %v2209 = vunpack.c.l.b16 %v2161
    %v2210 = vunpack.c.l.b16 %v2162
    %v2211 = vunpack.c.l.b16 %v2163
    %v2212 = vunpack.c.l.b16 %v2164
    %v2213 = vunpack.c.l.b16 %v2165
    %v2214 = vunpack.c.l.b16 %v2166
    %v2215 = vunpack.c.l.b16 %v2167
    %v2216 = vunpack.c.l.b16 %v2168
    %v2217 = vunpack.c.l.b16 %v2169
    %v2218 = vunpack.c.l.b16 %v2170
    %v2219 = vpack.c.b16 %v2196, %v2195
    %v2220 = vpack.c.b16 %v2198, %v2197
    %v2221 = vpack.c.b16 %v2200, %v2199
    %v2222 = vpack.c.b16 %v2202, %v2201
    %v2223 = vpack.c.b16 %v2204, %v2203
    %v2224 = vpack.c.b16 %v2206, %v2205
    %v2225 = vpack.c.b16 %v2208, %v2207
    %v2226 = vpack.c.b16 %v2210, %v2209
    %v2227 = vpack.c.b16 %v2212, %v2211
    %v2228 = vpack.c.b16 %v2214, %v2213
    %v2229 = vpack.c.b16 %v2216, %v2215
    %v2230 = vpack.c.b16 %v2218, %v2217
    %v2244 = vsel %vm259, %v2130, 0
    %v2247 = vsel %vm259, %v2131, 0
    %2249 = vmatprep.subr.bf16.mxu0 0
    %2250 = vmatpush1.bf16.msra.mxu0 %v2226
    %2251 = vmatprep.subr.bf16.mxu0 0
    %2252 = vmatpush1.bf16.msra.mxu0 %v2225
    %2253 = vmatprep.subr.bf16.mxu0 0
    %2254 = vmatpush1.bf16.msra.mxu0 %v2224
    %2255 = vmatprep.subr.bf16.mxu0 0
    %2256 = vmatpush1.bf16.msra.mxu0 %v2223
    %2257 = vmatprep.subr.bf16.mxu0 0
    %2258 = vmatpush1.bf16.msra.mxu0 %v2222
    %2259 = vmatprep.subr.bf16.mxu0 0
    %2260 = vmatpush1.bf16.msra.mxu0 %v2221
    %2261 = vmatprep.subr.bf16.mxu0 0
    %2262 = vmatpush1.bf16.msra.mxu0 %v2220
    %2263 = vmatprep.subr.bf16.mxu0 0
    %2264 = vmatpush1.bf16.msra.mxu0 %v2219
    %2265 = vmatprep.subr.bf16.mxu0 0
    %2266 = vmatpush2.bf16.msra.mxu0 0
    %2267 = vmatprep.subr.bf16.mxu0 0
    %2268 = vmatpush2.bf16.msra.mxu0 0
    %2269 = vmatprep.subr.bf16.mxu0 0
    %2270 = vmatpush2.bf16.msra.mxu0 0
    %2271 = vmatprep.subr.bf16.mxu0 0
    %2272 = vmatpush2.bf16.msra.mxu0 0
    %2273 = vmatprep.subr.bf16.mxu0 0
    %2274 = vmatpush2.bf16.msra.mxu0 %v2230
    %2275 = vmatprep.subr.bf16.mxu0 0
    %2276 = vmatpush2.bf16.msra.mxu0 %v2229
    %2277 = vmatprep.subr.bf16.mxu0 0
    %2278 = vmatpush2.bf16.msra.mxu0 %v2228
    %2279 = vmatprep.subr.bf16.mxu0 0
    %2280 = vmatpush2.bf16.msra.mxu0 %v2227
    %2281 = vmatprep.mubr.bf16.mxu0 %v2244
    %2282 = vmatmul.mubr.bf16.gmra.mxu0 %v2140
    %v2283 = vpop.f32.mrf.mxu0
    %v2284 = vadd.f32 0.0, %v2283
    %v2285 = vpop.f32.mrf.mxu0
    %v2286 = vpop.f32.mrf.mxu0
    %v2287 = vadd.f32 0.0, %v2286
    %v2288 = vpop.f32.mrf.mxu0
    %2289 = vmatprep.mubr.bf16.mxu0 %v2247
    %2290 = vmatmul.mubr.bf16.gmra.mxu0 %v2144
    %v2291 = vpop.f32.mrf.mxu0
    %v2292 = vadd.f32 0.0, %v2291
    %v2293 = vpop.f32.mrf.mxu0
    %v2294 = vpop.f32.mrf.mxu0
    %v2295 = vadd.f32 0.0, %v2294
    %v2296 = vpop.f32.mrf.mxu0
    %2297 = vdwg.mxu0
    %v2298 = vsel %vm259, %v2284, 0.0
    %v2299 = vsel %vm259, %v2287, 0.0
    %v2300 = vadd.f32 %v2298, %v2299
    %v2301 = vsel %vm259, %v2292, 0.0
    %v2302 = vadd.f32 %v2300, %v2301
    %v2303 = vsel %vm259, %v2295, 0.0
    %v2304 = vadd.f32 %v2302, %v2303
    %v2305 = vrot.slane %v2304, 4
    %v2306 = vadd.f32 %v2304, %v2305
    %v2307 = vrot.slane %v2306, 2
    %v2308 = vadd.f32 %v2306, %v2307
    %v2309 = vrot.slane %v2308, 1
    %v2310 = vadd.f32 %v2308, %v2309
    %v2311 = vmul.f32 %v2284, %v2284
    %v2312 = vmul.f32 %v2287, %v2287
    %v2313 = vmul.f32 %v2292, %v2292
    %v2314 = vmul.f32 %v2295, %v2295
    %v2315 = vsel %vm259, %v2311, 0.0
    %v2316 = vsel %vm259, %v2312, 0.0
    %v2317 = vadd.f32 %v2315, %v2316
    %v2318 = vsel %vm259, %v2313, 0.0
    %v2319 = vadd.f32 %v2317, %v2318
    %v2320 = vsel %vm259, %v2314, 0.0
    %v2321 = vadd.f32 %v2319, %v2320
    %v2322 = vrot.slane %v2321, 4
    %v2323 = vadd.f32 %v2321, %v2322
    %v2324 = vrot.slane %v2323, 2
    %v2325 = vadd.f32 %v2323, %v2324
    %v2326 = vrot.slane %v2325, 1
    %v2327 = vadd.f32 %v2325, %v2326
    %v2328 = vsel %vm449, %v2310, %v2327
    %s2329 = scalar_lea.vmem %s3, 96
    %v2330 = vld [vmem:[%s2329] sm:$0xf]
    %v2331 = vld [vmem:[%s2329 + $0x4] sm:$0xf]
    %v2332 = vld [vmem:[%s2329 + $0x8] sm:$0xf]
    %v2333 = vld [vmem:[%s2329 + $0xc] sm:$0xf]
    %v2334 = vld [vmem:[%s2329 + $0x10] sm:$0xf]
    %v2335 = vld [vmem:[%s2329 + $0x14] sm:$0xf]
    %v2336 = vld [vmem:[%s2329 + $0x18] sm:$0xf]
    %v2337 = vld [vmem:[%s2329 + $0x1c] sm:$0xf]
    %v2338 = vunpack.c.l.bf16 %v2330
    %v2339 = vunpack.c.l.bf16 %v2331
    %v2340 = vunpack.c.l.bf16 %v2332
    %v2341 = vunpack.c.l.bf16 %v2333
    %v2342 = vunpack.c.l.bf16 %v2334
    %v2343 = vunpack.c.l.bf16 %v2335
    %v2344 = vunpack.c.l.bf16 %v2336
    %v2345 = vunpack.c.l.bf16 %v2337
    %v2347 = vsel %vm259, %v2328, 0
    %2349 = vmatprep.subr.mxu0 0.0
    %2350 = vmatpush1.msra.mxu0 0.0
    %2351 = vmatprep.subr.mxu0 0.0
    %2352 = vmatpush1.msra.mxu0 0.0
    %2353 = vmatprep.subr.mxu0 0.0
    %2354 = vmatpush1.msra.mxu0 0.0
    %2355 = vmatprep.subr.mxu0 0.0
    %2356 = vmatpush1.msra.mxu0 0.0
    %2357 = vmatprep.subr.mxu0 0.0
    %2358 = vmatpush1.msra.mxu0 0.0
    %2359 = vmatprep.subr.mxu0 0.0
    %2360 = vmatpush1.msra.mxu0 0.0
    %2361 = vmatprep.subr.mxu0 0.0
    %2362 = vmatpush1.msra.mxu0 0.0
    %2363 = vmatprep.subr.mxu0 0.0
    %2364 = vmatpush1.msra.mxu0 0.0
    %2365 = vmatprep.subr.mxu0 0.0
    %2366 = vmatpush1.msra.mxu0 %v2345
    %2367 = vmatprep.subr.mxu0 0.0
    %2368 = vmatpush1.msra.mxu0 %v2344
    %2369 = vmatprep.subr.mxu0 0.0
    %2370 = vmatpush1.msra.mxu0 %v2343
    %2371 = vmatprep.subr.mxu0 0.0
    %2372 = vmatpush1.msra.mxu0 %v2342
    %2373 = vmatprep.subr.mxu0 0.0
    %2374 = vmatpush1.msra.mxu0 %v2341
    %2375 = vmatprep.subr.mxu0 0.0
    %2376 = vmatpush1.msra.mxu0 %v2340
    %2377 = vmatprep.subr.mxu0 0.0
    %2378 = vmatpush1.msra.mxu0 %v2339
    %2379 = vmatprep.subr.mxu0 0.0
    %2380 = vmatpush1.msra.mxu0 %v2338
    %2381 = vmatprep.subr.mxu0 0.0
    %2382 = vmatpush2.msra.mxu0 0.0
    %2383 = vmatprep.subr.mxu0 0.0
    %2384 = vmatpush2.msra.mxu0 0.0
    %2385 = vmatprep.subr.mxu0 0.0
    %2386 = vmatpush2.msra.mxu0 0.0
    %2387 = vmatprep.subr.mxu0 0.0
    %2388 = vmatpush2.msra.mxu0 0.0
    %2389 = vmatprep.subr.mxu0 0.0
    %2390 = vmatpush2.msra.mxu0 0.0
    %2391 = vmatprep.subr.mxu0 0.0
    %2392 = vmatpush2.msra.mxu0 0.0
    %2393 = vmatprep.subr.mxu0 0.0
    %2394 = vmatpush2.msra.mxu0 0.0
    %2395 = vmatprep.subr.mxu0 0.0
    %2396 = vmatpush2.msra.mxu0 0.0
    %2397 = vmatprep.subr.mxu0 0.0
    %2398 = vmatpush2.msra.mxu0 0.0
    %2399 = vmatprep.subr.mxu0 0.0
    %2400 = vmatpush2.msra.mxu0 0.0
    %2401 = vmatprep.subr.mxu0 0.0
    %2402 = vmatpush2.msra.mxu0 0.0
    %2403 = vmatprep.subr.mxu0 0.0
    %2404 = vmatpush2.msra.mxu0 0.0
    %2405 = vmatprep.subr.mxu0 0.0
    %2406 = vmatpush2.msra.mxu0 0.0
    %2407 = vmatprep.subr.mxu0 0.0
    %2408 = vmatpush2.msra.mxu0 0.0
    %2409 = vmatprep.subr.mxu0 0.0
    %2410 = vmatpush2.msra.mxu0 0.0
    %2411 = vmatprep.subr.mxu0 0.0
    %2412 = vmatpush2.msra.mxu0 0.0
    %2413 = vmatprep.mubr.f32.mxu0 0.0
    %2414 = vmatmul.mubr.f32.gmra.mxu0 %v2347
    %v2415 = vpop.f32.mrf.mxu0
    %v2416 = vadd.f32 0.0, %v2415
    %v2417 = vpop.f32.mrf.mxu0
    %2418 = vdwg.mxu0
    %v2419 = vmul.f32 %v2416, 0.03125
    %v2420 = vmul.f32 %v2419, %v2419
    %v2422 = vrot.slane %v2420, 7
    %v2424 = vsub.f32 %v2419, %v2422
    %s2425 = scalar_lea.vmem %s5, 6
    %v2426 = vld [vmem:[%s2425] sm:$0x3]
    %v2427 = vadd.f32 %v2424, 1e-05
    %v2428 = vrsqrt.pop %v2427
    %v2430 = vrot.slane %v2428, 1
    %v2432 = vmul.f32 %v2426, %v2430
    %v2433 = vmul.f32 %v2432, %v2419
    %v2435 = vrot.slane %v2433, 7
    %v2437 = vsub.f32 %v2426, %v2435
    %v2438 = vsel %vm449, %v2432, %v2437
    %s2439 = scalar_lea.vmem %s4, 48
    %v2440 = vld [vmem:[%s2439] sm:$0xf]
    %v2441 = vld [vmem:[%s2439 + $0x4] sm:$0xf]
    %v2442 = vld [vmem:[%s2439 + $0x8] sm:$0xf]
    %v2443 = vld [vmem:[%s2439 + $0xc] sm:$0xf]
    %v2444 = vunpack.c.l.bf16 %v2440
    %v2445 = vunpack.c.l.bf16 %v2441
    %v2446 = vunpack.c.l.bf16 %v2442
    %v2447 = vunpack.c.l.bf16 %v2443
    %v2449 = vsel %vm51, %v2438, 0
    %2451 = vmatprep.subr.mxu0 0.0
    %2452 = vmatpush1.msra.mxu0 0.0
    %2453 = vmatprep.subr.mxu0 0.0
    %2454 = vmatpush1.msra.mxu0 0.0
    %2455 = vmatprep.subr.mxu0 0.0
    %2456 = vmatpush1.msra.mxu0 0.0
    %2457 = vmatprep.subr.mxu0 0.0
    %2458 = vmatpush1.msra.mxu0 0.0
    %2459 = vmatprep.subr.mxu0 0.0
    %2460 = vmatpush1.msra.mxu0 0.0
    %2461 = vmatprep.subr.mxu0 0.0
    %2462 = vmatpush1.msra.mxu0 0.0
    %2463 = vmatprep.subr.mxu0 0.0
    %2464 = vmatpush1.msra.mxu0 0.0
    %2465 = vmatprep.subr.mxu0 0.0
    %2466 = vmatpush1.msra.mxu0 0.0
    %2467 = vmatprep.subr.mxu0 0.0
    %2468 = vmatpush1.msra.mxu0 0.0
    %2469 = vmatprep.subr.mxu0 0.0
    %2470 = vmatpush1.msra.mxu0 0.0
    %2471 = vmatprep.subr.mxu0 0.0
    %2472 = vmatpush1.msra.mxu0 0.0
    %2473 = vmatprep.subr.mxu0 0.0
    %2474 = vmatpush1.msra.mxu0 0.0
    %2475 = vmatprep.subr.mxu0 0.0
    %2476 = vmatpush1.msra.mxu0 %v2447
    %2477 = vmatprep.subr.mxu0 0.0
    %2478 = vmatpush1.msra.mxu0 %v2446
    %2479 = vmatprep.subr.mxu0 0.0
    %2480 = vmatpush1.msra.mxu0 %v2445
    %2481 = vmatprep.subr.mxu0 0.0
    %2482 = vmatpush1.msra.mxu0 %v2444
    %2483 = vmatprep.subr.mxu0 0.0
    %2484 = vmatpush2.msra.mxu0 0.0
    %2485 = vmatprep.subr.mxu0 0.0
    %2486 = vmatpush2.msra.mxu0 0.0
    %2487 = vmatprep.subr.mxu0 0.0
    %2488 = vmatpush2.msra.mxu0 0.0
    %2489 = vmatprep.subr.mxu0 0.0
    %2490 = vmatpush2.msra.mxu0 0.0
    %2491 = vmatprep.subr.mxu0 0.0
    %2492 = vmatpush2.msra.mxu0 0.0
    %2493 = vmatprep.subr.mxu0 0.0
    %2494 = vmatpush2.msra.mxu0 0.0
    %2495 = vmatprep.subr.mxu0 0.0
    %2496 = vmatpush2.msra.mxu0 0.0
    %2497 = vmatprep.subr.mxu0 0.0
    %2498 = vmatpush2.msra.mxu0 0.0
    %2499 = vmatprep.subr.mxu0 0.0
    %2500 = vmatpush2.msra.mxu0 0.0
    %2501 = vmatprep.subr.mxu0 0.0
    %2502 = vmatpush2.msra.mxu0 0.0
    %2503 = vmatprep.subr.mxu0 0.0
    %2504 = vmatpush2.msra.mxu0 0.0
    %2505 = vmatprep.subr.mxu0 0.0
    %2506 = vmatpush2.msra.mxu0 0.0
    %2507 = vmatprep.subr.mxu0 0.0
    %2508 = vmatpush2.msra.mxu0 0.0
    %2509 = vmatprep.subr.mxu0 0.0
    %2510 = vmatpush2.msra.mxu0 0.0
    %2511 = vmatprep.subr.mxu0 0.0
    %2512 = vmatpush2.msra.mxu0 0.0
    %2513 = vmatprep.subr.mxu0 0.0
    %2514 = vmatpush2.msra.mxu0 0.0
    %2515 = vmatprep.mubr.f32.mxu0 0.0
    %2516 = vmatmul.mubr.f32.gmra.mxu0 %v2449
    %v2517 = vpop.f32.mrf.mxu0
    %v2518 = vadd.f32 0.0, %v2517
    %v2519 = vpop.f32.mrf.mxu0
    %2520 = vdwg.mxu0
    %v2521 = vlaneseq
    %v2522 = vshrl.u32 %v2521, 7
    %v2523 = vsub.s32 0, %v2522
    %v2524 = vrot.slane %v2518, %v2523
    %v2525 = vmul.f32 %v2284, %v2524
    %v2526 = vmul.f32 %v2287, %v2524
    %v2527 = vmul.f32 %v2292, %v2524
    %v2528 = vmul.f32 %v2295, %v2524
    %v2529 = vlaneseq
    %v2530 = vshrl.u32 %v2529, 7
    %v2531 = vsub.s32 1, %v2530
    %v2532 = vrot.slane %v2518, %v2531
    %v2533 = vadd.f32 %v2525, %v2532
    %v2534 = vadd.f32 %v2526, %v2532
    %v2535 = vadd.f32 %v2527, %v2532
    %v2536 = vadd.f32 %v2528, %v2532
    %v2537 = vmax.f32 %v2533, 0.0
    %v2538 = vmax.f32 %v2534, 0.0
    %v2539 = vmax.f32 %v2535, 0.0
    %v2540 = vmax.f32 %v2536, 0.0
    %v2541 = vpack.c.bf16 %v2538, %v2537
    %v2542 = vpack.c.bf16 %v2540, %v2539
    %s2543 = scalar_lea.vmem %s1, 192
    %v2544 = vld [vmem:[%s2543] sm:$0xf]
    %v2545 = vld [vmem:[%s2543 + $0x4] sm:$0xf]
    %v2546 = vld [vmem:[%s2543 + $0x8] sm:$0xf]
    %v2547 = vld [vmem:[%s2543 + $0xc] sm:$0xf]
    %v2552 = vunpack.c.l.b16 %v2544
    %v2553 = vunpack.c.l.b16 %v2545
    %v2554 = vunpack.c.l.b16 %v2546
    %v2555 = vunpack.c.l.b16 %v2547
    %v2556 = vpack.c.b16 %v2553, %v2552
    %v2557 = vpack.c.b16 %v2555, %v2554
    %v2559 = vsel %vm51, %v2556, 0
    %v2562 = vsel %vm51, %v2557, 0
    %2564 = vmatprep.subr.bf16.mxu0 0
    %2565 = vmatpush1.bf16.msra.mxu0 0
    %2566 = vmatprep.subr.bf16.mxu0 0
    %2567 = vmatpush1.bf16.msra.mxu0 0
    %2568 = vmatprep.subr.bf16.mxu0 0
    %2569 = vmatpush1.bf16.msra.mxu0 0
    %2570 = vmatprep.subr.bf16.mxu0 0
    %2571 = vmatpush1.bf16.msra.mxu0 0
    %2572 = vmatprep.subr.bf16.mxu0 0
    %2573 = vmatpush1.bf16.msra.mxu0 0
    %2574 = vmatprep.subr.bf16.mxu0 0
    %2575 = vmatpush1.bf16.msra.mxu0 0
    %2576 = vmatprep.subr.bf16.mxu0 0
    %2577 = vmatpush1.bf16.msra.mxu0 %v2542
    %2578 = vmatprep.subr.bf16.mxu0 0
    %2579 = vmatpush1.bf16.msra.mxu0 %v2541
    %2580 = vmatprep.subr.bf16.mxu0 0
    %2581 = vmatpush2.bf16.msra.mxu0 0
    %2582 = vmatprep.subr.bf16.mxu0 0
    %2583 = vmatpush2.bf16.msra.mxu0 0
    %2584 = vmatprep.subr.bf16.mxu0 0
    %2585 = vmatpush2.bf16.msra.mxu0 0
    %2586 = vmatprep.subr.bf16.mxu0 0
    %2587 = vmatpush2.bf16.msra.mxu0 0
    %2588 = vmatprep.subr.bf16.mxu0 0
    %2589 = vmatpush2.bf16.msra.mxu0 0
    %2590 = vmatprep.subr.bf16.mxu0 0
    %2591 = vmatpush2.bf16.msra.mxu0 0
    %2592 = vmatprep.subr.bf16.mxu0 0
    %2593 = vmatpush2.bf16.msra.mxu0 0
    %2594 = vmatprep.subr.bf16.mxu0 0
    %2595 = vmatpush2.bf16.msra.mxu0 0
    %2596 = vmatprep.mubr.bf16.mxu0 0
    %2597 = vmatmul.mubr.bf16.gmra.mxu0 %v2559
    %v2598 = vpop.f32.mrf.mxu0
    %v2599 = vadd.f32 0.0, %v2598
    %v2600 = vpop.f32.mrf.mxu0
    %v2601 = vpop.f32.mrf.mxu0
    %v2602 = vadd.f32 0.0, %v2601
    %v2603 = vpop.f32.mrf.mxu0
    %2604 = vmatprep.mubr.bf16.mxu0 0
    %2605 = vmatmul.mubr.bf16.gmra.mxu0 %v2562
    %v2606 = vpop.f32.mrf.mxu0
    %v2607 = vadd.f32 0.0, %v2606
    %v2608 = vpop.f32.mrf.mxu0
    %v2609 = vpop.f32.mrf.mxu0
    %v2610 = vadd.f32 0.0, %v2609
    %v2611 = vpop.f32.mrf.mxu0
    %2612 = vdwg.mxu0
    %v2613 = vpack.c.bf16 %v2602, %v2599
    %v2614 = vpack.c.bf16 %v2610, %v2607
    %s2615 = scalar_lea.vmem %s1, 208
    %v2616 = vld [vmem:[%s2615] sm:$0xf]
    %v2617 = vld [vmem:[%s2615 + $0x4] sm:$0xf]
    %v2618 = vld [vmem:[%s2615 + $0x8] sm:$0xf]
    %v2619 = vld [vmem:[%s2615 + $0xc] sm:$0xf]
    %v2624 = vunpack.c.l.b16 %v2616
    %v2625 = vunpack.c.l.b16 %v2617
    %v2626 = vunpack.c.l.b16 %v2618
    %v2627 = vunpack.c.l.b16 %v2619
    %v2628 = vpack.c.b16 %v2625, %v2624
    %v2629 = vpack.c.b16 %v2627, %v2626
    %v2631 = vsel %vm51, %v2628, 0
    %v2634 = vsel %vm51, %v2629, 0
    %2636 = vmatprep.subr.bf16.mxu0 0
    %2637 = vmatpush1.bf16.msra.mxu0 0
    %2638 = vmatprep.subr.bf16.mxu0 0
    %2639 = vmatpush1.bf16.msra.mxu0 0
    %2640 = vmatprep.subr.bf16.mxu0 0
    %2641 = vmatpush1.bf16.msra.mxu0 0
    %2642 = vmatprep.subr.bf16.mxu0 0
    %2643 = vmatpush1.bf16.msra.mxu0 0
    %2644 = vmatprep.subr.bf16.mxu0 0
    %2645 = vmatpush1.bf16.msra.mxu0 0
    %2646 = vmatprep.subr.bf16.mxu0 0
    %2647 = vmatpush1.bf16.msra.mxu0 0
    %2648 = vmatprep.subr.bf16.mxu0 0
    %2649 = vmatpush1.bf16.msra.mxu0 %v2542
    %2650 = vmatprep.subr.bf16.mxu0 0
    %2651 = vmatpush1.bf16.msra.mxu0 %v2541
    %2652 = vmatprep.subr.bf16.mxu0 0
    %2653 = vmatpush2.bf16.msra.mxu0 0
    %2654 = vmatprep.subr.bf16.mxu0 0
    %2655 = vmatpush2.bf16.msra.mxu0 0
    %2656 = vmatprep.subr.bf16.mxu0 0
    %2657 = vmatpush2.bf16.msra.mxu0 0
    %2658 = vmatprep.subr.bf16.mxu0 0
    %2659 = vmatpush2.bf16.msra.mxu0 0
    %2660 = vmatprep.subr.bf16.mxu0 0
    %2661 = vmatpush2.bf16.msra.mxu0 0
    %2662 = vmatprep.subr.bf16.mxu0 0
    %2663 = vmatpush2.bf16.msra.mxu0 0
    %2664 = vmatprep.subr.bf16.mxu0 0
    %2665 = vmatpush2.bf16.msra.mxu0 0
    %2666 = vmatprep.subr.bf16.mxu0 0
    %2667 = vmatpush2.bf16.msra.mxu0 0
    %2668 = vmatprep.mubr.bf16.mxu0 0
    %2669 = vmatmul.mubr.bf16.gmra.mxu0 %v2631
    %v2670 = vpop.f32.mrf.mxu0
    %v2671 = vadd.f32 0.0, %v2670
    %v2672 = vpop.f32.mrf.mxu0
    %v2673 = vpop.f32.mrf.mxu0
    %v2674 = vadd.f32 0.0, %v2673
    %v2675 = vpop.f32.mrf.mxu0
    %2676 = vmatprep.mubr.bf16.mxu0 0
    %2677 = vmatmul.mubr.bf16.gmra.mxu0 %v2634
    %v2678 = vpop.f32.mrf.mxu0
    %v2679 = vadd.f32 0.0, %v2678
    %v2680 = vpop.f32.mrf.mxu0
    %v2681 = vpop.f32.mrf.mxu0
    %v2682 = vadd.f32 0.0, %v2681
    %v2683 = vpop.f32.mrf.mxu0
    %2684 = vdwg.mxu0
    %v2685 = vpack.c.bf16 %v2674, %v2671
    %v2686 = vpack.c.bf16 %v2682, %v2679
    %s2687 = scalar_lea.vmem %s1, 224
    %v2688 = vld [vmem:[%s2687] sm:$0xf]
    %v2689 = vld [vmem:[%s2687 + $0x4] sm:$0xf]
    %v2690 = vld [vmem:[%s2687 + $0x8] sm:$0xf]
    %v2691 = vld [vmem:[%s2687 + $0xc] sm:$0xf]
    %v2696 = vunpack.c.l.b16 %v2688
    %v2697 = vunpack.c.l.b16 %v2689
    %v2698 = vunpack.c.l.b16 %v2690
    %v2699 = vunpack.c.l.b16 %v2691
    %v2700 = vpack.c.b16 %v2697, %v2696
    %v2701 = vpack.c.b16 %v2699, %v2698
    %v2703 = vsel %vm51, %v2700, 0
    %v2706 = vsel %vm51, %v2701, 0
    %2708 = vmatprep.subr.bf16.mxu0 0
    %2709 = vmatpush1.bf16.msra.mxu0 0
    %2710 = vmatprep.subr.bf16.mxu0 0
    %2711 = vmatpush1.bf16.msra.mxu0 0
    %2712 = vmatprep.subr.bf16.mxu0 0
    %2713 = vmatpush1.bf16.msra.mxu0 0
    %2714 = vmatprep.subr.bf16.mxu0 0
    %2715 = vmatpush1.bf16.msra.mxu0 0
    %2716 = vmatprep.subr.bf16.mxu0 0
    %2717 = vmatpush1.bf16.msra.mxu0 0
    %2718 = vmatprep.subr.bf16.mxu0 0
    %2719 = vmatpush1.bf16.msra.mxu0 0
    %2720 = vmatprep.subr.bf16.mxu0 0
    %2721 = vmatpush1.bf16.msra.mxu0 %v2542
    %2722 = vmatprep.subr.bf16.mxu0 0
    %2723 = vmatpush1.bf16.msra.mxu0 %v2541
    %2724 = vmatprep.subr.bf16.mxu0 0
    %2725 = vmatpush2.bf16.msra.mxu0 0
    %2726 = vmatprep.subr.bf16.mxu0 0
    %2727 = vmatpush2.bf16.msra.mxu0 0
    %2728 = vmatprep.subr.bf16.mxu0 0
    %2729 = vmatpush2.bf16.msra.mxu0 0
    %2730 = vmatprep.subr.bf16.mxu0 0
    %2731 = vmatpush2.bf16.msra.mxu0 0
    %2732 = vmatprep.subr.bf16.mxu0 0
    %2733 = vmatpush2.bf16.msra.mxu0 0
    %2734 = vmatprep.subr.bf16.mxu0 0
    %2735 = vmatpush2.bf16.msra.mxu0 0
    %2736 = vmatprep.subr.bf16.mxu0 0
    %2737 = vmatpush2.bf16.msra.mxu0 0
    %2738 = vmatprep.subr.bf16.mxu0 0
    %2739 = vmatpush2.bf16.msra.mxu0 0
    %2740 = vmatprep.mubr.bf16.mxu0 0
    %2741 = vmatmul.mubr.bf16.gmra.mxu0 %v2703
    %v2742 = vpop.f32.mrf.mxu0
    %v2743 = vadd.f32 0.0, %v2742
    %v2744 = vpop.f32.mrf.mxu0
    %v2745 = vpop.f32.mrf.mxu0
    %v2746 = vadd.f32 0.0, %v2745
    %v2747 = vpop.f32.mrf.mxu0
    %2748 = vmatprep.mubr.bf16.mxu0 0
    %2749 = vmatmul.mubr.bf16.gmra.mxu0 %v2706
    %v2750 = vpop.f32.mrf.mxu0
    %v2751 = vadd.f32 0.0, %v2750
    %v2752 = vpop.f32.mrf.mxu0
    %v2753 = vpop.f32.mrf.mxu0
    %v2754 = vadd.f32 0.0, %v2753
    %v2755 = vpop.f32.mrf.mxu0
    %2756 = vdwg.mxu0
    %v2757 = vpack.c.bf16 %v2746, %v2743
    %v2758 = vpack.c.bf16 %v2754, %v2751
    %2761 = vrot.lane.b32.xlu0 %v2685, 64
    %v2762 = vpop.permute.xlu0 %2761
    %2763 = vrot.lane.b32.xlu0 %v2686, 64
    %v2764 = vpop.permute.xlu0 %2763
    %v2767 = vsel %vm259, %v2613, %v2762
    %v2771 = vsel %vm259, %v2614, %v2764
    %s2773 = scalar_lea.vmem %s2, 384
    %v2774 = vld [vmem:[%s2773] sm:$0xf]
    %v2775 = vld [vmem:[%s2773 + $0x4] sm:$0xf]
    %v2776 = vld [vmem:[%s2773 + $0x8] sm:$0xf]
    %v2777 = vld [vmem:[%s2773 + $0xc] sm:$0xf]
    %v2778 = vld [vmem:[%s2773 + $0x10] sm:$0xf]
    %v2779 = vld [vmem:[%s2773 + $0x14] sm:$0xf]
    %v2780 = vld [vmem:[%s2773 + $0x18] sm:$0xf]
    %v2781 = vld [vmem:[%s2773 + $0x1c] sm:$0xf]
    %v2782 = vld [vmem:[%s2773 + $0x20] sm:$0xf]
    %v2783 = vld [vmem:[%s2773 + $0x24] sm:$0xf]
    %v2784 = vld [vmem:[%s2773 + $0x28] sm:$0xf]
    %v2785 = vld [vmem:[%s2773 + $0x2c] sm:$0xf]
    %v2786 = vld [vmem:[%s2773 + $0x30] sm:$0xf]
    %v2787 = vld [vmem:[%s2773 + $0x34] sm:$0xf]
    %v2788 = vld [vmem:[%s2773 + $0x38] sm:$0xf]
    %v2789 = vld [vmem:[%s2773 + $0x3c] sm:$0xf]
    %v2790 = vld [vmem:[%s2773 + $0x40] sm:$0xf]
    %v2791 = vld [vmem:[%s2773 + $0x44] sm:$0xf]
    %v2792 = vld [vmem:[%s2773 + $0x48] sm:$0xf]
    %v2793 = vld [vmem:[%s2773 + $0x4c] sm:$0xf]
    %v2794 = vld [vmem:[%s2773 + $0x50] sm:$0xf]
    %v2795 = vld [vmem:[%s2773 + $0x54] sm:$0xf]
    %v2796 = vld [vmem:[%s2773 + $0x58] sm:$0xf]
    %v2797 = vld [vmem:[%s2773 + $0x5c] sm:$0xf]
    %v2822 = vunpack.c.l.b16 %v2774
    %v2823 = vunpack.c.l.b16 %v2775
    %v2824 = vunpack.c.l.b16 %v2776
    %v2825 = vunpack.c.l.b16 %v2777
    %v2826 = vunpack.c.l.b16 %v2778
    %v2827 = vunpack.c.l.b16 %v2779
    %v2828 = vunpack.c.l.b16 %v2780
    %v2829 = vunpack.c.l.b16 %v2781
    %v2830 = vunpack.c.l.b16 %v2782
    %v2831 = vunpack.c.l.b16 %v2783
    %v2832 = vunpack.c.l.b16 %v2784
    %v2833 = vunpack.c.l.b16 %v2785
    %v2834 = vunpack.c.l.b16 %v2786
    %v2835 = vunpack.c.l.b16 %v2787
    %v2836 = vunpack.c.l.b16 %v2788
    %v2837 = vunpack.c.l.b16 %v2789
    %v2838 = vunpack.c.l.b16 %v2790
    %v2839 = vunpack.c.l.b16 %v2791
    %v2840 = vunpack.c.l.b16 %v2792
    %v2841 = vunpack.c.l.b16 %v2793
    %v2842 = vunpack.c.l.b16 %v2794
    %v2843 = vunpack.c.l.b16 %v2795
    %v2844 = vunpack.c.l.b16 %v2796
    %v2845 = vunpack.c.l.b16 %v2797
    %v2846 = vpack.c.b16 %v2823, %v2822
    %v2847 = vpack.c.b16 %v2825, %v2824
    %v2848 = vpack.c.b16 %v2827, %v2826
    %v2849 = vpack.c.b16 %v2829, %v2828
    %v2850 = vpack.c.b16 %v2831, %v2830
    %v2851 = vpack.c.b16 %v2833, %v2832
    %v2852 = vpack.c.b16 %v2835, %v2834
    %v2853 = vpack.c.b16 %v2837, %v2836
    %v2854 = vpack.c.b16 %v2839, %v2838
    %v2855 = vpack.c.b16 %v2841, %v2840
    %v2856 = vpack.c.b16 %v2843, %v2842
    %v2857 = vpack.c.b16 %v2845, %v2844
    %v2871 = vsel %vm259, %v2757, 0
    %v2874 = vsel %vm259, %v2758, 0
    %2876 = vmatprep.subr.bf16.mxu0 0
    %2877 = vmatpush1.bf16.msra.mxu0 %v2853
    %2878 = vmatprep.subr.bf16.mxu0 0
    %2879 = vmatpush1.bf16.msra.mxu0 %v2852
    %2880 = vmatprep.subr.bf16.mxu0 0
    %2881 = vmatpush1.bf16.msra.mxu0 %v2851
    %2882 = vmatprep.subr.bf16.mxu0 0
    %2883 = vmatpush1.bf16.msra.mxu0 %v2850
    %2884 = vmatprep.subr.bf16.mxu0 0
    %2885 = vmatpush1.bf16.msra.mxu0 %v2849
    %2886 = vmatprep.subr.bf16.mxu0 0
    %2887 = vmatpush1.bf16.msra.mxu0 %v2848
    %2888 = vmatprep.subr.bf16.mxu0 0
    %2889 = vmatpush1.bf16.msra.mxu0 %v2847
    %2890 = vmatprep.subr.bf16.mxu0 0
    %2891 = vmatpush1.bf16.msra.mxu0 %v2846
    %2892 = vmatprep.subr.bf16.mxu0 0
    %2893 = vmatpush2.bf16.msra.mxu0 0
    %2894 = vmatprep.subr.bf16.mxu0 0
    %2895 = vmatpush2.bf16.msra.mxu0 0
    %2896 = vmatprep.subr.bf16.mxu0 0
    %2897 = vmatpush2.bf16.msra.mxu0 0
    %2898 = vmatprep.subr.bf16.mxu0 0
    %2899 = vmatpush2.bf16.msra.mxu0 0
    %2900 = vmatprep.subr.bf16.mxu0 0
    %2901 = vmatpush2.bf16.msra.mxu0 %v2857
    %2902 = vmatprep.subr.bf16.mxu0 0
    %2903 = vmatpush2.bf16.msra.mxu0 %v2856
    %2904 = vmatprep.subr.bf16.mxu0 0
    %2905 = vmatpush2.bf16.msra.mxu0 %v2855
    %2906 = vmatprep.subr.bf16.mxu0 0
    %2907 = vmatpush2.bf16.msra.mxu0 %v2854
    %2908 = vmatprep.mubr.bf16.mxu0 %v2871
    %2909 = vmatmul.mubr.bf16.gmra.mxu0 %v2767
    %v2910 = vpop.f32.mrf.mxu0
    %v2911 = vadd.f32 0.0, %v2910
    %v2912 = vpop.f32.mrf.mxu0
    %v2913 = vpop.f32.mrf.mxu0
    %v2914 = vadd.f32 0.0, %v2913
    %v2915 = vpop.f32.mrf.mxu0
    %2916 = vmatprep.mubr.bf16.mxu0 %v2874
    %2917 = vmatmul.mubr.bf16.gmra.mxu0 %v2771
    %v2918 = vpop.f32.mrf.mxu0
    %v2919 = vadd.f32 0.0, %v2918
    %v2920 = vpop.f32.mrf.mxu0
    %v2921 = vpop.f32.mrf.mxu0
    %v2922 = vadd.f32 0.0, %v2921
    %v2923 = vpop.f32.mrf.mxu0
    %2924 = vdwg.mxu0
    %v2925 = vsel %vm259, %v2911, 0.0
    %v2926 = vsel %vm259, %v2914, 0.0
    %v2927 = vadd.f32 %v2925, %v2926
    %v2928 = vsel %vm259, %v2919, 0.0
    %v2929 = vadd.f32 %v2927, %v2928
    %v2930 = vsel %vm259, %v2922, 0.0
    %v2931 = vadd.f32 %v2929, %v2930
    %v2932 = vrot.slane %v2931, 4
    %v2933 = vadd.f32 %v2931, %v2932
    %v2934 = vrot.slane %v2933, 2
    %v2935 = vadd.f32 %v2933, %v2934
    %v2936 = vrot.slane %v2935, 1
    %v2937 = vadd.f32 %v2935, %v2936
    %v2938 = vmul.f32 %v2911, %v2911
    %v2939 = vmul.f32 %v2914, %v2914
    %v2940 = vmul.f32 %v2919, %v2919
    %v2941 = vmul.f32 %v2922, %v2922
    %v2942 = vsel %vm259, %v2938, 0.0
    %v2943 = vsel %vm259, %v2939, 0.0
    %v2944 = vadd.f32 %v2942, %v2943
    %v2945 = vsel %vm259, %v2940, 0.0
    %v2946 = vadd.f32 %v2944, %v2945
    %v2947 = vsel %vm259, %v2941, 0.0
    %v2948 = vadd.f32 %v2946, %v2947
    %v2949 = vrot.slane %v2948, 4
    %v2950 = vadd.f32 %v2948, %v2949
    %v2951 = vrot.slane %v2950, 2
    %v2952 = vadd.f32 %v2950, %v2951
    %v2953 = vrot.slane %v2952, 1
    %v2954 = vadd.f32 %v2952, %v2953
    %v2955 = vsel %vm449, %v2937, %v2954
    %s2956 = scalar_lea.vmem %s3, 128
    %v2957 = vld [vmem:[%s2956] sm:$0xf]
    %v2958 = vld [vmem:[%s2956 + $0x4] sm:$0xf]
    %v2959 = vld [vmem:[%s2956 + $0x8] sm:$0xf]
    %v2960 = vld [vmem:[%s2956 + $0xc] sm:$0xf]
    %v2961 = vld [vmem:[%s2956 + $0x10] sm:$0xf]
    %v2962 = vld [vmem:[%s2956 + $0x14] sm:$0xf]
    %v2963 = vld [vmem:[%s2956 + $0x18] sm:$0xf]
    %v2964 = vld [vmem:[%s2956 + $0x1c] sm:$0xf]
    %v2965 = vunpack.c.l.bf16 %v2957
    %v2966 = vunpack.c.l.bf16 %v2958
    %v2967 = vunpack.c.l.bf16 %v2959
    %v2968 = vunpack.c.l.bf16 %v2960
    %v2969 = vunpack.c.l.bf16 %v2961
    %v2970 = vunpack.c.l.bf16 %v2962
    %v2971 = vunpack.c.l.bf16 %v2963
    %v2972 = vunpack.c.l.bf16 %v2964
    %v2974 = vsel %vm259, %v2955, 0
    %2976 = vmatprep.subr.mxu0 0.0
    %2977 = vmatpush1.msra.mxu0 0.0
    %2978 = vmatprep.subr.mxu0 0.0
    %2979 = vmatpush1.msra.mxu0 0.0
    %2980 = vmatprep.subr.mxu0 0.0
    %2981 = vmatpush1.msra.mxu0 0.0
    %2982 = vmatprep.subr.mxu0 0.0
    %2983 = vmatpush1.msra.mxu0 0.0
    %2984 = vmatprep.subr.mxu0 0.0
    %2985 = vmatpush1.msra.mxu0 0.0
    %2986 = vmatprep.subr.mxu0 0.0
    %2987 = vmatpush1.msra.mxu0 0.0
    %2988 = vmatprep.subr.mxu0 0.0
    %2989 = vmatpush1.msra.mxu0 0.0
    %2990 = vmatprep.subr.mxu0 0.0
    %2991 = vmatpush1.msra.mxu0 0.0
    %2992 = vmatprep.subr.mxu0 0.0
    %2993 = vmatpush1.msra.mxu0 %v2972
    %2994 = vmatprep.subr.mxu0 0.0
    %2995 = vmatpush1.msra.mxu0 %v2971
    %2996 = vmatprep.subr.mxu0 0.0
    %2997 = vmatpush1.msra.mxu0 %v2970
    %2998 = vmatprep.subr.mxu0 0.0
    %2999 = vmatpush1.msra.mxu0 %v2969
    %3000 = vmatprep.subr.mxu0 0.0
    %3001 = vmatpush1.msra.mxu0 %v2968
    %3002 = vmatprep.subr.mxu0 0.0
    %3003 = vmatpush1.msra.mxu0 %v2967
    %3004 = vmatprep.subr.mxu0 0.0
    %3005 = vmatpush1.msra.mxu0 %v2966
    %3006 = vmatprep.subr.mxu0 0.0
    %3007 = vmatpush1.msra.mxu0 %v2965
    %3008 = vmatprep.subr.mxu0 0.0
    %3009 = vmatpush2.msra.mxu0 0.0
    %3010 = vmatprep.subr.mxu0 0.0
    %3011 = vmatpush2.msra.mxu0 0.0
    %3012 = vmatprep.subr.mxu0 0.0
    %3013 = vmatpush2.msra.mxu0 0.0
    %3014 = vmatprep.subr.mxu0 0.0
    %3015 = vmatpush2.msra.mxu0 0.0
    %3016 = vmatprep.subr.mxu0 0.0
    %3017 = vmatpush2.msra.mxu0 0.0
    %3018 = vmatprep.subr.mxu0 0.0
    %3019 = vmatpush2.msra.mxu0 0.0
    %3020 = vmatprep.subr.mxu0 0.0
    %3021 = vmatpush2.msra.mxu0 0.0
    %3022 = vmatprep.subr.mxu0 0.0
    %3023 = vmatpush2.msra.mxu0 0.0
    %3024 = vmatprep.subr.mxu0 0.0
    %3025 = vmatpush2.msra.mxu0 0.0
    %3026 = vmatprep.subr.mxu0 0.0
    %3027 = vmatpush2.msra.mxu0 0.0
    %3028 = vmatprep.subr.mxu0 0.0
    %3029 = vmatpush2.msra.mxu0 0.0
    %3030 = vmatprep.subr.mxu0 0.0
    %3031 = vmatpush2.msra.mxu0 0.0
    %3032 = vmatprep.subr.mxu0 0.0
    %3033 = vmatpush2.msra.mxu0 0.0
    %3034 = vmatprep.subr.mxu0 0.0
    %3035 = vmatpush2.msra.mxu0 0.0
    %3036 = vmatprep.subr.mxu0 0.0
    %3037 = vmatpush2.msra.mxu0 0.0
    %3038 = vmatprep.subr.mxu0 0.0
    %3039 = vmatpush2.msra.mxu0 0.0
    %3040 = vmatprep.mubr.f32.mxu0 0.0
    %3041 = vmatmul.mubr.f32.gmra.mxu0 %v2974
    %v3042 = vpop.f32.mrf.mxu0
    %v3043 = vadd.f32 0.0, %v3042
    %v3044 = vpop.f32.mrf.mxu0
    %3045 = vdwg.mxu0
    %v3046 = vmul.f32 %v3043, 0.0078125
    %v3047 = vmul.f32 %v3046, %v3046
    %v3049 = vrot.slane %v3047, 7
    %v3051 = vsub.f32 %v3046, %v3049
    %s3052 = scalar_lea.vmem %s5, 8
    %v3053 = vld [vmem:[%s3052] sm:$0x3]
    %v3054 = vadd.f32 %v3051, 1e-05
    %v3055 = vrsqrt.pop %v3054
    %v3057 = vrot.slane %v3055, 1
    %v3059 = vmul.f32 %v3053, %v3057
    %v3060 = vmul.f32 %v3059, %v3046
    %v3062 = vrot.slane %v3060, 7
    %v3064 = vsub.f32 %v3053, %v3062
    %v3065 = vsel %vm449, %v3059, %v3064
    %s3066 = scalar_lea.vmem %s4, 64
    %v3067 = vld [vmem:[%s3066] sm:$0xf]
    %v3068 = vld [vmem:[%s3066 + $0x4] sm:$0xf]
    %v3069 = vld [vmem:[%s3066 + $0x8] sm:$0xf]
    %v3070 = vld [vmem:[%s3066 + $0xc] sm:$0xf]
    %v3071 = vunpack.c.l.bf16 %v3067
    %v3072 = vunpack.c.l.bf16 %v3068
    %v3073 = vunpack.c.l.bf16 %v3069
    %v3074 = vunpack.c.l.bf16 %v3070
    %v3076 = vsel %vm51, %v3065, 0
    %3078 = vmatprep.subr.mxu0 0.0
    %3079 = vmatpush1.msra.mxu0 0.0
    %3080 = vmatprep.subr.mxu0 0.0
    %3081 = vmatpush1.msra.mxu0 0.0
    %3082 = vmatprep.subr.mxu0 0.0
    %3083 = vmatpush1.msra.mxu0 0.0
    %3084 = vmatprep.subr.mxu0 0.0
    %3085 = vmatpush1.msra.mxu0 0.0
    %3086 = vmatprep.subr.mxu0 0.0
    %3087 = vmatpush1.msra.mxu0 0.0
    %3088 = vmatprep.subr.mxu0 0.0
    %3089 = vmatpush1.msra.mxu0 0.0
    %3090 = vmatprep.subr.mxu0 0.0
    %3091 = vmatpush1.msra.mxu0 0.0
    %3092 = vmatprep.subr.mxu0 0.0
    %3093 = vmatpush1.msra.mxu0 0.0
    %3094 = vmatprep.subr.mxu0 0.0
    %3095 = vmatpush1.msra.mxu0 0.0
    %3096 = vmatprep.subr.mxu0 0.0
    %3097 = vmatpush1.msra.mxu0 0.0
    %3098 = vmatprep.subr.mxu0 0.0
    %3099 = vmatpush1.msra.mxu0 0.0
    %3100 = vmatprep.subr.mxu0 0.0
    %3101 = vmatpush1.msra.mxu0 0.0
    %3102 = vmatprep.subr.mxu0 0.0
    %3103 = vmatpush1.msra.mxu0 %v3074
    %3104 = vmatprep.subr.mxu0 0.0
    %3105 = vmatpush1.msra.mxu0 %v3073
    %3106 = vmatprep.subr.mxu0 0.0
    %3107 = vmatpush1.msra.mxu0 %v3072
    %3108 = vmatprep.subr.mxu0 0.0
    %3109 = vmatpush1.msra.mxu0 %v3071
    %3110 = vmatprep.subr.mxu0 0.0
    %3111 = vmatpush2.msra.mxu0 0.0
    %3112 = vmatprep.subr.mxu0 0.0
    %3113 = vmatpush2.msra.mxu0 0.0
    %3114 = vmatprep.subr.mxu0 0.0
    %3115 = vmatpush2.msra.mxu0 0.0
    %3116 = vmatprep.subr.mxu0 0.0
    %3117 = vmatpush2.msra.mxu0 0.0
    %3118 = vmatprep.subr.mxu0 0.0
    %3119 = vmatpush2.msra.mxu0 0.0
    %3120 = vmatprep.subr.mxu0 0.0
    %3121 = vmatpush2.msra.mxu0 0.0
    %3122 = vmatprep.subr.mxu0 0.0
    %3123 = vmatpush2.msra.mxu0 0.0
    %3124 = vmatprep.subr.mxu0 0.0
    %3125 = vmatpush2.msra.mxu0 0.0
    %3126 = vmatprep.subr.mxu0 0.0
    %3127 = vmatpush2.msra.mxu0 0.0
    %3128 = vmatprep.subr.mxu0 0.0
    %3129 = vmatpush2.msra.mxu0 0.0
    %3130 = vmatprep.subr.mxu0 0.0
    %3131 = vmatpush2.msra.mxu0 0.0
    %3132 = vmatprep.subr.mxu0 0.0
    %3133 = vmatpush2.msra.mxu0 0.0
    %3134 = vmatprep.subr.mxu0 0.0
    %3135 = vmatpush2.msra.mxu0 0.0
    %3136 = vmatprep.subr.mxu0 0.0
    %3137 = vmatpush2.msra.mxu0 0.0
    %3138 = vmatprep.subr.mxu0 0.0
    %3139 = vmatpush2.msra.mxu0 0.0
    %3140 = vmatprep.subr.mxu0 0.0
    %3141 = vmatpush2.msra.mxu0 0.0
    %3142 = vmatprep.mubr.f32.mxu0 0.0
    %3143 = vmatmul.mubr.f32.gmra.mxu0 %v3076
    %v3144 = vpop.f32.mrf.mxu0
    %v3145 = vadd.f32 0.0, %v3144
    %v3146 = vpop.f32.mrf.mxu0
    %3147 = vdwg.mxu0
    %v3148 = vlaneseq
    %v3149 = vshrl.u32 %v3148, 7
    %v3150 = vsub.s32 0, %v3149
    %v3151 = vrot.slane %v3145, %v3150
    %v3152 = vmul.f32 %v2911, %v3151
    %v3153 = vmul.f32 %v2914, %v3151
    %v3154 = vmul.f32 %v2919, %v3151
    %v3155 = vmul.f32 %v2922, %v3151
    %v3156 = vlaneseq
    %v3157 = vshrl.u32 %v3156, 7
    %v3158 = vsub.s32 1, %v3157
    %v3159 = vrot.slane %v3145, %v3158
    %v3160 = vadd.f32 %v3152, %v3159
    %v3161 = vadd.f32 %v3153, %v3159
    %v3162 = vadd.f32 %v3154, %v3159
    %v3163 = vadd.f32 %v3155, %v3159
    %v3164 = vmax.f32 %v3160, 0.0
    %v3165 = vmax.f32 %v3161, 0.0
    %v3166 = vmax.f32 %v3162, 0.0
    %v3167 = vmax.f32 %v3163, 0.0
    %v3168 = vpack.c.bf16 %v3165, %v3164
    %v3169 = vpack.c.bf16 %v3167, %v3166
    %s3170 = scalar_lea.vmem %s1, 240
    %v3171 = vld [vmem:[%s3170] sm:$0xf]
    %v3172 = vld [vmem:[%s3170 + $0x4] sm:$0xf]
    %v3173 = vld [vmem:[%s3170 + $0x8] sm:$0xf]
    %v3174 = vld [vmem:[%s3170 + $0xc] sm:$0xf]
    %v3179 = vunpack.c.l.b16 %v3171
    %v3180 = vunpack.c.l.b16 %v3172
    %v3181 = vunpack.c.l.b16 %v3173
    %v3182 = vunpack.c.l.b16 %v3174
    %v3183 = vpack.c.b16 %v3180, %v3179
    %v3184 = vpack.c.b16 %v3182, %v3181
    %v3186 = vsel %vm51, %v3183, 0
    %v3189 = vsel %vm51, %v3184, 0
    %3191 = vmatprep.subr.bf16.mxu0 0
    %3192 = vmatpush1.bf16.msra.mxu0 0
    %3193 = vmatprep.subr.bf16.mxu0 0
    %3194 = vmatpush1.bf16.msra.mxu0 0
    %3195 = vmatprep.subr.bf16.mxu0 0
    %3196 = vmatpush1.bf16.msra.mxu0 0
    %3197 = vmatprep.subr.bf16.mxu0 0
    %3198 = vmatpush1.bf16.msra.mxu0 0
    %3199 = vmatprep.subr.bf16.mxu0 0
    %3200 = vmatpush1.bf16.msra.mxu0 0
    %3201 = vmatprep.subr.bf16.mxu0 0
    %3202 = vmatpush1.bf16.msra.mxu0 0
    %3203 = vmatprep.subr.bf16.mxu0 0
    %3204 = vmatpush1.bf16.msra.mxu0 %v3169
    %3205 = vmatprep.subr.bf16.mxu0 0
    %3206 = vmatpush1.bf16.msra.mxu0 %v3168
    %3207 = vmatprep.subr.bf16.mxu0 0
    %3208 = vmatpush2.bf16.msra.mxu0 0
    %3209 = vmatprep.subr.bf16.mxu0 0
    %3210 = vmatpush2.bf16.msra.mxu0 0
    %3211 = vmatprep.subr.bf16.mxu0 0
    %3212 = vmatpush2.bf16.msra.mxu0 0
    %3213 = vmatprep.subr.bf16.mxu0 0
    %3214 = vmatpush2.bf16.msra.mxu0 0
    %3215 = vmatprep.subr.bf16.mxu0 0
    %3216 = vmatpush2.bf16.msra.mxu0 0
    %3217 = vmatprep.subr.bf16.mxu0 0
    %3218 = vmatpush2.bf16.msra.mxu0 0
    %3219 = vmatprep.subr.bf16.mxu0 0
    %3220 = vmatpush2.bf16.msra.mxu0 0
    %3221 = vmatprep.subr.bf16.mxu0 0
    %3222 = vmatpush2.bf16.msra.mxu0 0
    %3223 = vmatprep.mubr.bf16.mxu0 0
    %3224 = vmatmul.mubr.bf16.gmra.mxu0 %v3186
    %v3225 = vpop.f32.mrf.mxu0
    %v3226 = vadd.f32 0.0, %v3225
    %v3227 = vpop.f32.mrf.mxu0
    %v3228 = vpop.f32.mrf.mxu0
    %v3229 = vadd.f32 0.0, %v3228
    %v3230 = vpop.f32.mrf.mxu0
    %3231 = vmatprep.mubr.bf16.mxu0 0
    %3232 = vmatmul.mubr.bf16.gmra.mxu0 %v3189
    %v3233 = vpop.f32.mrf.mxu0
    %v3234 = vadd.f32 0.0, %v3233
    %v3235 = vpop.f32.mrf.mxu0
    %v3236 = vpop.f32.mrf.mxu0
    %v3237 = vadd.f32 0.0, %v3236
    %v3238 = vpop.f32.mrf.mxu0
    %3239 = vdwg.mxu0
    %v3240 = vpack.c.bf16 %v3229, %v3226
    %v3241 = vpack.c.bf16 %v3237, %v3234
    %s3242 = scalar_lea.vmem %s1, 256
    %v3243 = vld [vmem:[%s3242] sm:$0xf]
    %v3244 = vld [vmem:[%s3242 + $0x4] sm:$0xf]
    %v3245 = vld [vmem:[%s3242 + $0x8] sm:$0xf]
    %v3246 = vld [vmem:[%s3242 + $0xc] sm:$0xf]
    %v3251 = vunpack.c.l.b16 %v3243
    %v3252 = vunpack.c.l.b16 %v3244
    %v3253 = vunpack.c.l.b16 %v3245
    %v3254 = vunpack.c.l.b16 %v3246
    %v3255 = vpack.c.b16 %v3252, %v3251
    %v3256 = vpack.c.b16 %v3254, %v3253
    %v3258 = vsel %vm51, %v3255, 0
    %v3261 = vsel %vm51, %v3256, 0
    %3263 = vmatprep.subr.bf16.mxu0 0
    %3264 = vmatpush1.bf16.msra.mxu0 0
    %3265 = vmatprep.subr.bf16.mxu0 0
    %3266 = vmatpush1.bf16.msra.mxu0 0
    %3267 = vmatprep.subr.bf16.mxu0 0
    %3268 = vmatpush1.bf16.msra.mxu0 0
    %3269 = vmatprep.subr.bf16.mxu0 0
    %3270 = vmatpush1.bf16.msra.mxu0 0
    %3271 = vmatprep.subr.bf16.mxu0 0
    %3272 = vmatpush1.bf16.msra.mxu0 0
    %3273 = vmatprep.subr.bf16.mxu0 0
    %3274 = vmatpush1.bf16.msra.mxu0 0
    %3275 = vmatprep.subr.bf16.mxu0 0
    %3276 = vmatpush1.bf16.msra.mxu0 %v3169
    %3277 = vmatprep.subr.bf16.mxu0 0
    %3278 = vmatpush1.bf16.msra.mxu0 %v3168
    %3279 = vmatprep.subr.bf16.mxu0 0
    %3280 = vmatpush2.bf16.msra.mxu0 0
    %3281 = vmatprep.subr.bf16.mxu0 0
    %3282 = vmatpush2.bf16.msra.mxu0 0
    %3283 = vmatprep.subr.bf16.mxu0 0
    %3284 = vmatpush2.bf16.msra.mxu0 0
    %3285 = vmatprep.subr.bf16.mxu0 0
    %3286 = vmatpush2.bf16.msra.mxu0 0
    %3287 = vmatprep.subr.bf16.mxu0 0
    %3288 = vmatpush2.bf16.msra.mxu0 0
    %3289 = vmatprep.subr.bf16.mxu0 0
    %3290 = vmatpush2.bf16.msra.mxu0 0
    %3291 = vmatprep.subr.bf16.mxu0 0
    %3292 = vmatpush2.bf16.msra.mxu0 0
    %3293 = vmatprep.subr.bf16.mxu0 0
    %3294 = vmatpush2.bf16.msra.mxu0 0
    %3295 = vmatprep.mubr.bf16.mxu0 0
    %3296 = vmatmul.mubr.bf16.gmra.mxu0 %v3258
    %v3297 = vpop.f32.mrf.mxu0
    %v3298 = vadd.f32 0.0, %v3297
    %v3299 = vpop.f32.mrf.mxu0
    %v3300 = vpop.f32.mrf.mxu0
    %v3301 = vadd.f32 0.0, %v3300
    %v3302 = vpop.f32.mrf.mxu0
    %3303 = vmatprep.mubr.bf16.mxu0 0
    %3304 = vmatmul.mubr.bf16.gmra.mxu0 %v3261
    %v3305 = vpop.f32.mrf.mxu0
    %v3306 = vadd.f32 0.0, %v3305
    %v3307 = vpop.f32.mrf.mxu0
    %v3308 = vpop.f32.mrf.mxu0
    %v3309 = vadd.f32 0.0, %v3308
    %v3310 = vpop.f32.mrf.mxu0
    %3311 = vdwg.mxu0
    %v3312 = vpack.c.bf16 %v3301, %v3298
    %v3313 = vpack.c.bf16 %v3309, %v3306
    %s3314 = scalar_lea.vmem %s1, 272
    %v3315 = vld [vmem:[%s3314] sm:$0xf]
    %v3316 = vld [vmem:[%s3314 + $0x4] sm:$0xf]
    %v3317 = vld [vmem:[%s3314 + $0x8] sm:$0xf]
    %v3318 = vld [vmem:[%s3314 + $0xc] sm:$0xf]
    %v3323 = vunpack.c.l.b16 %v3315
    %v3324 = vunpack.c.l.b16 %v3316
    %v3325 = vunpack.c.l.b16 %v3317
    %v3326 = vunpack.c.l.b16 %v3318
    %v3327 = vpack.c.b16 %v3324, %v3323
    %v3328 = vpack.c.b16 %v3326, %v3325
    %v3330 = vsel %vm51, %v3327, 0
    %v3333 = vsel %vm51, %v3328, 0
    %3335 = vmatprep.subr.bf16.mxu0 0
    %3336 = vmatpush1.bf16.msra.mxu0 0
    %3337 = vmatprep.subr.bf16.mxu0 0
    %3338 = vmatpush1.bf16.msra.mxu0 0
    %3339 = vmatprep.subr.bf16.mxu0 0
    %3340 = vmatpush1.bf16.msra.mxu0 0
    %3341 = vmatprep.subr.bf16.mxu0 0
    %3342 = vmatpush1.bf16.msra.mxu0 0
    %3343 = vmatprep.subr.bf16.mxu0 0
    %3344 = vmatpush1.bf16.msra.mxu0 0
    %3345 = vmatprep.subr.bf16.mxu0 0
    %3346 = vmatpush1.bf16.msra.mxu0 0
    %3347 = vmatprep.subr.bf16.mxu0 0
    %3348 = vmatpush1.bf16.msra.mxu0 %v3169
    %3349 = vmatprep.subr.bf16.mxu0 0
    %3350 = vmatpush1.bf16.msra.mxu0 %v3168
    %3351 = vmatprep.subr.bf16.mxu0 0
    %3352 = vmatpush2.bf16.msra.mxu0 0
    %3353 = vmatprep.subr.bf16.mxu0 0
    %3354 = vmatpush2.bf16.msra.mxu0 0
    %3355 = vmatprep.subr.bf16.mxu0 0
    %3356 = vmatpush2.bf16.msra.mxu0 0
    %3357 = vmatprep.subr.bf16.mxu0 0
    %3358 = vmatpush2.bf16.msra.mxu0 0
    %3359 = vmatprep.subr.bf16.mxu0 0
    %3360 = vmatpush2.bf16.msra.mxu0 0
    %3361 = vmatprep.subr.bf16.mxu0 0
    %3362 = vmatpush2.bf16.msra.mxu0 0
    %3363 = vmatprep.subr.bf16.mxu0 0
    %3364 = vmatpush2.bf16.msra.mxu0 0
    %3365 = vmatprep.subr.bf16.mxu0 0
    %3366 = vmatpush2.bf16.msra.mxu0 0
    %3367 = vmatprep.mubr.bf16.mxu0 0
    %3368 = vmatmul.mubr.bf16.gmra.mxu0 %v3330
    %v3369 = vpop.f32.mrf.mxu0
    %v3370 = vadd.f32 0.0, %v3369
    %v3371 = vpop.f32.mrf.mxu0
    %v3372 = vpop.f32.mrf.mxu0
    %v3373 = vadd.f32 0.0, %v3372
    %v3374 = vpop.f32.mrf.mxu0
    %3375 = vmatprep.mubr.bf16.mxu0 0
    %3376 = vmatmul.mubr.bf16.gmra.mxu0 %v3333
    %v3377 = vpop.f32.mrf.mxu0
    %v3378 = vadd.f32 0.0, %v3377
    %v3379 = vpop.f32.mrf.mxu0
    %v3380 = vpop.f32.mrf.mxu0
    %v3381 = vadd.f32 0.0, %v3380
    %v3382 = vpop.f32.mrf.mxu0
    %3383 = vdwg.mxu0
    %v3384 = vpack.c.bf16 %v3373, %v3370
    %v3385 = vpack.c.bf16 %v3381, %v3378
    %3388 = vrot.lane.b32.xlu0 %v3312, 64
    %v3389 = vpop.permute.xlu0 %3388
    %3390 = vrot.lane.b32.xlu0 %v3313, 64
    %v3391 = vpop.permute.xlu0 %3390
    %v3394 = vsel %vm259, %v3240, %v3389
    %v3398 = vsel %vm259, %v3241, %v3391
    %s3400 = scalar_lea.vmem %s2, 480
    %v3401 = vld [vmem:[%s3400] sm:$0xf]
    %v3402 = vld [vmem:[%s3400 + $0x4] sm:$0xf]
    %v3403 = vld [vmem:[%s3400 + $0x8] sm:$0xf]
    %v3404 = vld [vmem:[%s3400 + $0xc] sm:$0xf]
    %v3405 = vld [vmem:[%s3400 + $0x10] sm:$0xf]
    %v3406 = vld [vmem:[%s3400 + $0x14] sm:$0xf]
    %v3407 = vld [vmem:[%s3400 + $0x18] sm:$0xf]
    %v3408 = vld [vmem:[%s3400 + $0x1c] sm:$0xf]
    %v3409 = vld [vmem:[%s3400 + $0x20] sm:$0xf]
    %v3410 = vld [vmem:[%s3400 + $0x24] sm:$0xf]
    %v3411 = vld [vmem:[%s3400 + $0x28] sm:$0xf]
    %v3412 = vld [vmem:[%s3400 + $0x2c] sm:$0xf]
    %v3413 = vld [vmem:[%s3400 + $0x30] sm:$0xf]
    %v3414 = vld [vmem:[%s3400 + $0x34] sm:$0xf]
    %v3415 = vld [vmem:[%s3400 + $0x38] sm:$0xf]
    %v3416 = vld [vmem:[%s3400 + $0x3c] sm:$0xf]
    %v3417 = vld [vmem:[%s3400 + $0x40] sm:$0xf]
    %v3418 = vld [vmem:[%s3400 + $0x44] sm:$0xf]
    %v3419 = vld [vmem:[%s3400 + $0x48] sm:$0xf]
    %v3420 = vld [vmem:[%s3400 + $0x4c] sm:$0xf]
    %v3421 = vld [vmem:[%s3400 + $0x50] sm:$0xf]
    %v3422 = vld [vmem:[%s3400 + $0x54] sm:$0xf]
    %v3423 = vld [vmem:[%s3400 + $0x58] sm:$0xf]
    %v3424 = vld [vmem:[%s3400 + $0x5c] sm:$0xf]
    %v3449 = vunpack.c.l.b16 %v3401
    %v3450 = vunpack.c.l.b16 %v3402
    %v3451 = vunpack.c.l.b16 %v3403
    %v3452 = vunpack.c.l.b16 %v3404
    %v3453 = vunpack.c.l.b16 %v3405
    %v3454 = vunpack.c.l.b16 %v3406
    %v3455 = vunpack.c.l.b16 %v3407
    %v3456 = vunpack.c.l.b16 %v3408
    %v3457 = vunpack.c.l.b16 %v3409
    %v3458 = vunpack.c.l.b16 %v3410
    %v3459 = vunpack.c.l.b16 %v3411
    %v3460 = vunpack.c.l.b16 %v3412
    %v3461 = vunpack.c.l.b16 %v3413
    %v3462 = vunpack.c.l.b16 %v3414
    %v3463 = vunpack.c.l.b16 %v3415
    %v3464 = vunpack.c.l.b16 %v3416
    %v3465 = vunpack.c.l.b16 %v3417
    %v3466 = vunpack.c.l.b16 %v3418
    %v3467 = vunpack.c.l.b16 %v3419
    %v3468 = vunpack.c.l.b16 %v3420
    %v3469 = vunpack.c.l.b16 %v3421
    %v3470 = vunpack.c.l.b16 %v3422
    %v3471 = vunpack.c.l.b16 %v3423
    %v3472 = vunpack.c.l.b16 %v3424
    %v3473 = vpack.c.b16 %v3450, %v3449
    %v3474 = vpack.c.b16 %v3452, %v3451
    %v3475 = vpack.c.b16 %v3454, %v3453
    %v3476 = vpack.c.b16 %v3456, %v3455
    %v3477 = vpack.c.b16 %v3458, %v3457
    %v3478 = vpack.c.b16 %v3460, %v3459
    %v3479 = vpack.c.b16 %v3462, %v3461
    %v3480 = vpack.c.b16 %v3464, %v3463
    %v3481 = vpack.c.b16 %v3466, %v3465
    %v3482 = vpack.c.b16 %v3468, %v3467
    %v3483 = vpack.c.b16 %v3470, %v3469
    %v3484 = vpack.c.b16 %v3472, %v3471
    %v3498 = vsel %vm259, %v3384, 0
    %v3501 = vsel %vm259, %v3385, 0
    %3503 = vmatprep.subr.bf16.mxu0 0
    %3504 = vmatpush1.bf16.msra.mxu0 %v3480
    %3505 = vmatprep.subr.bf16.mxu0 0
    %3506 = vmatpush1.bf16.msra.mxu0 %v3479
    %3507 = vmatprep.subr.bf16.mxu0 0
    %3508 = vmatpush1.bf16.msra.mxu0 %v3478
    %3509 = vmatprep.subr.bf16.mxu0 0
    %3510 = vmatpush1.bf16.msra.mxu0 %v3477
    %3511 = vmatprep.subr.bf16.mxu0 0
    %3512 = vmatpush1.bf16.msra.mxu0 %v3476
    %3513 = vmatprep.subr.bf16.mxu0 0
    %3514 = vmatpush1.bf16.msra.mxu0 %v3475
    %3515 = vmatprep.subr.bf16.mxu0 0
    %3516 = vmatpush1.bf16.msra.mxu0 %v3474
    %3517 = vmatprep.subr.bf16.mxu0 0
    %3518 = vmatpush1.bf16.msra.mxu0 %v3473
    %3519 = vmatprep.subr.bf16.mxu0 0
    %3520 = vmatpush2.bf16.msra.mxu0 0
    %3521 = vmatprep.subr.bf16.mxu0 0
    %3522 = vmatpush2.bf16.msra.mxu0 0
    %3523 = vmatprep.subr.bf16.mxu0 0
    %3524 = vmatpush2.bf16.msra.mxu0 0
    %3525 = vmatprep.subr.bf16.mxu0 0
    %3526 = vmatpush2.bf16.msra.mxu0 0
    %3527 = vmatprep.subr.bf16.mxu0 0
    %3528 = vmatpush2.bf16.msra.mxu0 %v3484
    %3529 = vmatprep.subr.bf16.mxu0 0
    %3530 = vmatpush2.bf16.msra.mxu0 %v3483
    %3531 = vmatprep.subr.bf16.mxu0 0
    %3532 = vmatpush2.bf16.msra.mxu0 %v3482
    %3533 = vmatprep.subr.bf16.mxu0 0
    %3534 = vmatpush2.bf16.msra.mxu0 %v3481
    %3535 = vmatprep.mubr.bf16.mxu0 %v3498
    %3536 = vmatmul.mubr.bf16.gmra.mxu0 %v3394
    %v3537 = vpop.f32.mrf.mxu0
    %v3538 = vadd.f32 0.0, %v3537
    %v3539 = vpop.f32.mrf.mxu0
    %v3540 = vpop.f32.mrf.mxu0
    %v3541 = vadd.f32 0.0, %v3540
    %v3542 = vpop.f32.mrf.mxu0
    %3543 = vmatprep.mubr.bf16.mxu0 %v3501
    %3544 = vmatmul.mubr.bf16.gmra.mxu0 %v3398
    %v3545 = vpop.f32.mrf.mxu0
    %v3546 = vadd.f32 0.0, %v3545
    %v3547 = vpop.f32.mrf.mxu0
    %v3548 = vpop.f32.mrf.mxu0
    %v3549 = vadd.f32 0.0, %v3548
    %v3550 = vpop.f32.mrf.mxu0
    %3551 = vdwg.mxu0
    %v3552 = vsel %vm259, %v3538, 0.0
    %v3553 = vsel %vm259, %v3541, 0.0
    %v3554 = vadd.f32 %v3552, %v3553
    %v3555 = vsel %vm259, %v3546, 0.0
    %v3556 = vadd.f32 %v3554, %v3555
    %v3557 = vsel %vm259, %v3549, 0.0
    %v3558 = vadd.f32 %v3556, %v3557
    %v3559 = vrot.slane %v3558, 4
    %v3560 = vadd.f32 %v3558, %v3559
    %v3561 = vrot.slane %v3560, 2
    %v3562 = vadd.f32 %v3560, %v3561
    %v3563 = vrot.slane %v3562, 1
    %v3564 = vadd.f32 %v3562, %v3563
    %v3565 = vmul.f32 %v3538, %v3538
    %v3566 = vmul.f32 %v3541, %v3541
    %v3567 = vmul.f32 %v3546, %v3546
    %v3568 = vmul.f32 %v3549, %v3549
    %v3569 = vsel %vm259, %v3565, 0.0
    %v3570 = vsel %vm259, %v3566, 0.0
    %v3571 = vadd.f32 %v3569, %v3570
    %v3572 = vsel %vm259, %v3567, 0.0
    %v3573 = vadd.f32 %v3571, %v3572
    %v3574 = vsel %vm259, %v3568, 0.0
    %v3575 = vadd.f32 %v3573, %v3574
    %v3576 = vrot.slane %v3575, 4
    %v3577 = vadd.f32 %v3575, %v3576
    %v3578 = vrot.slane %v3577, 2
    %v3579 = vadd.f32 %v3577, %v3578
    %v3580 = vrot.slane %v3579, 1
    %v3581 = vadd.f32 %v3579, %v3580
    %v3582 = vsel %vm449, %v3564, %v3581
    %s3583 = scalar_lea.vmem %s3, 160
    %v3584 = vld [vmem:[%s3583] sm:$0xf]
    %v3585 = vld [vmem:[%s3583 + $0x4] sm:$0xf]
    %v3586 = vld [vmem:[%s3583 + $0x8] sm:$0xf]
    %v3587 = vld [vmem:[%s3583 + $0xc] sm:$0xf]
    %v3588 = vld [vmem:[%s3583 + $0x10] sm:$0xf]
    %v3589 = vld [vmem:[%s3583 + $0x14] sm:$0xf]
    %v3590 = vld [vmem:[%s3583 + $0x18] sm:$0xf]
    %v3591 = vld [vmem:[%s3583 + $0x1c] sm:$0xf]
    %v3592 = vunpack.c.l.bf16 %v3584
    %v3593 = vunpack.c.l.bf16 %v3585
    %v3594 = vunpack.c.l.bf16 %v3586
    %v3595 = vunpack.c.l.bf16 %v3587
    %v3596 = vunpack.c.l.bf16 %v3588
    %v3597 = vunpack.c.l.bf16 %v3589
    %v3598 = vunpack.c.l.bf16 %v3590
    %v3599 = vunpack.c.l.bf16 %v3591
    %v3601 = vsel %vm259, %v3582, 0
    %3603 = vmatprep.subr.mxu0 0.0
    %3604 = vmatpush1.msra.mxu0 0.0
    %3605 = vmatprep.subr.mxu0 0.0
    %3606 = vmatpush1.msra.mxu0 0.0
    %3607 = vmatprep.subr.mxu0 0.0
    %3608 = vmatpush1.msra.mxu0 0.0
    %3609 = vmatprep.subr.mxu0 0.0
    %3610 = vmatpush1.msra.mxu0 0.0
    %3611 = vmatprep.subr.mxu0 0.0
    %3612 = vmatpush1.msra.mxu0 0.0
    %3613 = vmatprep.subr.mxu0 0.0
    %3614 = vmatpush1.msra.mxu0 0.0
    %3615 = vmatprep.subr.mxu0 0.0
    %3616 = vmatpush1.msra.mxu0 0.0
    %3617 = vmatprep.subr.mxu0 0.0
    %3618 = vmatpush1.msra.mxu0 0.0
    %3619 = vmatprep.subr.mxu0 0.0
    %3620 = vmatpush1.msra.mxu0 %v3599
    %3621 = vmatprep.subr.mxu0 0.0
    %3622 = vmatpush1.msra.mxu0 %v3598
    %3623 = vmatprep.subr.mxu0 0.0
    %3624 = vmatpush1.msra.mxu0 %v3597
    %3625 = vmatprep.subr.mxu0 0.0
    %3626 = vmatpush1.msra.mxu0 %v3596
    %3627 = vmatprep.subr.mxu0 0.0
    %3628 = vmatpush1.msra.mxu0 %v3595
    %3629 = vmatprep.subr.mxu0 0.0
    %3630 = vmatpush1.msra.mxu0 %v3594
    %3631 = vmatprep.subr.mxu0 0.0
    %3632 = vmatpush1.msra.mxu0 %v3593
    %3633 = vmatprep.subr.mxu0 0.0
    %3634 = vmatpush1.msra.mxu0 %v3592
    %3635 = vmatprep.subr.mxu0 0.0
    %3636 = vmatpush2.msra.mxu0 0.0
    %3637 = vmatprep.subr.mxu0 0.0
    %3638 = vmatpush2.msra.mxu0 0.0
    %3639 = vmatprep.subr.mxu0 0.0
    %3640 = vmatpush2.msra.mxu0 0.0
    %3641 = vmatprep.subr.mxu0 0.0
    %3642 = vmatpush2.msra.mxu0 0.0
    %3643 = vmatprep.subr.mxu0 0.0
    %3644 = vmatpush2.msra.mxu0 0.0
    %3645 = vmatprep.subr.mxu0 0.0
    %3646 = vmatpush2.msra.mxu0 0.0
    %3647 = vmatprep.subr.mxu0 0.0
    %3648 = vmatpush2.msra.mxu0 0.0
    %3649 = vmatprep.subr.mxu0 0.0
    %3650 = vmatpush2.msra.mxu0 0.0
    %3651 = vmatprep.subr.mxu0 0.0
    %3652 = vmatpush2.msra.mxu0 0.0
    %3653 = vmatprep.subr.mxu0 0.0
    %3654 = vmatpush2.msra.mxu0 0.0
    %3655 = vmatprep.subr.mxu0 0.0
    %3656 = vmatpush2.msra.mxu0 0.0
    %3657 = vmatprep.subr.mxu0 0.0
    %3658 = vmatpush2.msra.mxu0 0.0
    %3659 = vmatprep.subr.mxu0 0.0
    %3660 = vmatpush2.msra.mxu0 0.0
    %3661 = vmatprep.subr.mxu0 0.0
    %3662 = vmatpush2.msra.mxu0 0.0
    %3663 = vmatprep.subr.mxu0 0.0
    %3664 = vmatpush2.msra.mxu0 0.0
    %3665 = vmatprep.subr.mxu0 0.0
    %3666 = vmatpush2.msra.mxu0 0.0
    %3667 = vmatprep.mubr.f32.mxu0 0.0
    %3668 = vmatmul.mubr.f32.gmra.mxu0 %v3601
    %v3669 = vpop.f32.mrf.mxu0
    %v3670 = vadd.f32 0.0, %v3669
    %v3671 = vpop.f32.mrf.mxu0
    %3672 = vdwg.mxu0
    %v3673 = vmul.f32 %v3670, 0.001953125
    %v3674 = vmul.f32 %v3673, %v3673
    %v3676 = vrot.slane %v3674, 7
    %v3678 = vsub.f32 %v3673, %v3676
    %s3679 = scalar_lea.vmem %s5, 10
    %v3680 = vld [vmem:[%s3679] sm:$0x3]
    %v3681 = vadd.f32 %v3678, 1e-05
    %v3682 = vrsqrt.pop %v3681
    %v3684 = vrot.slane %v3682, 1
    %v3686 = vmul.f32 %v3680, %v3684
    %v3687 = vmul.f32 %v3686, %v3673
    %v3689 = vrot.slane %v3687, 7
    %v3691 = vsub.f32 %v3680, %v3689
    %v3692 = vsel %vm449, %v3686, %v3691
    %s3693 = scalar_lea.vmem %s4, 80
    %v3694 = vld [vmem:[%s3693] sm:$0xf]
    %v3695 = vld [vmem:[%s3693 + $0x4] sm:$0xf]
    %v3696 = vld [vmem:[%s3693 + $0x8] sm:$0xf]
    %v3697 = vld [vmem:[%s3693 + $0xc] sm:$0xf]
    %v3698 = vunpack.c.l.bf16 %v3694
    %v3699 = vunpack.c.l.bf16 %v3695
    %v3700 = vunpack.c.l.bf16 %v3696
    %v3701 = vunpack.c.l.bf16 %v3697
    %v3703 = vsel %vm51, %v3692, 0
    %3705 = vmatprep.subr.mxu0 0.0
    %3706 = vmatpush1.msra.mxu0 0.0
    %3707 = vmatprep.subr.mxu0 0.0
    %3708 = vmatpush1.msra.mxu0 0.0
    %3709 = vmatprep.subr.mxu0 0.0
    %3710 = vmatpush1.msra.mxu0 0.0
    %3711 = vmatprep.subr.mxu0 0.0
    %3712 = vmatpush1.msra.mxu0 0.0
    %3713 = vmatprep.subr.mxu0 0.0
    %3714 = vmatpush1.msra.mxu0 0.0
    %3715 = vmatprep.subr.mxu0 0.0
    %3716 = vmatpush1.msra.mxu0 0.0
    %3717 = vmatprep.subr.mxu0 0.0
    %3718 = vmatpush1.msra.mxu0 0.0
    %3719 = vmatprep.subr.mxu0 0.0
    %3720 = vmatpush1.msra.mxu0 0.0
    %3721 = vmatprep.subr.mxu0 0.0
    %3722 = vmatpush1.msra.mxu0 0.0
    %3723 = vmatprep.subr.mxu0 0.0
    %3724 = vmatpush1.msra.mxu0 0.0
    %3725 = vmatprep.subr.mxu0 0.0
    %3726 = vmatpush1.msra.mxu0 0.0
    %3727 = vmatprep.subr.mxu0 0.0
    %3728 = vmatpush1.msra.mxu0 0.0
    %3729 = vmatprep.subr.mxu0 0.0
    %3730 = vmatpush1.msra.mxu0 %v3701
    %3731 = vmatprep.subr.mxu0 0.0
    %3732 = vmatpush1.msra.mxu0 %v3700
    %3733 = vmatprep.subr.mxu0 0.0
    %3734 = vmatpush1.msra.mxu0 %v3699
    %3735 = vmatprep.subr.mxu0 0.0
    %3736 = vmatpush1.msra.mxu0 %v3698
    %3737 = vmatprep.subr.mxu0 0.0
    %3738 = vmatpush2.msra.mxu0 0.0
    %3739 = vmatprep.subr.mxu0 0.0
    %3740 = vmatpush2.msra.mxu0 0.0
    %3741 = vmatprep.subr.mxu0 0.0
    %3742 = vmatpush2.msra.mxu0 0.0
    %3743 = vmatprep.subr.mxu0 0.0
    %3744 = vmatpush2.msra.mxu0 0.0
    %3745 = vmatprep.subr.mxu0 0.0
    %3746 = vmatpush2.msra.mxu0 0.0
    %3747 = vmatprep.subr.mxu0 0.0
    %3748 = vmatpush2.msra.mxu0 0.0
    %3749 = vmatprep.subr.mxu0 0.0
    %3750 = vmatpush2.msra.mxu0 0.0
    %3751 = vmatprep.subr.mxu0 0.0
    %3752 = vmatpush2.msra.mxu0 0.0
    %3753 = vmatprep.subr.mxu0 0.0
    %3754 = vmatpush2.msra.mxu0 0.0
    %3755 = vmatprep.subr.mxu0 0.0
    %3756 = vmatpush2.msra.mxu0 0.0
    %3757 = vmatprep.subr.mxu0 0.0
    %3758 = vmatpush2.msra.mxu0 0.0
    %3759 = vmatprep.subr.mxu0 0.0
    %3760 = vmatpush2.msra.mxu0 0.0
    %3761 = vmatprep.subr.mxu0 0.0
    %3762 = vmatpush2.msra.mxu0 0.0
    %3763 = vmatprep.subr.mxu0 0.0
    %3764 = vmatpush2.msra.mxu0 0.0
    %3765 = vmatprep.subr.mxu0 0.0
    %3766 = vmatpush2.msra.mxu0 0.0
    %3767 = vmatprep.subr.mxu0 0.0
    %3768 = vmatpush2.msra.mxu0 0.0
    %3769 = vmatprep.mubr.f32.mxu0 0.0
    %3770 = vmatmul.mubr.f32.gmra.mxu0 %v3703
    %v3771 = vpop.f32.mrf.mxu0
    %v3772 = vadd.f32 0.0, %v3771
    %v3773 = vpop.f32.mrf.mxu0
    %3774 = vdwg.mxu0
    %v3775 = vlaneseq
    %v3776 = vshrl.u32 %v3775, 7
    %v3777 = vsub.s32 0, %v3776
    %v3778 = vrot.slane %v3772, %v3777
    %v3779 = vmul.f32 %v3538, %v3778
    %v3780 = vmul.f32 %v3541, %v3778
    %v3781 = vmul.f32 %v3546, %v3778
    %v3782 = vmul.f32 %v3549, %v3778
    %v3783 = vlaneseq
    %v3784 = vshrl.u32 %v3783, 7
    %v3785 = vsub.s32 1, %v3784
    %v3786 = vrot.slane %v3772, %v3785
    %v3787 = vadd.f32 %v3779, %v3786
    %v3788 = vadd.f32 %v3780, %v3786
    %v3789 = vadd.f32 %v3781, %v3786
    %v3790 = vadd.f32 %v3782, %v3786
    %v3791 = vmax.f32 %v3787, 0.0
    %v3792 = vmax.f32 %v3788, 0.0
    %v3793 = vmax.f32 %v3789, 0.0
    %v3794 = vmax.f32 %v3790, 0.0
    %v3795 = vpack.c.bf16 %v3792, %v3791
    %v3796 = vpack.c.bf16 %v3794, %v3793
    %v3797 = vld [vmem:[%s6] sm:$0xf]
    %v3798 = vld [vmem:[%s6 + $0x4] sm:$0xf]
    %v3799 = vld [vmem:[%s6 + $0x8] sm:$0xf]
    %v3800 = vld [vmem:[%s6 + $0xc] sm:$0xf]
    %v3801 = vld [vmem:[%s6 + $0x10] sm:$0xf]
    %v3802 = vld [vmem:[%s6 + $0x14] sm:$0xf]
    %v3803 = vld [vmem:[%s6 + $0x18] sm:$0xf]
    %v3804 = vld [vmem:[%s6 + $0x1c] sm:$0xf]
    %v3805 = vld [vmem:[%s7] sm:$0x1]
    %v3807 = vlaneseq
    %v3808 = vshrl.u32 %v3807, 7
    %v3809 = vsub.s32 0, %v3808
    %v3810 = vrot.slane %v3805, %v3809
    %v3820 = vunpack.c.l.b16 %v3797
    %v3821 = vunpack.c.l.b16 %v3798
    %v3822 = vunpack.c.l.b16 %v3799
    %v3823 = vunpack.c.l.b16 %v3800
    %v3824 = vunpack.c.l.b16 %v3801
    %v3825 = vunpack.c.l.b16 %v3802
    %v3826 = vunpack.c.l.b16 %v3803
    %v3827 = vunpack.c.l.b16 %v3804
    %v3828 = vpack.c.b16 %v3821, %v3820
    %v3829 = vpack.c.b16 %v3823, %v3822
    %v3830 = vpack.c.b16 %v3825, %v3824
    %v3831 = vpack.c.b16 %v3827, %v3826
    %v3837 = vsel %vm259, %v3795, 0
    %v3840 = vsel %vm259, %v3796, 0
    %3842 = vmatprep.subr.bf16.mxu0 0
    %3843 = vmatpush1.bf16.msra.mxu0 0
    %3844 = vmatprep.subr.bf16.mxu0 0
    %3845 = vmatpush1.bf16.msra.mxu0 0
    %3846 = vmatprep.subr.bf16.mxu0 0
    %3847 = vmatpush1.bf16.msra.mxu0 0
    %3848 = vmatprep.subr.bf16.mxu0 0
    %3849 = vmatpush1.bf16.msra.mxu0 0
    %3850 = vmatprep.subr.bf16.mxu0 0
    %3851 = vmatpush1.bf16.msra.mxu0 %v3831
    %3852 = vmatprep.subr.bf16.mxu0 0
    %3853 = vmatpush1.bf16.msra.mxu0 %v3830
    %3854 = vmatprep.subr.bf16.mxu0 0
    %3855 = vmatpush1.bf16.msra.mxu0 %v3829
    %3856 = vmatprep.subr.bf16.mxu0 0
    %3857 = vmatpush1.bf16.msra.mxu0 %v3828
    %3858 = vmatprep.subr.bf16.mxu0 0
    %3859 = vmatpush2.bf16.msra.mxu0 0
    %3860 = vmatprep.subr.bf16.mxu0 0
    %3861 = vmatpush2.bf16.msra.mxu0 0
    %3862 = vmatprep.subr.bf16.mxu0 0
    %3863 = vmatpush2.bf16.msra.mxu0 0
    %3864 = vmatprep.subr.bf16.mxu0 0
    %3865 = vmatpush2.bf16.msra.mxu0 0
    %3866 = vmatprep.subr.bf16.mxu0 0
    %3867 = vmatpush2.bf16.msra.mxu0 0
    %3868 = vmatprep.subr.bf16.mxu0 0
    %3869 = vmatpush2.bf16.msra.mxu0 0
    %3870 = vmatprep.subr.bf16.mxu0 0
    %3871 = vmatpush2.bf16.msra.mxu0 0
    %3872 = vmatprep.subr.bf16.mxu0 0
    %3873 = vmatpush2.bf16.msra.mxu0 0
    %3874 = vmatprep.mubr.bf16.mxu0 0
    %3875 = vmatmul.mubr.bf16.gmra.mxu0 %v3837
    %v3876 = vpop.f32.mrf.mxu0
    %v3877 = vadd.f32 %v3810, %v3876
    %v3878 = vpop.f32.mrf.mxu0
    %v3879 = vpop.f32.mrf.mxu0
    %v3880 = vadd.f32 %v3810, %v3879
    %v3881 = vpop.f32.mrf.mxu0
    %3882 = vmatprep.mubr.bf16.mxu0 0
    %3883 = vmatmul.mubr.bf16.gmra.mxu0 %v3840
    %v3884 = vpop.f32.mrf.mxu0
    %v3885 = vadd.f32 %v3810, %v3884
    %v3886 = vpop.f32.mrf.mxu0
    %v3887 = vpop.f32.mrf.mxu0
    %v3888 = vadd.f32 %v3810, %v3887
    %v3889 = vpop.f32.mrf.mxu0
    %3890 = vdwg.mxu0
    %vm3891 = vcmask 130048
    %3892 = vst.msk [vmem:[#allocation2] sm:$0xff] %vm3891, %v3877
    %3893 = vst.msk [vmem:[#allocation2 + $0x8] sm:$0xff] %vm3891, %v3880
    %3894 = vst.msk [vmem:[#allocation2 + $0x10] sm:$0xff] %vm3891, %v3885
    %3895 = vst.msk [vmem:[#allocation2 + $0x18] sm:$0xff] %vm3891, %v3888
    // Predicated region
    $region34: #{cnn_forward.1} parent=1 // pred_check
      _
    $region35: #{cnn_forward.1} parent=1 // pred_check_branch
      %3897 = sbr.rel (0) target = $region37
    $region36: #{cnn_forward.1} parent=1 // pred_region
      %s3899 = ssub.s32 512, 512
      %3900 = vsyncadd [#allocation3], %s3899
      %s3901 = sshll.u32 [#allocation2], 4
      %s3902 = int_to_ptr.vmem [resolvable:$true] %s3901
      %3907 = dma.vmem_to_hbm [thread:$0]  %s3902, 512, %s8, [#allocation3], 128, 128, 8
    $region37: #{cnn_forward.1} parent=1 // pred_fallthru
      _
    // Predicated region
    $region38: #{cnn_forward.1} parent=1 // pred_check
      _
    $region39: #{cnn_forward.1} parent=1 // pred_check_branch
      %3909 = sbr.rel (0) target = $region41
    $region40: #{cnn_forward.1} parent=1 // pred_region
      %3910 = dma.done [#allocation3], 512
    $region41: #{cnn_forward.1} parent=1 // pred_fallthru
      _
    %3911 = vsyncpa [#allocation3], 1

</llo_original>
